<compile_context>
chip_gen: v5e
topology: v5e:2x2
jax: 0.10.0
libtpu: 0.0.40
codegen_flags: <defaults>
</compile_context>

<pallas_src>
import math

import jax
import jax.numpy as jnp
from jax.experimental import pallas as pl
from jax.experimental.pallas import tpu as pltpu

# ---------------------------------------------------------------- constants
D_MODEL = 32
HEADS = 4
D_K = D_MODEL // HEADS
D_FF = 2048            # FeedForward default d_ff
N_LAYERS = 2
VOCAB = 100
EPS = 1e-6
NEG_INF = -1e10        # matches masked_fill(mask == 0, -1e10)


# ---------------------------------------------------------------- kernel
def _norm(x, gamma, beta):
    """PyTorch `Norm`: unbiased std, a*(x-mean)/(std+eps)+b. Row-wise -> safe on folded (B*S, D)."""
    d = x.shape[-1]
    mean = jnp.mean(x, axis=-1, keepdims=True)
    var = jnp.sum((x - mean) ** 2, axis=-1, keepdims=True) * (1.0 / (d - 1))
    std = jnp.sqrt(var)
    return gamma * (x - mean) / (std + EPS) + beta


def encoder_kernel(x_ref, kb_ref, bid_ref,
                   wqkv_ref, bqkv_ref, wo_ref, bo_ref,
                   g1_ref, be1_ref, g2_ref, be2_ref,
                   w1_ref, b1_ref, w2_ref, b2_ref,
                   gf_ref, bf_ref,
                   out_ref, x_carry):
    """One encoder layer per grid step; x carried in VMEM scratch; final Norm on last step."""
    layer = pl.program_id(0)

    @pl.when(layer == 0)
    def _():
        x_carry[...] = x_ref[...]

    x = x_carry[...]                                     # (B*S, D) f32

    # Additive attention bias rebuilt from linear-size vectors (no (B*S)^2 HBM array):
    #   keep key j for query i  <=>  batch(i) == (batch(j) if key j valid else -1)
    keep = bid_ref[...] == kb_ref[...]                   # (BS,1) vs (1,BS) -> (BS,BS)
    bias = jnp.where(keep, 0.0, NEG_INF).astype(jnp.float32)

    # ----- sublayer 1: multi-head self-attention (dropout == identity) -----
    x2 = _norm(x, g1_ref[0], be1_ref[0])
    qkv = jnp.dot(x2.astype(jnp.bfloat16), wqkv_ref[0],
                  preferred_element_type=jnp.float32) + bqkv_ref[0]      # (BS, 3D) f32

    def split_heads(block):                              # -> (HEADS, BS, D_K)
        base = block * D_MODEL
        return jnp.stack(
            [qkv[:, base + h * D_K: base + (h + 1) * D_K] for h in range(HEADS)],
            axis=0)

    qh = split_heads(0)                                  # 1/sqrt(d_k) already folded into Wq/bq
    kh = split_heads(1)
    vh = split_heads(2)

    s = jnp.einsum('hqd,hkd->hqk', qh, kh,
                   preferred_element_type=jnp.float32)   # (H, BS, BS)
    s = s + bias[None, :, :]
    s_max = jnp.max(s, axis=-1, keepdims=True)
    e = jnp.exp(s - s_max)
    p = e / jnp.sum(e, axis=-1, keepdims=True)           # exact softmax (parity with reference)
    o = jnp.einsum('hqk,hkd->hqd', p, vh,
                   preferred_element_type=jnp.float32)   # (H, BS, D_K)
    concat = jnp.concatenate([o[h] for h in range(HEADS)], axis=-1)      # (BS, D)
    attn = jnp.dot(concat.astype(jnp.bfloat16), wo_ref[0],
                   preferred_element_type=jnp.float32) + bo_ref[0]
    x = x + attn

    # ----- sublayer 2: feed-forward (dropout == identity) -----
    x2 = _norm(x, g2_ref[0], be2_ref[0])
    h1 = jnp.dot(x2.astype(jnp.bfloat16), w1_ref[0],
                 preferred_element_type=jnp.float32) + b1_ref[0]
    # TODO(synk): on v6e/v7x the ReLU on the (BS, D_FF) tensor could run in bf16 to halve
    # VALU/vreg cost; kept in f32 for v5e portability (no bf16 VPU there).
    h1 = jnp.maximum(h1, 0.0).astype(jnp.bfloat16)       # single cast feeding the second matmul
    ffn = jnp.dot(h1, w2_ref[0], preferred_element_type=jnp.float32) + b2_ref[0]
    x = x + ffn

    x_carry[...] = x

    @pl.when(layer == pl.num_programs(0) - 1)
    def _():
        out_ref[...] = _norm(x, gf_ref[...], bf_ref[...])


# ---------------------------------------------------------------- wrapper
def run_encoder(x, mask, p):
    """x: (B, S, D) f32, mask: (B, 1, S) f32. Whole encoder stack in one pallas_call (grid over layers)."""
    B, S, D = x.shape
    BS = B * S
    x2d = x.reshape(BS, D).astype(jnp.float32)

    # Linear-size mask encoding (review item: no (B*S, B*S) bias in HBM).
    key_valid = mask[:, 0, :].reshape(BS) > 0.5
    batch_id = jnp.repeat(jnp.arange(B, dtype=jnp.float32), S)
    kb_row = jnp.where(key_valid, batch_id, -1.0).reshape(1, BS).astype(jnp.float32)
    bid_col = batch_id.reshape(BS, 1)

    args = [x2d, kb_row, bid_col,
            p["wqkv"], p["bqkv"], p["wo"], p["bo"],
            p["g1"], p["be1"], p["g2"], p["be2"],
            p["w1"], p["b1"], p["w2"], p["b2"],
            p["gf"], p["bf"]]

    def spec(a):
        if a.ndim == 3:   # layer-stacked weight: stream one layer's slab per grid step
            return pl.BlockSpec((1,) + a.shape[1:], lambda l: (l, 0, 0))
        return pl.BlockSpec(a.shape, lambda l: (0,) * a.ndim)

    out2d = pl.pallas_call(
        encoder_kernel,
        out_shape=jax.ShapeDtypeStruct((BS, D), jnp.float32),
        grid_spec=pltpu.PrefetchScalarGridSpec(
            num_scalar_prefetch=0,
            grid=(N_LAYERS,),
            in_specs=[spec(a) for a in args],
            out_specs=pl.BlockSpec((BS, D), lambda l: (0, 0)),
            scratch_shapes=[pltpu.VMEM((BS, D), jnp.float32)]),
        compiler_params=pltpu.CompilerParams(
            dimension_semantics=("arbitrary",)),
        # TODO(synk): v7x dual-TensorCore split (parallel row-split of B*S / D_FF) only pays off
        # if profiling shows this tiny kernel is not dispatch-latency bound; skipped here.
    )(*args)
    return out2d.reshape(B, S, D)


# ---------------------------------------------------------------- glue (JAX)
def positional_encoding(max_len, d_model):
    position = jnp.arange(max_len, dtype=jnp.float32)[:, None]
    div_term = jnp.exp(jnp.arange(0, d_model, 2, dtype=jnp.float32)
                       * (-math.log(10000.0) / d_model))
    pe = jnp.zeros((max_len, d_model), jnp.float32)
    pe = pe.at[:, 0::2].set(jnp.sin(position * div_term))
    pe = pe.at[:, 1::2].set(jnp.cos(position * div_term))
    return pe[None]                 # (1, max_len, d_model)


def init_params(key):
    """Deterministic synthetic parameters (shapes from the nn.Module __init__), stacked per layer."""
    keys = jax.random.split(key, 6 * N_LAYERS + 1)
    emb = jax.random.normal(keys[0], (VOCAB, D_MODEL), jnp.float32)
    kit = iter(keys[1:])

    def lin(k, fan_in, fan_out):
        kw, kb = jax.random.split(k)
        lim = 1.0 / math.sqrt(fan_in)
        w = jax.random.uniform(kw, (fan_in, fan_out), jnp.float32, -lim, lim)
        b = jax.random.uniform(kb, (1, fan_out), jnp.float32, -lim, lim)
        return w, b

    acc = {k: [] for k in
           ["wqkv", "bqkv", "wo", "bo", "g1", "be1", "g2", "be2",
            "w1", "b1", "w2", "b2"]}
    scale = 1.0 / math.sqrt(D_K)
    for _ in range(N_LAYERS):
        wq, bq = lin(next(kit), D_MODEL, D_MODEL)
        wk, bk = lin(next(kit), D_MODEL, D_MODEL)
        wv, bv = lin(next(kit), D_MODEL, D_MODEL)
        wo, bo = lin(next(kit), D_MODEL, D_MODEL)
        w1, b1 = lin(next(kit), D_MODEL, D_FF)
        w2, b2 = lin(next(kit), D_FF, D_MODEL)
        # Fused QKV projection, with the 1/sqrt(d_k) attention scale folded into Wq / bq.
        acc["wqkv"].append(jnp.concatenate([wq * scale, wk, wv], axis=1))   # (D, 3D)
        acc["bqkv"].append(jnp.concatenate([bq * scale, bk, bv], axis=1))   # (1, 3D)
        acc["wo"].append(wo); acc["bo"].append(bo)
        acc["g1"].append(jnp.ones((1, D_MODEL), jnp.float32))
        acc["be1"].append(jnp.zeros((1, D_MODEL), jnp.float32))
        acc["g2"].append(jnp.ones((1, D_MODEL), jnp.float32))
        acc["be2"].append(jnp.zeros((1, D_MODEL), jnp.float32))
        acc["w1"].append(w1); acc["b1"].append(b1)
        acc["w2"].append(w2); acc["b2"].append(b2)

    params = {k: jnp.stack(v, axis=0) for k, v in acc.items()}
    # bf16 matmul weights (halves weight DMA bytes, doubles MXU rate); f32 accumulation in-kernel.
    # Biases and all element-wise / norm / softmax math stay f32.
    for name in ("wqkv", "wo", "w1", "w2"):
        params[name] = params[name].astype(jnp.bfloat16)
    params["gf"] = jnp.ones((1, D_MODEL), jnp.float32)
    params["bf"] = jnp.zeros((1, D_MODEL), jnp.float32)
    return emb, params


def encoder_forward(src, mask, emb, params):
    S = src.shape[1]
    x = jnp.take(emb, src, axis=0) * math.sqrt(D_MODEL)       # Embedding_Layer
    x = x + positional_encoding(200, D_MODEL)[:, :S]           # Position_Layer (eval)
    return run_encoder(x, mask, params)                        # fused Pallas encoder stack


# ---------------------------------------------------------------- main
if __name__ == "__main__":
    key = jax.random.PRNGKey(0)
    k_param, k_src = jax.random.split(key)

    B, S = 2, 8
    emb, params = init_params(k_param)

    src = jax.random.randint(k_src, (B, S), 0, VOCAB, dtype=jnp.int32)
    # mask: batch 0 attends to all 8 positions, batch 1 only to the first 6
    lengths = jnp.array([8, 6], jnp.int32)
    mask = (jnp.arange(S)[None, :] < lengths[:, None]).astype(jnp.float32)[:, None, :]

    out = encoder_forward(src, mask, emb, params)
    jax.block_until_ready(out)
    assert out.shape == (B, S, D_MODEL)
    assert bool(jnp.all(jnp.isfinite(out)))
    print("KERNEL_OK")
</pallas_src>

<mosaic_0001>
module attributes {stable_mosaic.version = 11 : i64} {
  func.func @encoder_kernel(%arg0: i32, %arg1: memref<16x32xf32, #tpu.memory_space<vmem>>, %arg2: memref<1x16xf32, #tpu.memory_space<vmem>>, %arg3: memref<16x1xf32, #tpu.memory_space<vmem>>, %arg4: memref<1x32x96xbf16, #tpu.memory_space<vmem>>, %arg5: memref<1x1x96xf32, #tpu.memory_space<vmem>>, %arg6: memref<1x32x32xbf16, #tpu.memory_space<vmem>>, %arg7: memref<1x1x32xf32, #tpu.memory_space<vmem>>, %arg8: memref<1x1x32xf32, #tpu.memory_space<vmem>>, %arg9: memref<1x1x32xf32, #tpu.memory_space<vmem>>, %arg10: memref<1x1x32xf32, #tpu.memory_space<vmem>>, %arg11: memref<1x1x32xf32, #tpu.memory_space<vmem>>, %arg12: memref<1x32x2048xbf16, #tpu.memory_space<vmem>>, %arg13: memref<1x1x2048xf32, #tpu.memory_space<vmem>>, %arg14: memref<1x2048x32xbf16, #tpu.memory_space<vmem>>, %arg15: memref<1x1x32xf32, #tpu.memory_space<vmem>>, %arg16: memref<1x32xf32, #tpu.memory_space<vmem>>, %arg17: memref<1x32xf32, #tpu.memory_space<vmem>>, %arg18: memref<16x32xf32, #tpu.memory_space<vmem>>, %arg19: memref<16x32xf32, #tpu.memory_space<vmem>>) attributes {dimension_semantics = [#tpu.dimension_semantics<arbitrary>], iteration_bounds = array<i64: 2>, scalar_prefetch = 0 : i64, scratch_operands = 1 : i64, tpu.core_type = #tpu.core_type<tc>, window_params = [{pipeline_mode = #tpu.pipeline_mode<synchronous>, transform_indices = @transform_0, window_bounds = array<i64: 16, 32>}, {pipeline_mode = #tpu.pipeline_mode<synchronous>, transform_indices = @transform_1, window_bounds = array<i64: 1, 16>}, {pipeline_mode = #tpu.pipeline_mode<synchronous>, transform_indices = @transform_2, window_bounds = array<i64: 16, 1>}, {transform_indices = @transform_3, window_bounds = array<i64: 1, 32, 96>}, {transform_indices = @transform_4, window_bounds = array<i64: 1, 1, 96>}, {transform_indices = @transform_5, window_bounds = array<i64: 1, 32, 32>}, {transform_indices = @transform_6, window_bounds = array<i64: 1, 1, 32>}, {transform_indices = @transform_7, window_bounds = array<i64: 1, 1, 32>}, {transform_indices = @transform_8, window_bounds = array<i64: 1, 1, 32>}, {transform_indices = @transform_9, window_bounds = array<i64: 1, 1, 32>}, {transform_indices = @transform_10, window_bounds = array<i64: 1, 1, 32>}, {transform_indices = @transform_11, window_bounds = array<i64: 1, 32, 2048>}, {transform_indices = @transform_12, window_bounds = array<i64: 1, 1, 2048>}, {transform_indices = @transform_13, window_bounds = array<i64: 1, 2048, 32>}, {transform_indices = @transform_14, window_bounds = array<i64: 1, 1, 32>}, {pipeline_mode = #tpu.pipeline_mode<synchronous>, transform_indices = @transform_15, window_bounds = array<i64: 1, 32>}, {pipeline_mode = #tpu.pipeline_mode<synchronous>, transform_indices = @transform_16, window_bounds = array<i64: 1, 32>}, {pipeline_mode = #tpu.pipeline_mode<synchronous>, transform_indices = @transform_17, window_bounds = array<i64: 16, 32>}]} {
    %c0_i32 = arith.constant 0 : i32
    %0 = arith.cmpi eq, %arg0, %c0_i32 : i32
    %1 = arith.extui %0 : i1 to i32
    %c0_i32_0 = arith.constant 0 : i32
    %2 = arith.cmpi ne, %1, %c0_i32_0 : i32
    scf.if %2 {
      %c0_65 = arith.constant 0 : index
      %c0_66 = arith.constant 0 : index
      %154 = vector.load %arg1[%c0_65, %c0_66] : memref<16x32xf32, #tpu.memory_space<vmem>>, vector<16x32xf32>
      %c0_67 = arith.constant 0 : index
      %c0_68 = arith.constant 0 : index
      %155 = vector.load %arg19[%c0_67, %c0_68] : memref<16x32xf32, #tpu.memory_space<vmem>>, vector<16x32xf32>
      tpu.vector_store %arg19[%c0_67, %c0_68], %154 {strides = array<i32>} : memref<16x32xf32, #tpu.memory_space<vmem>>, vector<16x32xf32>,
    } else {
    }
    %c0 = arith.constant 0 : index
    %c0_1 = arith.constant 0 : index
    %3 = vector.load %arg19[%c0, %c0_1] : memref<16x32xf32, #tpu.memory_space<vmem>>, vector<16x32xf32>
    %c0_2 = arith.constant 0 : index
    %c0_3 = arith.constant 0 : index
    %4 = vector.load %arg3[%c0_2, %c0_3] : memref<16x1xf32, #tpu.memory_space<vmem>>, vector<16x1xf32>
    %c0_4 = arith.constant 0 : index
    %c0_5 = arith.constant 0 : index
    %5 = vector.load %arg2[%c0_4, %c0_5] : memref<1x16xf32, #tpu.memory_space<vmem>>, vector<1x16xf32>
    %6 = vector.broadcast %4 : vector<16x1xf32> to vector<16x16xf32>
    %7 = vector.broadcast %5 : vector<1x16xf32> to vector<16x16xf32>
    %8 = arith.cmpf oeq, %6, %7 : vector<16x16xf32>
    %cst = arith.constant 0.000000e+00 : f32
    %cst_6 = arith.constant -1.000000e+10 : f32
    %9 = vector.broadcast %cst : f32 to vector<16x16xf32>
    %10 = vector.broadcast %cst_6 : f32 to vector<16x16xf32>
    %11 = arith.select %8, %9, %10 : vector<16x16xi1>, vector<16x16xf32>
    %c0_7 = arith.constant 0 : index
    %c0_8 = arith.constant 0 : index
    %c0_9 = arith.constant 0 : index
    %12 = vector.load %arg8[%c0_7, %c0_8, %c0_9] : memref<1x1x32xf32, #tpu.memory_space<vmem>>, vector<1x1x32xf32>
    %13 = vector.shape_cast %12 : vector<1x1x32xf32> to vector<1x32xf32>
    %c0_10 = arith.constant 0 : index
    %c0_11 = arith.constant 0 : index
    %c0_12 = arith.constant 0 : index
    %14 = vector.load %arg9[%c0_10, %c0_11, %c0_12] : memref<1x1x32xf32, #tpu.memory_space<vmem>>, vector<1x1x32xf32>
    %15 = vector.shape_cast %14 : vector<1x1x32xf32> to vector<1x32xf32>
    %cst_13 = arith.constant dense<0.000000e+00> : vector<16xf32>
    %16 = vector.multi_reduction <add>, %3, %cst_13 [1] : vector<16x32xf32> to vector<16xf32>
    %17 = vector.shape_cast %16 : vector<16xf32> to vector<16x1xf32>
    %cst_14 = arith.constant 3.200000e+01 : f32
    %18 = vector.broadcast %cst_14 : f32 to vector<16x1xf32>
    %19 = arith.divf %17, %18 : vector<16x1xf32>
    %20 = vector.broadcast %19 : vector<16x1xf32> to vector<16x32xf32>
    %21 = arith.subf %3, %20 : vector<16x32xf32>
    %22 = arith.mulf %21, %21 : vector<16x32xf32>
    %cst_15 = arith.constant dense<0.000000e+00> : vector<16xf32>
    %23 = vector.multi_reduction <add>, %22, %cst_15 [1] : vector<16x32xf32> to vector<16xf32>
    %24 = vector.shape_cast %23 : vector<16xf32> to vector<16x1xf32>
    %cst_16 = arith.constant 0.0322580636 : f32
    %25 = vector.broadcast %cst_16 : f32 to vector<16x1xf32>
    %26 = arith.mulf %24, %25 : vector<16x1xf32>
    %27 = math.sqrt %26 : vector<16x1xf32>
    %28 = vector.broadcast %19 : vector<16x1xf32> to vector<16x32xf32>
    %29 = arith.subf %3, %28 : vector<16x32xf32>
    %30 = vector.broadcast %13 : vector<1x32xf32> to vector<16x32xf32>
    %31 = arith.mulf %30, %29 : vector<16x32xf32>
    %cst_17 = arith.constant 9.99999997E-7 : f32
    %32 = vector.broadcast %cst_17 : f32 to vector<16x1xf32>
    %33 = arith.addf %27, %32 : vector<16x1xf32>
    %34 = vector.broadcast %33 : vector<16x1xf32> to vector<16x32xf32>
    %35 = arith.divf %31, %34 : vector<16x32xf32>
    %36 = vector.broadcast %15 : vector<1x32xf32> to vector<16x32xf32>
    %37 = arith.addf %35, %36 : vector<16x32xf32>
    %38 = arith.truncf %37 : vector<16x32xf32> to vector<16x32xbf16>
    %c0_18 = arith.constant 0 : index
    %c0_19 = arith.constant 0 : index
    %c0_20 = arith.constant 0 : index
    %39 = vector.load %arg4[%c0_18, %c0_19, %c0_20] : memref<1x32x96xbf16, #tpu.memory_space<vmem>>, vector<1x32x96xbf16>
    %40 = vector.shape_cast %39 : vector<1x32x96xbf16> to vector<32x96xbf16>
    %cst_21 = arith.constant dense<0.000000e+00> : vector<16x96xf32>
    %41 = tpu.matmul %38, %40, %cst_21 {dimension_numbers = #tpu.dot_dimension_numbers<[1], [0], [0], [1], [0, 0, 1, 1], [], []>} : vector<16x32xbf16>, vector<32x96xbf16>, vector<16x96xf32> -> vector<16x96xf32>
    %c0_22 = arith.constant 0 : index
    %c0_23 = arith.constant 0 : index
    %c0_24 = arith.constant 0 : index
    %42 = vector.load %arg5[%c0_22, %c0_23, %c0_24] : memref<1x1x96xf32, #tpu.memory_space<vmem>>, vector<1x1x96xf32>
    %43 = vector.shape_cast %42 : vector<1x1x96xf32> to vector<1x96xf32>
    %44 = vector.broadcast %43 : vector<1x96xf32> to vector<16x96xf32>
    %45 = arith.addf %41, %44 : vector<16x96xf32>
    %46 = vector.extract_strided_slice %45 {offsets = [0, 0], sizes = [16, 8], strides = [1, 1]} : vector<16x96xf32> to vector<16x8xf32>
    %47 = vector.extract_strided_slice %45 {offsets = [0, 8], sizes = [16, 8], strides = [1, 1]} : vector<16x96xf32> to vector<16x8xf32>
    %48 = vector.extract_strided_slice %45 {offsets = [0, 16], sizes = [16, 8], strides = [1, 1]} : vector<16x96xf32> to vector<16x8xf32>
    %49 = vector.extract_strided_slice %45 {offsets = [0, 24], sizes = [16, 8], strides = [1, 1]} : vector<16x96xf32> to vector<16x8xf32>
    %50 = vector.shape_cast %46 : vector<16x8xf32> to vector<1x16x8xf32>
    %51 = vector.shape_cast %47 : vector<16x8xf32> to vector<1x16x8xf32>
    %52 = vector.shape_cast %48 : vector<16x8xf32> to vector<1x16x8xf32>
    %53 = vector.shape_cast %49 : vector<16x8xf32> to vector<1x16x8xf32>
    %54 = tpu.concatenate %50, %51, %52, %53 in 0 : vector<1x16x8xf32>, vector<1x16x8xf32>, vector<1x16x8xf32>, vector<1x16x8xf32> -> vector<4x16x8xf32>
    %55 = vector.extract_strided_slice %45 {offsets = [0, 32], sizes = [16, 8], strides = [1, 1]} : vector<16x96xf32> to vector<16x8xf32>
    %56 = vector.extract_strided_slice %45 {offsets = [0, 40], sizes = [16, 8], strides = [1, 1]} : vector<16x96xf32> to vector<16x8xf32>
    %57 = vector.extract_strided_slice %45 {offsets = [0, 48], sizes = [16, 8], strides = [1, 1]} : vector<16x96xf32> to vector<16x8xf32>
    %58 = vector.extract_strided_slice %45 {offsets = [0, 56], sizes = [16, 8], strides = [1, 1]} : vector<16x96xf32> to vector<16x8xf32>
    %59 = vector.shape_cast %55 : vector<16x8xf32> to vector<1x16x8xf32>
    %60 = vector.shape_cast %56 : vector<16x8xf32> to vector<1x16x8xf32>
    %61 = vector.shape_cast %57 : vector<16x8xf32> to vector<1x16x8xf32>
    %62 = vector.shape_cast %58 : vector<16x8xf32> to vector<1x16x8xf32>
    %63 = tpu.concatenate %59, %60, %61, %62 in 0 : vector<1x16x8xf32>, vector<1x16x8xf32>, vector<1x16x8xf32>, vector<1x16x8xf32> -> vector<4x16x8xf32>
    %64 = vector.extract_strided_slice %45 {offsets = [0, 64], sizes = [16, 8], strides = [1, 1]} : vector<16x96xf32> to vector<16x8xf32>
    %65 = vector.extract_strided_slice %45 {offsets = [0, 72], sizes = [16, 8], strides = [1, 1]} : vector<16x96xf32> to vector<16x8xf32>
    %66 = vector.extract_strided_slice %45 {offsets = [0, 80], sizes = [16, 8], strides = [1, 1]} : vector<16x96xf32> to vector<16x8xf32>
    %67 = vector.extract_strided_slice %45 {offsets = [0, 88], sizes = [16, 8], strides = [1, 1]} : vector<16x96xf32> to vector<16x8xf32>
    %68 = vector.shape_cast %64 : vector<16x8xf32> to vector<1x16x8xf32>
    %69 = vector.shape_cast %65 : vector<16x8xf32> to vector<1x16x8xf32>
    %70 = vector.shape_cast %66 : vector<16x8xf32> to vector<1x16x8xf32>
    %71 = vector.shape_cast %67 : vector<16x8xf32> to vector<1x16x8xf32>
    %72 = tpu.concatenate %68, %69, %70, %71 in 0 : vector<1x16x8xf32>, vector<1x16x8xf32>, vector<1x16x8xf32>, vector<1x16x8xf32> -> vector<4x16x8xf32>
    "tpu.trace_start"() <{level = 10 : i32, message = "hqd,hkd->hqk"}> : () -> ()
    %cst_25 = arith.constant dense<0.000000e+00> : vector<4x16x16xf32>
    %73 = tpu.matmul %54, %63, %cst_25 {dimension_numbers = #tpu.dot_dimension_numbers<[2], [2], [1], [1], [0, 0, 0, 1, 1, 1], [0], [0]>} : vector<4x16x8xf32>, vector<4x16x8xf32>, vector<4x16x16xf32> -> vector<4x16x16xf32>
    "tpu.trace_stop"() : () -> ()
    %74 = vector.shape_cast %11 : vector<16x16xf32> to vector<1x16x16xf32>
    %75 = vector.broadcast %74 : vector<1x16x16xf32> to vector<4x16x16xf32>
    %76 = arith.addf %73, %75 : vector<4x16x16xf32>
    %cst_26 = arith.constant dense<0xFF800000> : vector<4x16xf32>
    %77 = vector.multi_reduction <maximumf>, %76, %cst_26 [2] : vector<4x16x16xf32> to vector<4x16xf32>
    %78 = vector.shape_cast %77 : vector<4x16xf32> to vector<4x16x1xf32>
    %79 = vector.broadcast %78 : vector<4x16x1xf32> to vector<4x16x16xf32>
    %80 = arith.subf %76, %79 : vector<4x16x16xf32>
    %81 = math.exp %80 : vector<4x16x16xf32>
    %cst_27 = arith.constant dense<0.000000e+00> : vector<4x16xf32>
    %82 = vector.multi_reduction <add>, %81, %cst_27 [2] : vector<4x16x16xf32> to vector<4x16xf32>
    %83 = vector.shape_cast %82 : vector<4x16xf32> to vector<4x16x1xf32>
    %84 = vector.broadcast %83 : vector<4x16x1xf32> to vector<4x16x16xf32>
    %85 = arith.divf %81, %84 : vector<4x16x16xf32>
    "tpu.trace_start"() <{level = 10 : i32, message = "hqk,hkd->hqd"}> : () -> ()
    %cst_28 = arith.constant dense<0.000000e+00> : vector<4x16x8xf32>
    %86 = tpu.matmul %85, %72, %cst_28 {dimension_numbers = #tpu.dot_dimension_numbers<[2], [1], [1], [2], [0, 0, 0, 1, 1, 2], [0], [0]>} : vector<4x16x16xf32>, vector<4x16x8xf32>, vector<4x16x8xf32> -> vector<4x16x8xf32>
    "tpu.trace_stop"() : () -> ()
    %87 = vector.extract_strided_slice %86 {offsets = [0, 0, 0], sizes = [1, 16, 8], strides = [1, 1, 1]} : vector<4x16x8xf32> to vector<1x16x8xf32>
    %88 = vector.shape_cast %87 : vector<1x16x8xf32> to vector<16x8xf32>
    %89 = vector.extract_strided_slice %86 {offsets = [1, 0, 0], sizes = [1, 16, 8], strides = [1, 1, 1]} : vector<4x16x8xf32> to vector<1x16x8xf32>
    %90 = vector.shape_cast %89 : vector<1x16x8xf32> to vector<16x8xf32>
    %91 = vector.extract_strided_slice %86 {offsets = [2, 0, 0], sizes = [1, 16, 8], strides = [1, 1, 1]} : vector<4x16x8xf32> to vector<1x16x8xf32>
    %92 = vector.shape_cast %91 : vector<1x16x8xf32> to vector<16x8xf32>
    %93 = vector.extract_strided_slice %86 {offsets = [3, 0, 0], sizes = [1, 16, 8], strides = [1, 1, 1]} : vector<4x16x8xf32> to vector<1x16x8xf32>
    %94 = vector.shape_cast %93 : vector<1x16x8xf32> to vector<16x8xf32>
    %95 = tpu.concatenate %88, %90, %92, %94 in 1 : vector<16x8xf32>, vector<16x8xf32>, vector<16x8xf32>, vector<16x8xf32> -> vector<16x32xf32>
    %96 = arith.truncf %95 : vector<16x32xf32> to vector<16x32xbf16>
    %c0_29 = arith.constant 0 : index
    %c0_30 = arith.constant 0 : index
    %c0_31 = arith.constant 0 : index
    %97 = vector.load %arg6[%c0_29, %c0_30, %c0_31] : memref<1x32x32xbf16, #tpu.memory_space<vmem>>, vector<1x32x32xbf16>
    %98 = vector.shape_cast %97 : vector<1x32x32xbf16> to vector<32x32xbf16>
    %cst_32 = arith.constant dense<0.000000e+00> : vector<16x32xf32>
    %99 = tpu.matmul %96, %98, %cst_32 {dimension_numbers = #tpu.dot_dimension_numbers<[1], [0], [0], [1], [0, 0, 1, 1], [], []>} : vector<16x32xbf16>, vector<32x32xbf16>, vector<16x32xf32> -> vector<16x32xf32>
    %c0_33 = arith.constant 0 : index
    %c0_34 = arith.constant 0 : index
    %c0_35 = arith.constant 0 : index
    %100 = vector.load %arg7[%c0_33, %c0_34, %c0_35] : memref<1x1x32xf32, #tpu.memory_space<vmem>>, vector<1x1x32xf32>
    %101 = vector.shape_cast %100 : vector<1x1x32xf32> to vector<1x32xf32>
    %102 = vector.broadcast %101 : vector<1x32xf32> to vector<16x32xf32>
    %103 = arith.addf %99, %102 : vector<16x32xf32>
    %104 = arith.addf %3, %103 : vector<16x32xf32>
    %c0_36 = arith.constant 0 : index
    %c0_37 = arith.constant 0 : index
    %c0_38 = arith.constant 0 : index
    %105 = vector.load %arg10[%c0_36, %c0_37, %c0_38] : memref<1x1x32xf32, #tpu.memory_space<vmem>>, vector<1x1x32xf32>
    %106 = vector.shape_cast %105 : vector<1x1x32xf32> to vector<1x32xf32>
    %c0_39 = arith.constant 0 : index
    %c0_40 = arith.constant 0 : index
    %c0_41 = arith.constant 0 : index
    %107 = vector.load %arg11[%c0_39, %c0_40, %c0_41] : memref<1x1x32xf32, #tpu.memory_space<vmem>>, vector<1x1x32xf32>
    %108 = vector.shape_cast %107 : vector<1x1x32xf32> to vector<1x32xf32>
    %cst_42 = arith.constant dense<0.000000e+00> : vector<16xf32>
    %109 = vector.multi_reduction <add>, %104, %cst_42 [1] : vector<16x32xf32> to vector<16xf32>
    %110 = vector.shape_cast %109 : vector<16xf32> to vector<16x1xf32>
    %cst_43 = arith.constant 3.200000e+01 : f32
    %111 = vector.broadcast %cst_43 : f32 to vector<16x1xf32>
    %112 = arith.divf %110, %111 : vector<16x1xf32>
    %113 = vector.broadcast %112 : vector<16x1xf32> to vector<16x32xf32>
    %114 = arith.subf %104, %113 : vector<16x32xf32>
    %115 = arith.mulf %114, %114 : vector<16x32xf32>
    %cst_44 = arith.constant dense<0.000000e+00> : vector<16xf32>
    %116 = vector.multi_reduction <add>, %115, %cst_44 [1] : vector<16x32xf32> to vector<16xf32>
    %117 = vector.shape_cast %116 : vector<16xf32> to vector<16x1xf32>
    %cst_45 = arith.constant 0.0322580636 : f32
    %118 = vector.broadcast %cst_45 : f32 to vector<16x1xf32>
    %119 = arith.mulf %117, %118 : vector<16x1xf32>
    %120 = math.sqrt %119 : vector<16x1xf32>
    %121 = vector.broadcast %112 : vector<16x1xf32> to vector<16x32xf32>
    %122 = arith.subf %104, %121 : vector<16x32xf32>
    %123 = vector.broadcast %106 : vector<1x32xf32> to vector<16x32xf32>
    %124 = arith.mulf %123, %122 : vector<16x32xf32>
    %cst_46 = arith.constant 9.99999997E-7 : f32
    %125 = vector.broadcast %cst_46 : f32 to vector<16x1xf32>
    %126 = arith.addf %120, %125 : vector<16x1xf32>
    %127 = vector.broadcast %126 : vector<16x1xf32> to vector<16x32xf32>
    %128 = arith.divf %124, %127 : vector<16x32xf32>
    %129 = vector.broadcast %108 : vector<1x32xf32> to vector<16x32xf32>
    %130 = arith.addf %128, %129 : vector<16x32xf32>
    %131 = arith.truncf %130 : vector<16x32xf32> to vector<16x32xbf16>
    %c0_47 = arith.constant 0 : index
    %c0_48 = arith.constant 0 : index
    %c0_49 = arith.constant 0 : index
    %132 = vector.load %arg12[%c0_47, %c0_48, %c0_49] : memref<1x32x2048xbf16, #tpu.memory_space<vmem>>, vector<1x32x2048xbf16>
    %133 = vector.shape_cast %132 : vector<1x32x2048xbf16> to vector<32x2048xbf16>
    %cst_50 = arith.constant dense<0.000000e+00> : vector<16x2048xf32>
    %134 = tpu.matmul %131, %133, %cst_50 {dimension_numbers = #tpu.dot_dimension_numbers<[1], [0], [0], [1], [0, 0, 1, 1], [], []>} : vector<16x32xbf16>, vector<32x2048xbf16>, vector<16x2048xf32> -> vector<16x2048xf32>
    %c0_51 = arith.constant 0 : index
    %c0_52 = arith.constant 0 : index
    %c0_53 = arith.constant 0 : index
    %135 = vector.load %arg13[%c0_51, %c0_52, %c0_53] : memref<1x1x2048xf32, #tpu.memory_space<vmem>>, vector<1x1x2048xf32>
    %136 = vector.shape_cast %135 : vector<1x1x2048xf32> to vector<1x2048xf32>
    %137 = vector.broadcast %136 : vector<1x2048xf32> to vector<16x2048xf32>
    %138 = arith.addf %134, %137 : vector<16x2048xf32>
    %cst_54 = arith.constant 0.000000e+00 : f32
    %139 = vector.broadcast %cst_54 : f32 to vector<16x2048xf32>
    %140 = arith.maximumf %138, %139 : vector<16x2048xf32>
    %141 = arith.truncf %140 : vector<16x2048xf32> to vector<16x2048xbf16>
    %c0_55 = arith.constant 0 : index
    %c0_56 = arith.constant 0 : index
    %c0_57 = arith.constant 0 : index
    %142 = vector.load %arg14[%c0_55, %c0_56, %c0_57] : memref<1x2048x32xbf16, #tpu.memory_space<vmem>>, vector<1x2048x32xbf16>
    %143 = vector.shape_cast %142 : vector<1x2048x32xbf16> to vector<2048x32xbf16>
    %cst_58 = arith.constant dense<0.000000e+00> : vector<16x32xf32>
    %144 = tpu.matmul %141, %143, %cst_58 {dimension_numbers = #tpu.dot_dimension_numbers<[1], [0], [0], [1], [0, 0, 1, 1], [], []>} : vector<16x2048xbf16>, vector<2048x32xbf16>, vector<16x32xf32> -> vector<16x32xf32>
    %c0_59 = arith.constant 0 : index
    %c0_60 = arith.constant 0 : index
    %c0_61 = arith.constant 0 : index
    %145 = vector.load %arg15[%c0_59, %c0_60, %c0_61] : memref<1x1x32xf32, #tpu.memory_space<vmem>>, vector<1x1x32xf32>
    %146 = vector.shape_cast %145 : vector<1x1x32xf32> to vector<1x32xf32>
    %147 = vector.broadcast %146 : vector<1x32xf32> to vector<16x32xf32>
    %148 = arith.addf %144, %147 : vector<16x32xf32>
    %149 = arith.addf %104, %148 : vector<16x32xf32>
    %c0_62 = arith.constant 0 : index
    %c0_63 = arith.constant 0 : index
    %150 = vector.load %arg19[%c0_62, %c0_63] : memref<16x32xf32, #tpu.memory_space<vmem>>, vector<16x32xf32>
    tpu.vector_store %arg19[%c0_62, %c0_63], %149 {strides = array<i32>} : memref<16x32xf32, #tpu.memory_space<vmem>>, vector<16x32xf32>,
    %c1_i32 = arith.constant 1 : i32
    %151 = arith.cmpi eq, %arg0, %c1_i32 : i32
    %152 = arith.extui %151 : i1 to i32
    %c0_i32_64 = arith.constant 0 : i32
    %153 = arith.cmpi ne, %152, %c0_i32_64 : i32
    scf.if %153 {
      %c0_65 = arith.constant 0 : index
      %c0_66 = arith.constant 0 : index
      %154 = vector.load %arg16[%c0_65, %c0_66] : memref<1x32xf32, #tpu.memory_space<vmem>>, vector<1x32xf32>
      %c0_67 = arith.constant 0 : index
      %c0_68 = arith.constant 0 : index
      %155 = vector.load %arg17[%c0_67, %c0_68] : memref<1x32xf32, #tpu.memory_space<vmem>>, vector<1x32xf32>
      %cst_69 = arith.constant dense<0.000000e+00> : vector<16xf32>
      %156 = vector.multi_reduction <add>, %149, %cst_69 [1] : vector<16x32xf32> to vector<16xf32>
      %157 = vector.shape_cast %156 : vector<16xf32> to vector<16x1xf32>
      %cst_70 = arith.constant 3.200000e+01 : f32
      %158 = vector.broadcast %cst_70 : f32 to vector<16x1xf32>
      %159 = arith.divf %157, %158 : vector<16x1xf32>
      %160 = vector.broadcast %159 : vector<16x1xf32> to vector<16x32xf32>
      %161 = arith.subf %149, %160 : vector<16x32xf32>
      %162 = arith.mulf %161, %161 : vector<16x32xf32>
      %cst_71 = arith.constant dense<0.000000e+00> : vector<16xf32>
      %163 = vector.multi_reduction <add>, %162, %cst_71 [1] : vector<16x32xf32> to vector<16xf32>
      %164 = vector.shape_cast %163 : vector<16xf32> to vector<16x1xf32>
      %cst_72 = arith.constant 0.0322580636 : f32
      %165 = vector.broadcast %cst_72 : f32 to vector<16x1xf32>
      %166 = arith.mulf %164, %165 : vector<16x1xf32>
      %167 = math.sqrt %166 : vector<16x1xf32>
      %168 = vector.broadcast %159 : vector<16x1xf32> to vector<16x32xf32>
      %169 = arith.subf %149, %168 : vector<16x32xf32>
      %170 = vector.broadcast %154 : vector<1x32xf32> to vector<16x32xf32>
      %171 = arith.mulf %170, %169 : vector<16x32xf32>
      %cst_73 = arith.constant 9.99999997E-7 : f32
      %172 = vector.broadcast %cst_73 : f32 to vector<16x1xf32>
      %173 = arith.addf %167, %172 : vector<16x1xf32>
      %174 = vector.broadcast %173 : vector<16x1xf32> to vector<16x32xf32>
      %175 = arith.divf %171, %174 : vector<16x32xf32>
      %176 = vector.broadcast %155 : vector<1x32xf32> to vector<16x32xf32>
      %177 = arith.addf %175, %176 : vector<16x32xf32>
      %c0_74 = arith.constant 0 : index
      %c0_75 = arith.constant 0 : index
      %178 = vector.load %arg18[%c0_74, %c0_75] : memref<16x32xf32, #tpu.memory_space<vmem>>, vector<16x32xf32>
      tpu.vector_store %arg18[%c0_74, %c0_75], %177 {strides = array<i32>} : memref<16x32xf32, #tpu.memory_space<vmem>>, vector<16x32xf32>,
    } else {
    }
    return
  }
  func.func @transform_0(%arg0: i32) -> (i32, i32) {
    %c0_i32 = arith.constant 0 : i32
    %c0_i32_0 = arith.constant 0 : i32
    %c0_i32_1 = arith.constant 0 : i32
    return %c0_i32, %c0_i32_0 : i32, i32
  }
  func.func @transform_1(%arg0: i32) -> (i32, i32) {
    %c0_i32 = arith.constant 0 : i32
    %c0_i32_0 = arith.constant 0 : i32
    %c0_i32_1 = arith.constant 0 : i32
    return %c0_i32, %c0_i32_0 : i32, i32
  }
  func.func @transform_2(%arg0: i32) -> (i32, i32) {
    %c0_i32 = arith.constant 0 : i32
    %c0_i32_0 = arith.constant 0 : i32
    %c0_i32_1 = arith.constant 0 : i32
    return %c0_i32, %c0_i32_0 : i32, i32
  }
  func.func @transform_3(%arg0: i32) -> (i32, i32, i32) {
    %c0_i32 = arith.constant 0 : i32
    %c0_i32_0 = arith.constant 0 : i32
    %c0_i32_1 = arith.constant 0 : i32
    return %arg0, %c0_i32, %c0_i32_0 : i32, i32, i32
  }
  func.func @transform_4(%arg0: i32) -> (i32, i32, i32) {
    %c0_i32 = arith.constant 0 : i32
    %c0_i32_0 = arith.constant 0 : i32
    %c0_i32_1 = arith.constant 0 : i32
    return %arg0, %c0_i32, %c0_i32_0 : i32, i32, i32
  }
  func.func @transform_5(%arg0: i32) -> (i32, i32, i32) {
    %c0_i32 = arith.constant 0 : i32
    %c0_i32_0 = arith.constant 0 : i32
    %c0_i32_1 = arith.constant 0 : i32
    return %arg0, %c0_i32, %c0_i32_0 : i32, i32, i32
  }
  func.func @transform_6(%arg0: i32) -> (i32, i32, i32) {
    %c0_i32 = arith.constant 0 : i32
    %c0_i32_0 = arith.constant 0 : i32
    %c0_i32_1 = arith.constant 0 : i32
    return %arg0, %c0_i32, %c0_i32_0 : i32, i32, i32
  }
  func.func @transform_7(%arg0: i32) -> (i32, i32, i32) {
    %c0_i32 = arith.constant 0 : i32
    %c0_i32_0 = arith.constant 0 : i32
    %c0_i32_1 = arith.constant 0 : i32
    return %arg0, %c0_i32, %c0_i32_0 : i32, i32, i32
  }
  func.func @transform_8(%arg0: i32) -> (i32, i32, i32) {
    %c0_i32 = arith.constant 0 : i32
    %c0_i32_0 = arith.constant 0 : i32
    %c0_i32_1 = arith.constant 0 : i32
    return %arg0, %c0_i32, %c0_i32_0 : i32, i32, i32
  }
  func.func @transform_9(%arg0: i32) -> (i32, i32, i32) {
    %c0_i32 = arith.constant 0 : i32
    %c0_i32_0 = arith.constant 0 : i32
    %c0_i32_1 = arith.constant 0 : i32
    return %arg0, %c0_i32, %c0_i32_0 : i32, i32, i32
  }
  func.func @transform_10(%arg0: i32) -> (i32, i32, i32) {
    %c0_i32 = arith.constant 0 : i32
    %c0_i32_0 = arith.constant 0 : i32
    %c0_i32_1 = arith.constant 0 : i32
    return %arg0, %c0_i32, %c0_i32_0 : i32, i32, i32
  }
  func.func @transform_11(%arg0: i32) -> (i32, i32, i32) {
    %c0_i32 = arith.constant 0 : i32
    %c0_i32_0 = arith.constant 0 : i32
    %c0_i32_1 = arith.constant 0 : i32
    return %arg0, %c0_i32, %c0_i32_0 : i32, i32, i32
  }
  func.func @transform_12(%arg0: i32) -> (i32, i32, i32) {
    %c0_i32 = arith.constant 0 : i32
    %c0_i32_0 = arith.constant 0 : i32
    %c0_i32_1 = arith.constant 0 : i32
    return %arg0, %c0_i32, %c0_i32_0 : i32, i32, i32
  }
  func.func @transform_13(%arg0: i32) -> (i32, i32, i32) {
    %c0_i32 = arith.constant 0 : i32
    %c0_i32_0 = arith.constant 0 : i32
    %c0_i32_1 = arith.constant 0 : i32
    return %arg0, %c0_i32, %c0_i32_0 : i32, i32, i32
  }
  func.func @transform_14(%arg0: i32) -> (i32, i32, i32) {
    %c0_i32 = arith.constant 0 : i32
    %c0_i32_0 = arith.constant 0 : i32
    %c0_i32_1 = arith.constant 0 : i32
    return %arg0, %c0_i32, %c0_i32_0 : i32, i32, i32
  }
  func.func @transform_15(%arg0: i32) -> (i32, i32) {
    %c0_i32 = arith.constant 0 : i32
    %c0_i32_0 = arith.constant 0 : i32
    %c0_i32_1 = arith.constant 0 : i32
    return %c0_i32, %c0_i32_0 : i32, i32
  }
  func.func @transform_16(%arg0: i32) -> (i32, i32) {
    %c0_i32 = arith.constant 0 : i32
    %c0_i32_0 = arith.constant 0 : i32
    %c0_i32_1 = arith.constant 0 : i32
    return %c0_i32, %c0_i32_0 : i32, i32
  }
  func.func @transform_17(%arg0: i32) -> (i32, i32) {
    %c0_i32 = arith.constant 0 : i32
    %c0_i32_0 = arith.constant 0 : i32
    %c0_i32_1 = arith.constant 0 : i32
    return %c0_i32, %c0_i32_0 : i32, i32
  }
}

</mosaic_0001>

<llo_original>
// kernel: tpu_custom_call.1
$region0: #{tpu_custom_call.1}
  #allocation0 [shape = 'u32[]', space=smem, size = 0x4, offset = 0x4, fixed_abs, tag = 'smem constant byte address 0x4 - core index']
  #allocation1 [shape = 'u32[72,128]{1,0:T(1,128)}', space=vmem, size = 0x9000, scoped, tag = 'internal scratch']
  #allocation2 [shape = 'f32[16,32]{1,0:T(8,128)}', space=vmem, size = 0x2000, scoped, tag = 'scratch operand']
  %s0 = inlined_call_operand.vmem [shape: f32[16,32], index: 0, kind: input, shape index: {}]
  %s1 = inlined_call_operand.vmem [shape: f32[1,16], index: 1, kind: input, shape index: {}]
  %s2 = inlined_call_operand.vmem [shape: f32[16,1], index: 2, kind: input, shape index: {}]
  %s3 = inlined_call_operand.vmem [shape: bf16[2,32,96], index: 3, kind: input, shape index: {}]
  %s4 = inlined_call_operand.vmem [shape: f32[2,1,96], index: 4, kind: input, shape index: {}]
  %s5 = inlined_call_operand.vmem [shape: bf16[2,32,32], index: 5, kind: input, shape index: {}]
  %s6 = inlined_call_operand.vmem [shape: f32[2,1,32], index: 6, kind: input, shape index: {}]
  %s7 = inlined_call_operand.vmem [shape: f32[2,1,32], index: 7, kind: input, shape index: {}]
  %s8 = inlined_call_operand.vmem [shape: f32[2,1,32], index: 8, kind: input, shape index: {}]
  %s9 = inlined_call_operand.vmem [shape: f32[2,1,32], index: 9, kind: input, shape index: {}]
  %s10 = inlined_call_operand.vmem [shape: f32[2,1,32], index: 10, kind: input, shape index: {}]
  %s11 = inlined_call_operand.vmem [shape: bf16[2,32,2048], index: 11, kind: input, shape index: {}]
  %s12 = inlined_call_operand.vmem [shape: f32[2,1,2048], index: 12, kind: input, shape index: {}]
  %s13 = inlined_call_operand.vmem [shape: bf16[2,2048,32], index: 13, kind: input, shape index: {}]
  %s14 = inlined_call_operand.vmem [shape: f32[2,1,32], index: 14, kind: input, shape index: {}]
  %s15 = inlined_call_operand.vmem [shape: f32[1,32], index: 15, kind: input, shape index: {}]
  %s16 = inlined_call_operand.vmem [shape: f32[1,32], index: 16, kind: input, shape index: {}]
  %s17 = inlined_call_operand.hbm [shape: f32[16,32], index: 17, kind: output, shape index: {}]
  %s18 = sld [smem:[#allocation0]]
  $region109: #{tpu_custom_call.1} parent=0
    _
  %s20 = ssub.s32 1, %s18
  %s21 = scalar_select 0, %s20, %s18
  $region1: #{tpu_custom_call.1} parent=0
    #allocation3 [shape = 'u8[8192]{0}', space=vmem, size = 0x2000, scoped, tag = 'output window, operand 0, single buffered']
    #allocation4 [shape = 's32[2]{0}', space=sflag, size = 0x8, scoped, tag = 'scoped memory for tpu_custom_call.1']
    %22 = vsyncpa [#allocation4], 0
    loop: start=0, step=1, limit=4
    $region2: #{tpu_custom_call.1} parent=1 // loop_pre_header
      _
    $region3: #{tpu_custom_call.1} parent=1 // loop_header
      %s24 = sphi 0, %s28
      %p25 = scmp.ge.s32.totalorder %s24, 4
      %s32 = sphi 0, %s32
      %s34 = sphi 0, %s32
      %s35 = sphi 0, %s34
      %s49 = sphi 0, %s35
      %s53 = sphi 0, %s53
      %s55 = sphi 0, %s53
      %s56 = sphi 0, %s55
      %s70 = sphi 0, %s56
      %s74 = sphi 0, %s74
      %s76 = sphi 0, %s74
      %s77 = sphi 0, %s76
      %s91 = sphi 0, %s77
      %s97 = sphi 0, %s99
      %s100 = sphi 0, %s97
      %s101 = sphi 0, %s100
      %s117 = sphi 0, %s101
      %s123 = sphi 0, %s125
      %s126 = sphi 0, %s123
      %s127 = sphi 0, %s126
      %s143 = sphi 0, %s127
      %s149 = sphi 0, %s151
      %s152 = sphi 0, %s149
      %s153 = sphi 0, %s152
      %s169 = sphi 0, %s153
      %s175 = sphi 0, %s177
      %s178 = sphi 0, %s175
      %s179 = sphi 0, %s178
      %s195 = sphi 0, %s179
      %s201 = sphi 0, %s203
      %s204 = sphi 0, %s201
      %s205 = sphi 0, %s204
      %s221 = sphi 0, %s205
      %s227 = sphi 0, %s229
      %s230 = sphi 0, %s227
      %s231 = sphi 0, %s230
      %s247 = sphi 0, %s231
      %s253 = sphi 0, %s255
      %s256 = sphi 0, %s253
      %s257 = sphi 0, %s256
      %s273 = sphi 0, %s257
      %s279 = sphi 0, %s281
      %s282 = sphi 0, %s279
      %s283 = sphi 0, %s282
      %s299 = sphi 0, %s283
      %s305 = sphi 0, %s307
      %s308 = sphi 0, %s305
      %s309 = sphi 0, %s308
      %s325 = sphi 0, %s309
      %s331 = sphi 0, %s333
      %s334 = sphi 0, %s331
      %s335 = sphi 0, %s334
      %s351 = sphi 0, %s335
      %s357 = sphi 0, %s359
      %s360 = sphi 0, %s357
      %s361 = sphi 0, %s360
      %s377 = sphi 0, %s361
      %s383 = sphi 0, %s385
      %s386 = sphi 0, %s383
      %s387 = sphi 0, %s386
      %s403 = sphi 0, %s387
      %s407 = sphi 0, %s407
      %s409 = sphi 0, %s407
      %s410 = sphi 0, %s409
      %s424 = sphi 0, %s410
      %s428 = sphi 0, %s428
      %s430 = sphi 0, %s428
      %s431 = sphi 0, %s430
      %s445 = sphi 0, %s431
      %s449 = sphi 0, %s449
      %s451 = sphi 0, %s449
      %s452 = sphi 0, %s451
      %s466 = sphi 0, %s452
    $region4: #{tpu_custom_call.1} parent=1 // loop_header_branch
      %27 = sbr.rel (%p25) target = $region8
    $region5: #{tpu_custom_call.1} parent=1 // loop_body
      %s29 = ssub.s32 %s24, 1
      %s30 = ssub.s32 %s24, 2
      %s31 = sadd.s32 %s24, 1
      %s33 = sadd.s32 %s32, 1
      %p36 = scmp.eq.s32.totalorder %s24, 1
      %p37 = scmp.ne.s32.totalorder %s32, %s34
      %p38 = scmp.eq.s32.totalorder %s24, 0
      %p39 = por %p37, %p38
      %p40 = scmp.ne.s32.totalorder %s32, %s34
      %p41 = scmp.eq.s32.totalorder %s29, 1
      %p42 = por %p40, %p41
      %p43 = scmp.ne.s32.totalorder %s34, %s35
      %p44 = scmp.eq.s32.totalorder %s29, 0
      %p45 = por %p43, %p44
      %p46 = scmp.ne.s32.totalorder %s34, %s35
      %p47 = scmp.eq.s32.totalorder %s30, 1
      %p48 = por %p46, %p47
      %p50 = scmp.ne.s32.totalorder %s35, %s49
      %p51 = scmp.eq.s32.totalorder %s30, 0
      %p52 = por %p50, %p51
      %s54 = sadd.s32 %s53, 1
      %p57 = scmp.eq.s32.totalorder %s24, 1
      %p58 = scmp.ne.s32.totalorder %s53, %s55
      %p59 = scmp.eq.s32.totalorder %s24, 0
      %p60 = por %p58, %p59
      %p61 = scmp.ne.s32.totalorder %s53, %s55
      %p62 = scmp.eq.s32.totalorder %s29, 1
      %p63 = por %p61, %p62
      %p64 = scmp.ne.s32.totalorder %s55, %s56
      %p65 = scmp.eq.s32.totalorder %s29, 0
      %p66 = por %p64, %p65
      %p67 = scmp.ne.s32.totalorder %s55, %s56
      %p68 = scmp.eq.s32.totalorder %s30, 1
      %p69 = por %p67, %p68
      %p71 = scmp.ne.s32.totalorder %s56, %s70
      %p72 = scmp.eq.s32.totalorder %s30, 0
      %p73 = por %p71, %p72
      %s75 = sadd.s32 %s74, 1
      %p78 = scmp.eq.s32.totalorder %s24, 1
      %p79 = scmp.ne.s32.totalorder %s74, %s76
      %p80 = scmp.eq.s32.totalorder %s24, 0
      %p81 = por %p79, %p80
      %p82 = scmp.ne.s32.totalorder %s74, %s76
      %p83 = scmp.eq.s32.totalorder %s29, 1
      %p84 = por %p82, %p83
      %p85 = scmp.ne.s32.totalorder %s76, %s77
      %p86 = scmp.eq.s32.totalorder %s29, 0
      %p87 = por %p85, %p86
      %p88 = scmp.ne.s32.totalorder %s76, %s77
      %p89 = scmp.eq.s32.totalorder %s30, 1
      %p90 = por %p88, %p89
      %p92 = scmp.ne.s32.totalorder %s77, %s91
      %p93 = scmp.eq.s32.totalorder %s30, 0
      %p94 = por %p92, %p93
      %s95 = ssub.s32 %s24, %s31
      %p96 = scmp.eq.s32.totalorder %s95, 0
      %s98 = sadd.s32 %s97, 1
      %s99 = scalar_select %p96, %s97, %s98
      %p102 = pneg %p96
      %p103 = scmp.eq.s32.totalorder %s24, 1
      %p104 = por %p102, %p103
      %p105 = scmp.ne.s32.totalorder %s97, %s100
      %p106 = scmp.eq.s32.totalorder %s24, 0
      %p107 = por %p105, %p106
      %p108 = scmp.ne.s32.totalorder %s97, %s100
      %p109 = scmp.eq.s32.totalorder %s29, 1
      %p110 = por %p108, %p109
      %p111 = scmp.ne.s32.totalorder %s100, %s101
      %p112 = scmp.eq.s32.totalorder %s29, 0
      %p113 = por %p111, %p112
      %p114 = scmp.ne.s32.totalorder %s100, %s101
      %p115 = scmp.eq.s32.totalorder %s30, 1
      %p116 = por %p114, %p115
      %p118 = scmp.ne.s32.totalorder %s101, %s117
      %p119 = scmp.eq.s32.totalorder %s30, 0
      %p120 = por %p118, %p119
      %s121 = ssub.s32 %s24, %s31
      %p122 = scmp.eq.s32.totalorder %s121, 0
      %s124 = sadd.s32 %s123, 1
      %s125 = scalar_select %p122, %s123, %s124
      %p128 = pneg %p122
      %p129 = scmp.eq.s32.totalorder %s24, 1
      %p130 = por %p128, %p129
      %p131 = scmp.ne.s32.totalorder %s123, %s126
      %p132 = scmp.eq.s32.totalorder %s24, 0
      %p133 = por %p131, %p132
      %p134 = scmp.ne.s32.totalorder %s123, %s126
      %p135 = scmp.eq.s32.totalorder %s29, 1
      %p136 = por %p134, %p135
      %p137 = scmp.ne.s32.totalorder %s126, %s127
      %p138 = scmp.eq.s32.totalorder %s29, 0
      %p139 = por %p137, %p138
      %p140 = scmp.ne.s32.totalorder %s126, %s127
      %p141 = scmp.eq.s32.totalorder %s30, 1
      %p142 = por %p140, %p141
      %p144 = scmp.ne.s32.totalorder %s127, %s143
      %p145 = scmp.eq.s32.totalorder %s30, 0
      %p146 = por %p144, %p145
      %s147 = ssub.s32 %s24, %s31
      %p148 = scmp.eq.s32.totalorder %s147, 0
      %s150 = sadd.s32 %s149, 1
      %s151 = scalar_select %p148, %s149, %s150
      %p154 = pneg %p148
      %p155 = scmp.eq.s32.totalorder %s24, 1
      %p156 = por %p154, %p155
      %p157 = scmp.ne.s32.totalorder %s149, %s152
      %p158 = scmp.eq.s32.totalorder %s24, 0
      %p159 = por %p157, %p158
      %p160 = scmp.ne.s32.totalorder %s149, %s152
      %p161 = scmp.eq.s32.totalorder %s29, 1
      %p162 = por %p160, %p161
      %p163 = scmp.ne.s32.totalorder %s152, %s153
      %p164 = scmp.eq.s32.totalorder %s29, 0
      %p165 = por %p163, %p164
      %p166 = scmp.ne.s32.totalorder %s152, %s153
      %p167 = scmp.eq.s32.totalorder %s30, 1
      %p168 = por %p166, %p167
      %p170 = scmp.ne.s32.totalorder %s153, %s169
      %p171 = scmp.eq.s32.totalorder %s30, 0
      %p172 = por %p170, %p171
      %s173 = ssub.s32 %s24, %s31
      %p174 = scmp.eq.s32.totalorder %s173, 0
      %s176 = sadd.s32 %s175, 1
      %s177 = scalar_select %p174, %s175, %s176
      %p180 = pneg %p174
      %p181 = scmp.eq.s32.totalorder %s24, 1
      %p182 = por %p180, %p181
      %p183 = scmp.ne.s32.totalorder %s175, %s178
      %p184 = scmp.eq.s32.totalorder %s24, 0
      %p185 = por %p183, %p184
      %p186 = scmp.ne.s32.totalorder %s175, %s178
      %p187 = scmp.eq.s32.totalorder %s29, 1
      %p188 = por %p186, %p187
      %p189 = scmp.ne.s32.totalorder %s178, %s179
      %p190 = scmp.eq.s32.totalorder %s29, 0
      %p191 = por %p189, %p190
      %p192 = scmp.ne.s32.totalorder %s178, %s179
      %p193 = scmp.eq.s32.totalorder %s30, 1
      %p194 = por %p192, %p193
      %p196 = scmp.ne.s32.totalorder %s179, %s195
      %p197 = scmp.eq.s32.totalorder %s30, 0
      %p198 = por %p196, %p197
      %s199 = ssub.s32 %s24, %s31
      %p200 = scmp.eq.s32.totalorder %s199, 0
      %s202 = sadd.s32 %s201, 1
      %s203 = scalar_select %p200, %s201, %s202
      %p206 = pneg %p200
      %p207 = scmp.eq.s32.totalorder %s24, 1
      %p208 = por %p206, %p207
      %p209 = scmp.ne.s32.totalorder %s201, %s204
      %p210 = scmp.eq.s32.totalorder %s24, 0
      %p211 = por %p209, %p210
      %p212 = scmp.ne.s32.totalorder %s201, %s204
      %p213 = scmp.eq.s32.totalorder %s29, 1
      %p214 = por %p212, %p213
      %p215 = scmp.ne.s32.totalorder %s204, %s205
      %p216 = scmp.eq.s32.totalorder %s29, 0
      %p217 = por %p215, %p216
      %p218 = scmp.ne.s32.totalorder %s204, %s205
      %p219 = scmp.eq.s32.totalorder %s30, 1
      %p220 = por %p218, %p219
      %p222 = scmp.ne.s32.totalorder %s205, %s221
      %p223 = scmp.eq.s32.totalorder %s30, 0
      %p224 = por %p222, %p223
      %s225 = ssub.s32 %s24, %s31
      %p226 = scmp.eq.s32.totalorder %s225, 0
      %s228 = sadd.s32 %s227, 1
      %s229 = scalar_select %p226, %s227, %s228
      %p232 = pneg %p226
      %p233 = scmp.eq.s32.totalorder %s24, 1
      %p234 = por %p232, %p233
      %p235 = scmp.ne.s32.totalorder %s227, %s230
      %p236 = scmp.eq.s32.totalorder %s24, 0
      %p237 = por %p235, %p236
      %p238 = scmp.ne.s32.totalorder %s227, %s230
      %p239 = scmp.eq.s32.totalorder %s29, 1
      %p240 = por %p238, %p239
      %p241 = scmp.ne.s32.totalorder %s230, %s231
      %p242 = scmp.eq.s32.totalorder %s29, 0
      %p243 = por %p241, %p242
      %p244 = scmp.ne.s32.totalorder %s230, %s231
      %p245 = scmp.eq.s32.totalorder %s30, 1
      %p246 = por %p244, %p245
      %p248 = scmp.ne.s32.totalorder %s231, %s247
      %p249 = scmp.eq.s32.totalorder %s30, 0
      %p250 = por %p248, %p249
      %s251 = ssub.s32 %s24, %s31
      %p252 = scmp.eq.s32.totalorder %s251, 0
      %s254 = sadd.s32 %s253, 1
      %s255 = scalar_select %p252, %s253, %s254
      %p258 = pneg %p252
      %p259 = scmp.eq.s32.totalorder %s24, 1
      %p260 = por %p258, %p259
      %p261 = scmp.ne.s32.totalorder %s253, %s256
      %p262 = scmp.eq.s32.totalorder %s24, 0
      %p263 = por %p261, %p262
      %p264 = scmp.ne.s32.totalorder %s253, %s256
      %p265 = scmp.eq.s32.totalorder %s29, 1
      %p266 = por %p264, %p265
      %p267 = scmp.ne.s32.totalorder %s256, %s257
      %p268 = scmp.eq.s32.totalorder %s29, 0
      %p269 = por %p267, %p268
      %p270 = scmp.ne.s32.totalorder %s256, %s257
      %p271 = scmp.eq.s32.totalorder %s30, 1
      %p272 = por %p270, %p271
      %p274 = scmp.ne.s32.totalorder %s257, %s273
      %p275 = scmp.eq.s32.totalorder %s30, 0
      %p276 = por %p274, %p275
      %s277 = ssub.s32 %s24, %s31
      %p278 = scmp.eq.s32.totalorder %s277, 0
      %s280 = sadd.s32 %s279, 1
      %s281 = scalar_select %p278, %s279, %s280
      %p284 = pneg %p278
      %p285 = scmp.eq.s32.totalorder %s24, 1
      %p286 = por %p284, %p285
      %p287 = scmp.ne.s32.totalorder %s279, %s282
      %p288 = scmp.eq.s32.totalorder %s24, 0
      %p289 = por %p287, %p288
      %p290 = scmp.ne.s32.totalorder %s279, %s282
      %p291 = scmp.eq.s32.totalorder %s29, 1
      %p292 = por %p290, %p291
      %p293 = scmp.ne.s32.totalorder %s282, %s283
      %p294 = scmp.eq.s32.totalorder %s29, 0
      %p295 = por %p293, %p294
      %p296 = scmp.ne.s32.totalorder %s282, %s283
      %p297 = scmp.eq.s32.totalorder %s30, 1
      %p298 = por %p296, %p297
      %p300 = scmp.ne.s32.totalorder %s283, %s299
      %p301 = scmp.eq.s32.totalorder %s30, 0
      %p302 = por %p300, %p301
      %s303 = ssub.s32 %s24, %s31
      %p304 = scmp.eq.s32.totalorder %s303, 0
      %s306 = sadd.s32 %s305, 1
      %s307 = scalar_select %p304, %s305, %s306
      %p310 = pneg %p304
      %p311 = scmp.eq.s32.totalorder %s24, 1
      %p312 = por %p310, %p311
      %p313 = scmp.ne.s32.totalorder %s305, %s308
      %p314 = scmp.eq.s32.totalorder %s24, 0
      %p315 = por %p313, %p314
      %p316 = scmp.ne.s32.totalorder %s305, %s308
      %p317 = scmp.eq.s32.totalorder %s29, 1
      %p318 = por %p316, %p317
      %p319 = scmp.ne.s32.totalorder %s308, %s309
      %p320 = scmp.eq.s32.totalorder %s29, 0
      %p321 = por %p319, %p320
      %p322 = scmp.ne.s32.totalorder %s308, %s309
      %p323 = scmp.eq.s32.totalorder %s30, 1
      %p324 = por %p322, %p323
      %p326 = scmp.ne.s32.totalorder %s309, %s325
      %p327 = scmp.eq.s32.totalorder %s30, 0
      %p328 = por %p326, %p327
      %s329 = ssub.s32 %s24, %s31
      %p330 = scmp.eq.s32.totalorder %s329, 0
      %s332 = sadd.s32 %s331, 1
      %s333 = scalar_select %p330, %s331, %s332
      %p336 = pneg %p330
      %p337 = scmp.eq.s32.totalorder %s24, 1
      %p338 = por %p336, %p337
      %p339 = scmp.ne.s32.totalorder %s331, %s334
      %p340 = scmp.eq.s32.totalorder %s24, 0
      %p341 = por %p339, %p340
      %p342 = scmp.ne.s32.totalorder %s331, %s334
      %p343 = scmp.eq.s32.totalorder %s29, 1
      %p344 = por %p342, %p343
      %p345 = scmp.ne.s32.totalorder %s334, %s335
      %p346 = scmp.eq.s32.totalorder %s29, 0
      %p347 = por %p345, %p346
      %p348 = scmp.ne.s32.totalorder %s334, %s335
      %p349 = scmp.eq.s32.totalorder %s30, 1
      %p350 = por %p348, %p349
      %p352 = scmp.ne.s32.totalorder %s335, %s351
      %p353 = scmp.eq.s32.totalorder %s30, 0
      %p354 = por %p352, %p353
      %s355 = ssub.s32 %s24, %s31
      %p356 = scmp.eq.s32.totalorder %s355, 0
      %s358 = sadd.s32 %s357, 1
      %s359 = scalar_select %p356, %s357, %s358
      %p362 = pneg %p356
      %p363 = scmp.eq.s32.totalorder %s24, 1
      %p364 = por %p362, %p363
      %p365 = scmp.ne.s32.totalorder %s357, %s360
      %p366 = scmp.eq.s32.totalorder %s24, 0
      %p367 = por %p365, %p366
      %p368 = scmp.ne.s32.totalorder %s357, %s360
      %p369 = scmp.eq.s32.totalorder %s29, 1
      %p370 = por %p368, %p369
      %p371 = scmp.ne.s32.totalorder %s360, %s361
      %p372 = scmp.eq.s32.totalorder %s29, 0
      %p373 = por %p371, %p372
      %p374 = scmp.ne.s32.totalorder %s360, %s361
      %p375 = scmp.eq.s32.totalorder %s30, 1
      %p376 = por %p374, %p375
      %p378 = scmp.ne.s32.totalorder %s361, %s377
      %p379 = scmp.eq.s32.totalorder %s30, 0
      %p380 = por %p378, %p379
      %s381 = ssub.s32 %s24, %s31
      %p382 = scmp.eq.s32.totalorder %s381, 0
      %s384 = sadd.s32 %s383, 1
      %s385 = scalar_select %p382, %s383, %s384
      %p388 = pneg %p382
      %p389 = scmp.eq.s32.totalorder %s24, 1
      %p390 = por %p388, %p389
      %p391 = scmp.ne.s32.totalorder %s383, %s386
      %p392 = scmp.eq.s32.totalorder %s24, 0
      %p393 = por %p391, %p392
      %p394 = scmp.ne.s32.totalorder %s383, %s386
      %p395 = scmp.eq.s32.totalorder %s29, 1
      %p396 = por %p394, %p395
      %p397 = scmp.ne.s32.totalorder %s386, %s387
      %p398 = scmp.eq.s32.totalorder %s29, 0
      %p399 = por %p397, %p398
      %p400 = scmp.ne.s32.totalorder %s386, %s387
      %p401 = scmp.eq.s32.totalorder %s30, 1
      %p402 = por %p400, %p401
      %p404 = scmp.ne.s32.totalorder %s387, %s403
      %p405 = scmp.eq.s32.totalorder %s30, 0
      %p406 = por %p404, %p405
      %s408 = sadd.s32 %s407, 1
      %p411 = scmp.eq.s32.totalorder %s24, 1
      %p412 = scmp.ne.s32.totalorder %s407, %s409
      %p413 = scmp.eq.s32.totalorder %s24, 0
      %p414 = por %p412, %p413
      %p415 = scmp.ne.s32.totalorder %s407, %s409
      %p416 = scmp.eq.s32.totalorder %s29, 1
      %p417 = por %p415, %p416
      %p418 = scmp.ne.s32.totalorder %s409, %s410
      %p419 = scmp.eq.s32.totalorder %s29, 0
      %p420 = por %p418, %p419
      %p421 = scmp.ne.s32.totalorder %s409, %s410
      %p422 = scmp.eq.s32.totalorder %s30, 1
      %p423 = por %p421, %p422
      %p425 = scmp.ne.s32.totalorder %s410, %s424
      %p426 = scmp.eq.s32.totalorder %s30, 0
      %p427 = por %p425, %p426
      %s429 = sadd.s32 %s428, 1
      %p432 = scmp.eq.s32.totalorder %s24, 1
      %p433 = scmp.ne.s32.totalorder %s428, %s430
      %p434 = scmp.eq.s32.totalorder %s24, 0
      %p435 = por %p433, %p434
      %p436 = scmp.ne.s32.totalorder %s428, %s430
      %p437 = scmp.eq.s32.totalorder %s29, 1
      %p438 = por %p436, %p437
      %p439 = scmp.ne.s32.totalorder %s430, %s431
      %p440 = scmp.eq.s32.totalorder %s29, 0
      %p441 = por %p439, %p440
      %p442 = scmp.ne.s32.totalorder %s430, %s431
      %p443 = scmp.eq.s32.totalorder %s30, 1
      %p444 = por %p442, %p443
      %p446 = scmp.ne.s32.totalorder %s431, %s445
      %p447 = scmp.eq.s32.totalorder %s30, 0
      %p448 = por %p446, %p447
      %s450 = sadd.s32 %s449, 1
      %p453 = scmp.eq.s32.totalorder %s24, 1
      %p454 = scmp.ne.s32.totalorder %s449, %s451
      %p455 = scmp.eq.s32.totalorder %s24, 0
      %p456 = por %p454, %p455
      %p457 = scmp.ne.s32.totalorder %s449, %s451
      %p458 = scmp.eq.s32.totalorder %s29, 1
      %p459 = por %p457, %p458
      %p460 = scmp.ne.s32.totalorder %s451, %s452
      %p461 = scmp.eq.s32.totalorder %s29, 0
      %p462 = por %p460, %p461
      %p463 = scmp.ne.s32.totalorder %s451, %s452
      %p464 = scmp.eq.s32.totalorder %s30, 1
      %p465 = por %p463, %p464
      %p467 = scmp.ne.s32.totalorder %s452, %s466
      %p468 = scmp.eq.s32.totalorder %s30, 0
      %p469 = por %p467, %p468
      %p470 = scmp.le.s32.totalorder 1, %s24
      %p471 = scmp.lt.s32.totalorder %s24, 3
      %p472 = pnand %p470, %p471
      %p473 = pneg %p472
      // Predicated region
      $region9: #{tpu_custom_call.1} parent=5 // pred_check
        _
      $region10: #{tpu_custom_call.1} parent=5 // pred_check_branch
        %475 = sbr.rel (%p472) target = $region12
      $region11: #{tpu_custom_call.1} parent=5 // pred_region
        %s476 = ssub.s32 %s24, 1
        // Predicated region
        $region13: #{tpu_custom_call.1} parent=11 // pred_check
          %p477 = pneg %p45
        $region14: #{tpu_custom_call.1} parent=11 // pred_check_branch
          %479 = sbr.rel (%p477) target = $region16
        $region15: #{tpu_custom_call.1} parent=11 // pred_region
          _
        $region16: #{tpu_custom_call.1} parent=11 // pred_fallthru
          _
        // Predicated region
        $region17: #{tpu_custom_call.1} parent=11 // pred_check
          %p480 = pneg %p66
        $region18: #{tpu_custom_call.1} parent=11 // pred_check_branch
          %482 = sbr.rel (%p480) target = $region20
        $region19: #{tpu_custom_call.1} parent=11 // pred_region
          _
        $region20: #{tpu_custom_call.1} parent=11 // pred_fallthru
          _
        // Predicated region
        $region21: #{tpu_custom_call.1} parent=11 // pred_check
          %p483 = pneg %p87
        $region22: #{tpu_custom_call.1} parent=11 // pred_check_branch
          %485 = sbr.rel (%p483) target = $region24
        $region23: #{tpu_custom_call.1} parent=11 // pred_region
          _
        $region24: #{tpu_custom_call.1} parent=11 // pred_fallthru
          _
        // Predicated region
        $region25: #{tpu_custom_call.1} parent=11 // pred_check
          %p486 = pneg %p420
        $region26: #{tpu_custom_call.1} parent=11 // pred_check_branch
          %488 = sbr.rel (%p486) target = $region28
        $region27: #{tpu_custom_call.1} parent=11 // pred_region
          _
        $region28: #{tpu_custom_call.1} parent=11 // pred_fallthru
          _
        // Predicated region
        $region29: #{tpu_custom_call.1} parent=11 // pred_check
          %p489 = pneg %p441
        $region30: #{tpu_custom_call.1} parent=11 // pred_check_branch
          %491 = sbr.rel (%p489) target = $region32
        $region31: #{tpu_custom_call.1} parent=11 // pred_region
          _
        $region32: #{tpu_custom_call.1} parent=11 // pred_fallthru
          _
      $region12: #{tpu_custom_call.1} parent=5 // pred_fallthru
        _
      %p492 = scmp.lt.s32.totalorder %s24, 2
      // Predicated region
      $region33: #{tpu_custom_call.1} parent=5 // pred_check
        %p493 = pneg %p492
      $region34: #{tpu_custom_call.1} parent=5 // pred_check_branch
        %495 = sbr.rel (%p493) target = $region36
      $region35: #{tpu_custom_call.1} parent=5 // pred_region
        // Predicated region
        $region37: #{tpu_custom_call.1} parent=35 // pred_check
          %p496 = pneg %p107
        $region38: #{tpu_custom_call.1} parent=35 // pred_check_branch
          %498 = sbr.rel (%p496) target = $region40
        $region39: #{tpu_custom_call.1} parent=35 // pred_region
          %p499 = scmp.lt.s32.totalorder %s24, 1
          %s500 = scalar_select %p499, %s24, 1
          %s501 = smul.addr %s500, 4
          %s502 = smul.addr %s501, 4
          %s503 = scalar_lea.vmem %s3, %s502
        $region40: #{tpu_custom_call.1} parent=35 // pred_fallthru
          _
        // Predicated region
        $region41: #{tpu_custom_call.1} parent=35 // pred_check
          %p504 = pneg %p133
        $region42: #{tpu_custom_call.1} parent=35 // pred_check_branch
          %506 = sbr.rel (%p504) target = $region44
        $region43: #{tpu_custom_call.1} parent=35 // pred_region
          %p507 = scmp.lt.s32.totalorder %s24, 1
          %s508 = scalar_select %p507, %s24, 1
          %s509 = scalar_lea.vmem %s4, %s508
        $region44: #{tpu_custom_call.1} parent=35 // pred_fallthru
          _
        // Predicated region
        $region45: #{tpu_custom_call.1} parent=35 // pred_check
          %p510 = pneg %p159
        $region46: #{tpu_custom_call.1} parent=35 // pred_check_branch
          %512 = sbr.rel (%p510) target = $region48
        $region47: #{tpu_custom_call.1} parent=35 // pred_region
          %p513 = scmp.lt.s32.totalorder %s24, 1
          %s514 = scalar_select %p513, %s24, 1
          %s515 = smul.addr %s514, 4
          %s516 = smul.addr %s515, 4
          %s517 = scalar_lea.vmem %s5, %s516
        $region48: #{tpu_custom_call.1} parent=35 // pred_fallthru
          _
        // Predicated region
        $region49: #{tpu_custom_call.1} parent=35 // pred_check
          %p518 = pneg %p185
        $region50: #{tpu_custom_call.1} parent=35 // pred_check_branch
          %520 = sbr.rel (%p518) target = $region52
        $region51: #{tpu_custom_call.1} parent=35 // pred_region
          %p521 = scmp.lt.s32.totalorder %s24, 1
          %s522 = scalar_select %p521, %s24, 1
          %s523 = scalar_lea.vmem %s6, %s522
        $region52: #{tpu_custom_call.1} parent=35 // pred_fallthru
          _
        // Predicated region
        $region53: #{tpu_custom_call.1} parent=35 // pred_check
          %p524 = pneg %p211
        $region54: #{tpu_custom_call.1} parent=35 // pred_check_branch
          %526 = sbr.rel (%p524) target = $region56
        $region55: #{tpu_custom_call.1} parent=35 // pred_region
          %p527 = scmp.lt.s32.totalorder %s24, 1
          %s528 = scalar_select %p527, %s24, 1
          %s529 = scalar_lea.vmem %s7, %s528
        $region56: #{tpu_custom_call.1} parent=35 // pred_fallthru
          _
        // Predicated region
        $region57: #{tpu_custom_call.1} parent=35 // pred_check
          %p530 = pneg %p237
        $region58: #{tpu_custom_call.1} parent=35 // pred_check_branch
          %532 = sbr.rel (%p530) target = $region60
        $region59: #{tpu_custom_call.1} parent=35 // pred_region
          %p533 = scmp.lt.s32.totalorder %s24, 1
          %s534 = scalar_select %p533, %s24, 1
          %s535 = scalar_lea.vmem %s8, %s534
        $region60: #{tpu_custom_call.1} parent=35 // pred_fallthru
          _
        // Predicated region
        $region61: #{tpu_custom_call.1} parent=35 // pred_check
          %p536 = pneg %p263
        $region62: #{tpu_custom_call.1} parent=35 // pred_check_branch
          %538 = sbr.rel (%p536) target = $region64
        $region63: #{tpu_custom_call.1} parent=35 // pred_region
          %p539 = scmp.lt.s32.totalorder %s24, 1
          %s540 = scalar_select %p539, %s24, 1
          %s541 = scalar_lea.vmem %s9, %s540
        $region64: #{tpu_custom_call.1} parent=35 // pred_fallthru
          _
        // Predicated region
        $region65: #{tpu_custom_call.1} parent=35 // pred_check
          %p542 = pneg %p289
        $region66: #{tpu_custom_call.1} parent=35 // pred_check_branch
          %544 = sbr.rel (%p542) target = $region68
        $region67: #{tpu_custom_call.1} parent=35 // pred_region
          %p545 = scmp.lt.s32.totalorder %s24, 1
          %s546 = scalar_select %p545, %s24, 1
          %s547 = scalar_lea.vmem %s10, %s546
        $region68: #{tpu_custom_call.1} parent=35 // pred_fallthru
          _
        // Predicated region
        $region69: #{tpu_custom_call.1} parent=35 // pred_check
          %p548 = pneg %p315
        $region70: #{tpu_custom_call.1} parent=35 // pred_check_branch
          %550 = sbr.rel (%p548) target = $region72
        $region71: #{tpu_custom_call.1} parent=35 // pred_region
          %p551 = scmp.lt.s32.totalorder %s24, 1
          %s552 = scalar_select %p551, %s24, 1
          %s553 = smul.addr %s552, 64
          %s554 = smul.addr %s553, 4
          %s555 = scalar_lea.vmem %s11, %s554
        $region72: #{tpu_custom_call.1} parent=35 // pred_fallthru
          _
        // Predicated region
        $region73: #{tpu_custom_call.1} parent=35 // pred_check
          %p556 = pneg %p341
        $region74: #{tpu_custom_call.1} parent=35 // pred_check_branch
          %558 = sbr.rel (%p556) target = $region76
        $region75: #{tpu_custom_call.1} parent=35 // pred_region
          %p559 = scmp.lt.s32.totalorder %s24, 1
          %s560 = scalar_select %p559, %s24, 1
          %s561 = smul.addr %s560, 16
          %s562 = scalar_lea.vmem %s12, %s561
        $region76: #{tpu_custom_call.1} parent=35 // pred_fallthru
          _
        // Predicated region
        $region77: #{tpu_custom_call.1} parent=35 // pred_check
          %p563 = pneg %p367
        $region78: #{tpu_custom_call.1} parent=35 // pred_check_branch
          %565 = sbr.rel (%p563) target = $region80
        $region79: #{tpu_custom_call.1} parent=35 // pred_region
          %p566 = scmp.lt.s32.totalorder %s24, 1
          %s567 = scalar_select %p566, %s24, 1
          %s568 = smul.addr %s567, 256
          %s569 = smul.addr %s568, 4
          %s570 = scalar_lea.vmem %s13, %s569
        $region80: #{tpu_custom_call.1} parent=35 // pred_fallthru
          _
        // Predicated region
        $region81: #{tpu_custom_call.1} parent=35 // pred_check
          %p571 = pneg %p393
        $region82: #{tpu_custom_call.1} parent=35 // pred_check_branch
          %573 = sbr.rel (%p571) target = $region84
        $region83: #{tpu_custom_call.1} parent=35 // pred_region
          %p574 = scmp.lt.s32.totalorder %s24, 1
          %s575 = scalar_select %p574, %s24, 1
          %s576 = scalar_lea.vmem %s14, %s575
        $region84: #{tpu_custom_call.1} parent=35 // pred_fallthru
          _
      $region36: #{tpu_custom_call.1} parent=5 // pred_fallthru
        _
      %p577 = scmp.le.s32.totalorder 1, %s24
      %p578 = scmp.lt.s32.totalorder %s24, 3
      %p579 = pnand %p577, %p578
      %p580 = pneg %p579
      // Predicated region
      $region85: #{tpu_custom_call.1} parent=5 // pred_check
        _
      $region86: #{tpu_custom_call.1} parent=5 // pred_check_branch
        %582 = sbr.rel (%p579) target = $region88
      $region87: #{tpu_custom_call.1} parent=5 // pred_region
        %s583 = ssub.s32 %s24, 1
        %p584 = pneg %p45
        %p585 = pneg %p42
        %p586 = pneg %p66
        %p587 = pneg %p63
        %p588 = pneg %p87
        %p589 = pneg %p84
        %p590 = scmp.lt.s32.totalorder %s29, 1
        %s591 = scalar_select %p590, %s29, 1
        %s592 = smul.addr %s591, 4
        %s593 = smul.addr %s592, 4
        %s594 = scalar_lea.vmem %s3, %s593
        %p595 = pneg %p113
        %p596 = pneg %p110
        %p597 = scmp.lt.s32.totalorder %s29, 1
        %s598 = scalar_select %p597, %s29, 1
        %s599 = scalar_lea.vmem %s4, %s598
        %p600 = pneg %p139
        %p601 = pneg %p136
        %p602 = scmp.lt.s32.totalorder %s29, 1
        %s603 = scalar_select %p602, %s29, 1
        %s604 = smul.addr %s603, 4
        %s605 = smul.addr %s604, 4
        %s606 = scalar_lea.vmem %s5, %s605
        %p607 = pneg %p165
        %p608 = pneg %p162
        %p609 = scmp.lt.s32.totalorder %s29, 1
        %s610 = scalar_select %p609, %s29, 1
        %s611 = scalar_lea.vmem %s6, %s610
        %p612 = pneg %p191
        %p613 = pneg %p188
        %p614 = scmp.lt.s32.totalorder %s29, 1
        %s615 = scalar_select %p614, %s29, 1
        %s616 = scalar_lea.vmem %s7, %s615
        %p617 = pneg %p217
        %p618 = pneg %p214
        %p619 = scmp.lt.s32.totalorder %s29, 1
        %s620 = scalar_select %p619, %s29, 1
        %s621 = scalar_lea.vmem %s8, %s620
        %p622 = pneg %p243
        %p623 = pneg %p240
        %p624 = scmp.lt.s32.totalorder %s29, 1
        %s625 = scalar_select %p624, %s29, 1
        %s626 = scalar_lea.vmem %s9, %s625
        %p627 = pneg %p269
        %p628 = pneg %p266
        %p629 = scmp.lt.s32.totalorder %s29, 1
        %s630 = scalar_select %p629, %s29, 1
        %s631 = scalar_lea.vmem %s10, %s630
        %p632 = pneg %p295
        %p633 = pneg %p292
        %p634 = scmp.lt.s32.totalorder %s29, 1
        %s635 = scalar_select %p634, %s29, 1
        %s636 = smul.addr %s635, 64
        %s637 = smul.addr %s636, 4
        %s638 = scalar_lea.vmem %s11, %s637
        %p639 = pneg %p321
        %p640 = pneg %p318
        %p641 = scmp.lt.s32.totalorder %s29, 1
        %s642 = scalar_select %p641, %s29, 1
        %s643 = smul.addr %s642, 16
        %s644 = scalar_lea.vmem %s12, %s643
        %p645 = pneg %p347
        %p646 = pneg %p344
        %p647 = scmp.lt.s32.totalorder %s29, 1
        %s648 = scalar_select %p647, %s29, 1
        %s649 = smul.addr %s648, 256
        %s650 = smul.addr %s649, 4
        %s651 = scalar_lea.vmem %s13, %s650
        %p652 = pneg %p373
        %p653 = pneg %p370
        %p654 = scmp.lt.s32.totalorder %s29, 1
        %s655 = scalar_select %p654, %s29, 1
        %s656 = scalar_lea.vmem %s14, %s655
        %p657 = pneg %p399
        %p658 = pneg %p396
        %p659 = pneg %p420
        %p660 = pneg %p417
        %p661 = pneg %p441
        %p662 = pneg %p438
        %p663 = pneg %p462
        %p664 = pneg %p459
        %p665 = scmp.lt.s32.totalorder %s29, 1
        %s666 = scalar_select %p665, %s29, 1
        %s667 = smul.addr %s666, 4
        %s668 = smul.addr %s667, 4
        %s669 = scalar_lea.vmem %s3, %s668
        %p670 = scmp.lt.s32.totalorder %s29, 1
        %s671 = scalar_select %p670, %s29, 1
        %s672 = scalar_lea.vmem %s4, %s671
        %p673 = scmp.lt.s32.totalorder %s29, 1
        %s674 = scalar_select %p673, %s29, 1
        %s675 = smul.addr %s674, 4
        %s676 = smul.addr %s675, 4
        %s677 = scalar_lea.vmem %s5, %s676
        %p678 = scmp.lt.s32.totalorder %s29, 1
        %s679 = scalar_select %p678, %s29, 1
        %s680 = scalar_lea.vmem %s6, %s679
        %p681 = scmp.lt.s32.totalorder %s29, 1
        %s682 = scalar_select %p681, %s29, 1
        %s683 = scalar_lea.vmem %s7, %s682
        %p684 = scmp.lt.s32.totalorder %s29, 1
        %s685 = scalar_select %p684, %s29, 1
        %s686 = scalar_lea.vmem %s8, %s685
        %p687 = scmp.lt.s32.totalorder %s29, 1
        %s688 = scalar_select %p687, %s29, 1
        %s689 = scalar_lea.vmem %s9, %s688
        %p690 = scmp.lt.s32.totalorder %s29, 1
        %s691 = scalar_select %p690, %s29, 1
        %s692 = scalar_lea.vmem %s10, %s691
        %p693 = scmp.lt.s32.totalorder %s29, 1
        %s694 = scalar_select %p693, %s29, 1
        %s695 = smul.addr %s694, 64
        %s696 = smul.addr %s695, 4
        %s697 = scalar_lea.vmem %s11, %s696
        %p698 = scmp.lt.s32.totalorder %s29, 1
        %s699 = scalar_select %p698, %s29, 1
        %s700 = smul.addr %s699, 16
        %s701 = scalar_lea.vmem %s12, %s700
        %p702 = scmp.lt.s32.totalorder %s29, 1
        %s703 = scalar_select %p702, %s29, 1
        %s704 = smul.addr %s703, 256
        %s705 = smul.addr %s704, 4
        %s706 = scalar_lea.vmem %s13, %s705
        %p707 = scmp.lt.s32.totalorder %s29, 1
        %s708 = scalar_select %p707, %s29, 1
        %s709 = scalar_lea.vmem %s14, %s708
        %p711 = scmp.eq.s32.totalorder %s29, 0
        // Predicated region
        $region89: #{tpu_custom_call.1} parent=87 // pred_check
          %p712 = pneg %p711
        $region90: #{tpu_custom_call.1} parent=87 // pred_check_branch
          %714 = sbr.rel (%p712) target = $region92
        $region91: #{tpu_custom_call.1} parent=87 // pred_region
          %v715 = vld [vmem:[%s0] sm:$0xff]
          %v716 = vld [vmem:[%s0 + $0x8] sm:$0xff]
          %vm717 = vcmask 261120
          %718 = vst.msk [vmem:[#allocation2] sm:$0xff] %vm717, %v715
          %719 = vst.msk [vmem:[#allocation2 + $0x8] sm:$0xff] %vm717, %v716
        $region92: #{tpu_custom_call.1} parent=87 // pred_fallthru
          _
        %v720 = vld [vmem:[#allocation2] sm:$0xff]
        %v721 = vld [vmem:[#allocation2 + $0x8] sm:$0xff]
        %v722 = vld [vmem:[%s2] sm:$0xff]
        %v723 = vld [vmem:[%s2 + $0x8] sm:$0xff]
        %v724 = vld [vmem:[%s1] sm:$0x1]
        %726 = vset.pattern.permute.xlu0 0
        %727 = vperm.xlu0 %726, %v722
        %v728 = vpop.permute.xlu0 %727
        %731 = vset.pattern.permute.xlu0 0
        %732 = vperm.xlu0 %731, %v723
        %v733 = vpop.permute.xlu0 %732
        %v736 = vperm.slane %v724, 0
        %vm738 = vcmp.eq.f32.partialorder %v728, %v736
        %vm739 = vcmp.eq.f32.partialorder %v733, %v736
        %v740 = vsel %vm738, 0.0, -1e+10
        %v741 = vsel %vm739, 0.0, -1e+10
        %v742 = vld [vmem:[%s683] sm:$0x1]
        %v743 = vld [vmem:[%s686] sm:$0x1]
        %vm744 = vcmask 261120
        %v745 = vsel %vm744, %v720, 0.0
        %746 = vadd.xlane.f32.xlu0 %v745
        %v747 = vpop.xlane.xlu0 %746
        %v748 = vsel %vm744, %v721, 0.0
        %749 = vadd.xlane.f32.xlu0 %v748
        %v750 = vpop.xlane.xlu0 %749
        %v751 = vrcp.pop 32.0
        %v752 = vmul.f32 32.0, %v751
        %v753 = vsub.f32 1.0, %v752
        %v754 = vmul.f32 %v751, %v753
        %v755 = vadd.f32 %v751, %v754
        %vm756 = vweird.f32 %v751
        %v757 = vsel %vm756, %v751, %v755
        %v758 = vmul.f32 %v747, %v757
        %v759 = vmul.f32 %v750, %v757
        %v760 = vsub.f32 %v720, %v758
        %v761 = vsub.f32 %v721, %v759
        %v762 = vmul.f32 %v760, %v760
        %v763 = vmul.f32 %v761, %v761
        %v764 = vsel %vm744, %v762, 0.0
        %765 = vadd.xlane.f32.xlu0 %v764
        %v766 = vpop.xlane.xlu0 %765
        %v767 = vsel %vm744, %v763, 0.0
        %768 = vadd.xlane.f32.xlu0 %v767
        %v769 = vpop.xlane.xlu0 %768
        %v770 = vmul.f32 %v766, 0.032258064
        %v771 = vmul.f32 %v769, 0.032258064
        %v772 = vrsqrt.pop %v770
        %v773 = vmul.f32 %v772, %v770
        %v774 = vmul.f32 %v773, %v772
        %v775 = vmul.f32 0.5, %v774
        %v776 = vsub.f32 1.5, %v775
        %v777 = vmul.f32 %v772, %v776
        %v778 = vmul.f32 %v770, %v777
        %vm779 = vcmp.eq.f32.partialorder %v770, inf
        %v780 = vsel %vm779, %v770, %v778
        %vm781 = vcmp.eq.f32.partialorder %v770, 0.0
        %v782 = vand.u32 %v770, 2147483648
        %v783 = vsel %vm781, %v782, %v780
        %v784 = vrsqrt.pop %v771
        %v785 = vmul.f32 %v784, %v771
        %v786 = vmul.f32 %v785, %v784
        %v787 = vmul.f32 0.5, %v786
        %v788 = vsub.f32 1.5, %v787
        %v789 = vmul.f32 %v784, %v788
        %v790 = vmul.f32 %v771, %v789
        %vm791 = vcmp.eq.f32.partialorder %v771, inf
        %v792 = vsel %vm791, %v771, %v790
        %vm793 = vcmp.eq.f32.partialorder %v771, 0.0
        %v794 = vand.u32 %v771, 2147483648
        %v795 = vsel %vm793, %v794, %v792
        %v797 = vperm.slane %v742, 0
        %v799 = vmul.f32 %v797, %v760
        %v800 = vmul.f32 %v797, %v761
        %v801 = vadd.f32 %v783, 1e-06
        %v802 = vadd.f32 %v795, 1e-06
        %v803 = vrcp.pop %v801
        %v804 = vmul.f32 %v801, %v803
        %v805 = vsub.f32 1.0, %v804
        %v806 = vmul.f32 %v803, %v805
        %v807 = vadd.f32 %v803, %v806
        %vm808 = vweird.f32 %v801
        %vm809 = vweird.f32 %v803
        %vm810 = vmor %vm808, %vm809
        %v811 = vsel %vm810, %v803, %v807
        %v812 = vand.u32 2147483647, %v801
        %vm813 = vcmp.eq.f32.partialorder %v812, 8.507059e+37
        %v814 = vand.u32 %v801, 2147483648
        %v815 = vor.u32 1.1754944e-38, %v814
        %v816 = vsel %vm813, %v815, %v811
        %v817 = vmul.f32 %v799, %v816
        %v818 = vrcp.pop %v802
        %v819 = vmul.f32 %v802, %v818
        %v820 = vsub.f32 1.0, %v819
        %v821 = vmul.f32 %v818, %v820
        %v822 = vadd.f32 %v818, %v821
        %vm823 = vweird.f32 %v802
        %vm824 = vweird.f32 %v818
        %vm825 = vmor %vm823, %vm824
        %v826 = vsel %vm825, %v818, %v822
        %v827 = vand.u32 2147483647, %v802
        %vm828 = vcmp.eq.f32.partialorder %v827, 8.507059e+37
        %v829 = vand.u32 %v802, 2147483648
        %v830 = vor.u32 1.1754944e-38, %v829
        %v831 = vsel %vm828, %v830, %v826
        %v832 = vmul.f32 %v800, %v831
        %v834 = vperm.slane %v743, 0
        %v836 = vadd.f32 %v817, %v834
        %v837 = vadd.f32 %v832, %v834
        %v838 = vpack.c.bf16 %v837, %v836
        %v839 = vld [vmem:[%s669] sm:$0xf]
        %v840 = vld [vmem:[%s669 + $0x4] sm:$0xf]
        %v841 = vld [vmem:[%s669 + $0x8] sm:$0xf]
        %v842 = vld [vmem:[%s669 + $0xc] sm:$0xf]
        %v843 = vld [vmem:[%s672] sm:$0x1]
        %v845 = vperm.slane %v843, 0
        %v851 = vunpack.c.l.b16 %v839
        %v852 = vunpack.c.l.b16 %v840
        %v853 = vunpack.c.l.b16 %v841
        %v854 = vunpack.c.l.b16 %v842
        %v855 = vpack.c.b16 %v852, %v851
        %v856 = vpack.c.b16 %v854, %v853
        %v860 = vsel %vm744, %v838, 0
        %862 = vmatpush.bf16.msra.mxu0 0
        %863 = vmatpush.bf16.msra.mxu0 0
        %864 = vmatpush.bf16.msra.mxu0 0
        %865 = vmatpush.bf16.msra.mxu0 0
        %866 = vmatpush.bf16.msra.mxu0 0
        %867 = vmatpush.bf16.msra.mxu0 0
        %868 = vmatpush.bf16.msra.mxu0 %v856
        %869 = vmatpush.bf16.msra.mxu0 %v855
        %870 = vmatmul.bf16.gmra.mxu0 %v860
        %v871 = vpop.f32.mrf.mxu0
        %v872 = vadd.f32 %v845, %v871
        %v873 = vpop.f32.mrf.mxu0
        %v874 = vadd.f32 %v845, %v873
        %875 = vdwg.mxu0
        %878 = vrot.lane.b32.xlu0 %v872, 120
        %v879 = vpop.permute.xlu0 %878
        %880 = vrot.lane.b32.xlu0 %v874, 120
        %v881 = vpop.permute.xlu0 %880
        %882 = vrot.lane.b32.xlu0 %v872, 112
        %v883 = vpop.permute.xlu0 %882
        %884 = vrot.lane.b32.xlu0 %v874, 112
        %v885 = vpop.permute.xlu0 %884
        %886 = vrot.lane.b32.xlu0 %v872, 104
        %v887 = vpop.permute.xlu0 %886
        %888 = vrot.lane.b32.xlu0 %v874, 104
        %v889 = vpop.permute.xlu0 %888
        %890 = vrot.lane.b32.xlu0 %v872, 96
        %v891 = vpop.permute.xlu0 %890
        %892 = vrot.lane.b32.xlu0 %v874, 96
        %v893 = vpop.permute.xlu0 %892
        %vm894 = vcmask 64512
        %v895 = vsel %vm894, %v872, 0
        %v897 = vsel %vm894, %v874, 0
        %v899 = vsel %vm894, %v891, 0
        %v901 = vsel %vm894, %v893, 0
        %903 = vmatpush.xpose.msra.mxu0 0.0
        %904 = vmatpush.xpose.msra.mxu0 0.0
        %905 = vmatpush.xpose.msra.mxu0 0.0
        %906 = vmatpush.xpose.msra.mxu0 0.0
        %907 = vmatpush.xpose.msra.mxu0 0.0
        %908 = vmatpush.xpose.msra.mxu0 0.0
        %909 = vmatpush.xpose.msra.mxu0 0.0
        %910 = vmatpush.xpose.msra.mxu0 0.0
        %911 = vmatpush.xpose.msra.mxu0 0.0
        %912 = vmatpush.xpose.msra.mxu0 0.0
        %913 = vmatpush.xpose.msra.mxu0 0.0
        %914 = vmatpush.xpose.msra.mxu0 0.0
        %915 = vmatpush.xpose.msra.mxu0 0.0
        %916 = vmatpush.xpose.msra.mxu0 0.0
        %917 = vmatpush.xpose.msra.mxu0 %v901
        %918 = vmatpush.xpose.msra.mxu0 %v899
        %919 = vmatmul.f32.gmra.mxu0 %v895
        %v920 = vpop.f32.mrf.mxu0
        %v921 = vadd.f32 %v740, %v920
        %922 = vmatmul.f32.gmra.mxu0 %v897
        %v923 = vpop.f32.mrf.mxu0
        %v924 = vadd.f32 %v741, %v923
        %925 = vdwg.mxu0
        %926 = vrot.lane.b32.xlu0 %v879, 96
        %v927 = vpop.permute.xlu0 %926
        %928 = vrot.lane.b32.xlu0 %v881, 96
        %v929 = vpop.permute.xlu0 %928
        %v930 = vsel %vm894, %v879, 0
        %v932 = vsel %vm894, %v881, 0
        %v934 = vsel %vm894, %v927, 0
        %v936 = vsel %vm894, %v929, 0
        %938 = vmatpush.xpose.msra.mxu0 0.0
        %939 = vmatpush.xpose.msra.mxu0 0.0
        %940 = vmatpush.xpose.msra.mxu0 0.0
        %941 = vmatpush.xpose.msra.mxu0 0.0
        %942 = vmatpush.xpose.msra.mxu0 0.0
        %943 = vmatpush.xpose.msra.mxu0 0.0
        %944 = vmatpush.xpose.msra.mxu0 0.0
        %945 = vmatpush.xpose.msra.mxu0 0.0
        %946 = vmatpush.xpose.msra.mxu0 0.0
        %947 = vmatpush.xpose.msra.mxu0 0.0
        %948 = vmatpush.xpose.msra.mxu0 0.0
        %949 = vmatpush.xpose.msra.mxu0 0.0
        %950 = vmatpush.xpose.msra.mxu0 0.0
        %951 = vmatpush.xpose.msra.mxu0 0.0
        %952 = vmatpush.xpose.msra.mxu0 %v936
        %953 = vmatpush.xpose.msra.mxu0 %v934
        %954 = vmatmul.f32.gmra.mxu0 %v930
        %v955 = vpop.f32.mrf.mxu0
        %v956 = vadd.f32 %v740, %v955
        %957 = vmatmul.f32.gmra.mxu0 %v932
        %v958 = vpop.f32.mrf.mxu0
        %v959 = vadd.f32 %v741, %v958
        %960 = vdwg.mxu0
        %961 = vrot.lane.b32.xlu0 %v883, 96
        %v962 = vpop.permute.xlu0 %961
        %963 = vrot.lane.b32.xlu0 %v885, 96
        %v964 = vpop.permute.xlu0 %963
        %v965 = vsel %vm894, %v883, 0
        %v967 = vsel %vm894, %v885, 0
        %v969 = vsel %vm894, %v962, 0
        %v971 = vsel %vm894, %v964, 0
        %973 = vmatpush.xpose.msra.mxu0 0.0
        %974 = vmatpush.xpose.msra.mxu0 0.0
        %975 = vmatpush.xpose.msra.mxu0 0.0
        %976 = vmatpush.xpose.msra.mxu0 0.0
        %977 = vmatpush.xpose.msra.mxu0 0.0
        %978 = vmatpush.xpose.msra.mxu0 0.0
        %979 = vmatpush.xpose.msra.mxu0 0.0
        %980 = vmatpush.xpose.msra.mxu0 0.0
        %981 = vmatpush.xpose.msra.mxu0 0.0
        %982 = vmatpush.xpose.msra.mxu0 0.0
        %983 = vmatpush.xpose.msra.mxu0 0.0
        %984 = vmatpush.xpose.msra.mxu0 0.0
        %985 = vmatpush.xpose.msra.mxu0 0.0
        %986 = vmatpush.xpose.msra.mxu0 0.0
        %987 = vmatpush.xpose.msra.mxu0 %v971
        %988 = vmatpush.xpose.msra.mxu0 %v969
        %989 = vmatmul.f32.gmra.mxu0 %v965
        %v990 = vpop.f32.mrf.mxu0
        %v991 = vadd.f32 %v740, %v990
        %992 = vmatmul.f32.gmra.mxu0 %v967
        %v993 = vpop.f32.mrf.mxu0
        %v994 = vadd.f32 %v741, %v993
        %995 = vdwg.mxu0
        %996 = vrot.lane.b32.xlu0 %v887, 96
        %v997 = vpop.permute.xlu0 %996
        %998 = vrot.lane.b32.xlu0 %v889, 96
        %v999 = vpop.permute.xlu0 %998
        %v1000 = vsel %vm894, %v887, 0
        %v1002 = vsel %vm894, %v889, 0
        %v1004 = vsel %vm894, %v997, 0
        %v1006 = vsel %vm894, %v999, 0
        %1008 = vmatpush.xpose.msra.mxu0 0.0
        %1009 = vmatpush.xpose.msra.mxu0 0.0
        %1010 = vmatpush.xpose.msra.mxu0 0.0
        %1011 = vmatpush.xpose.msra.mxu0 0.0
        %1012 = vmatpush.xpose.msra.mxu0 0.0
        %1013 = vmatpush.xpose.msra.mxu0 0.0
        %1014 = vmatpush.xpose.msra.mxu0 0.0
        %1015 = vmatpush.xpose.msra.mxu0 0.0
        %1016 = vmatpush.xpose.msra.mxu0 0.0
        %1017 = vmatpush.xpose.msra.mxu0 0.0
        %1018 = vmatpush.xpose.msra.mxu0 0.0
        %1019 = vmatpush.xpose.msra.mxu0 0.0
        %1020 = vmatpush.xpose.msra.mxu0 0.0
        %1021 = vmatpush.xpose.msra.mxu0 0.0
        %1022 = vmatpush.xpose.msra.mxu0 %v1006
        %1023 = vmatpush.xpose.msra.mxu0 %v1004
        %1024 = vmatmul.f32.gmra.mxu0 %v1000
        %v1025 = vpop.f32.mrf.mxu0
        %v1026 = vadd.f32 %v740, %v1025
        %1027 = vmatmul.f32.gmra.mxu0 %v1002
        %v1028 = vpop.f32.mrf.mxu0
        %v1029 = vadd.f32 %v741, %v1028
        %1030 = vdwg.mxu0
        %vm1031 = vcmask 130048
        %v1032 = vsel %vm1031, %v921, -inf
        %1033 = vmax.xlane.f32.xlu0 %v1032
        %v1034 = vpop.xlane.xlu0 %1033
        %v1035 = vsel %vm1031, %v924, -inf
        %1036 = vmax.xlane.f32.xlu0 %v1035
        %v1037 = vpop.xlane.xlu0 %1036
        %v1038 = vsel %vm1031, %v956, -inf
        %1039 = vmax.xlane.f32.xlu0 %v1038
        %v1040 = vpop.xlane.xlu0 %1039
        %v1041 = vsel %vm1031, %v959, -inf
        %1042 = vmax.xlane.f32.xlu0 %v1041
        %v1043 = vpop.xlane.xlu0 %1042
        %v1044 = vsel %vm1031, %v991, -inf
        %1045 = vmax.xlane.f32.xlu0 %v1044
        %v1046 = vpop.xlane.xlu0 %1045
        %v1047 = vsel %vm1031, %v994, -inf
        %1048 = vmax.xlane.f32.xlu0 %v1047
        %v1049 = vpop.xlane.xlu0 %1048
        %v1050 = vsel %vm1031, %v1026, -inf
        %1051 = vmax.xlane.f32.xlu0 %v1050
        %v1052 = vpop.xlane.xlu0 %1051
        %v1053 = vsel %vm1031, %v1029, -inf
        %1054 = vmax.xlane.f32.xlu0 %v1053
        %v1055 = vpop.xlane.xlu0 %1054
        %v1056 = vsub.f32 %v921, %v1034
        %v1057 = vsub.f32 %v924, %v1037
        %v1058 = vsub.f32 %v956, %v1040
        %v1059 = vsub.f32 %v959, %v1043
        %v1060 = vsub.f32 %v991, %v1046
        %v1061 = vsub.f32 %v994, %v1049
        %v1062 = vsub.f32 %v1026, %v1052
        %v1063 = vsub.f32 %v1029, %v1055
        %v1064 = vmul.f32 %v1056, 1.442695
        %v1065 = vpow.pop %v1064
        %v1066 = vmul.f32 %v1057, 1.442695
        %v1067 = vpow.pop %v1066
        %v1068 = vmul.f32 %v1058, 1.442695
        %v1069 = vpow.pop %v1068
        %v1070 = vmul.f32 %v1059, 1.442695
        %v1071 = vpow.pop %v1070
        %v1072 = vmul.f32 %v1060, 1.442695
        %v1073 = vpow.pop %v1072
        %v1074 = vmul.f32 %v1061, 1.442695
        %v1075 = vpow.pop %v1074
        %v1076 = vmul.f32 %v1062, 1.442695
        %v1077 = vpow.pop %v1076
        %v1078 = vmul.f32 %v1063, 1.442695
        %v1079 = vpow.pop %v1078
        %v1080 = vsel %vm1031, %v1065, 0.0
        %1081 = vadd.xlane.f32.xlu0 %v1080
        %v1082 = vpop.xlane.xlu0 %1081
        %v1083 = vsel %vm1031, %v1067, 0.0
        %1084 = vadd.xlane.f32.xlu0 %v1083
        %v1085 = vpop.xlane.xlu0 %1084
        %v1086 = vsel %vm1031, %v1069, 0.0
        %1087 = vadd.xlane.f32.xlu0 %v1086
        %v1088 = vpop.xlane.xlu0 %1087
        %v1089 = vsel %vm1031, %v1071, 0.0
        %1090 = vadd.xlane.f32.xlu0 %v1089
        %v1091 = vpop.xlane.xlu0 %1090
        %v1092 = vsel %vm1031, %v1073, 0.0
        %1093 = vadd.xlane.f32.xlu0 %v1092
        %v1094 = vpop.xlane.xlu0 %1093
        %v1095 = vsel %vm1031, %v1075, 0.0
        %1096 = vadd.xlane.f32.xlu0 %v1095
        %v1097 = vpop.xlane.xlu0 %1096
        %v1098 = vsel %vm1031, %v1077, 0.0
        %1099 = vadd.xlane.f32.xlu0 %v1098
        %v1100 = vpop.xlane.xlu0 %1099
        %v1101 = vsel %vm1031, %v1079, 0.0
        %1102 = vadd.xlane.f32.xlu0 %v1101
        %v1103 = vpop.xlane.xlu0 %1102
        %v1104 = vrcp.pop %v1082
        %v1105 = vmul.f32 %v1082, %v1104
        %v1106 = vsub.f32 1.0, %v1105
        %v1107 = vmul.f32 %v1104, %v1106
        %v1108 = vadd.f32 %v1104, %v1107
        %vm1109 = vweird.f32 %v1082
        %vm1110 = vweird.f32 %v1104
        %vm1111 = vmor %vm1109, %vm1110
        %v1112 = vsel %vm1111, %v1104, %v1108
        %v1113 = vand.u32 2147483647, %v1082
        %vm1114 = vcmp.eq.f32.partialorder %v1113, 8.507059e+37
        %v1115 = vand.u32 %v1082, 2147483648
        %v1116 = vor.u32 1.1754944e-38, %v1115
        %v1117 = vsel %vm1114, %v1116, %v1112
        %v1118 = vmul.f32 %v1065, %v1117
        %v1119 = vrcp.pop %v1085
        %v1120 = vmul.f32 %v1085, %v1119
        %v1121 = vsub.f32 1.0, %v1120
        %v1122 = vmul.f32 %v1119, %v1121
        %v1123 = vadd.f32 %v1119, %v1122
        %vm1124 = vweird.f32 %v1085
        %vm1125 = vweird.f32 %v1119
        %vm1126 = vmor %vm1124, %vm1125
        %v1127 = vsel %vm1126, %v1119, %v1123
        %v1128 = vand.u32 2147483647, %v1085
        %vm1129 = vcmp.eq.f32.partialorder %v1128, 8.507059e+37
        %v1130 = vand.u32 %v1085, 2147483648
        %v1131 = vor.u32 1.1754944e-38, %v1130
        %v1132 = vsel %vm1129, %v1131, %v1127
        %v1133 = vmul.f32 %v1067, %v1132
        %v1134 = vrcp.pop %v1088
        %v1135 = vmul.f32 %v1088, %v1134
        %v1136 = vsub.f32 1.0, %v1135
        %v1137 = vmul.f32 %v1134, %v1136
        %v1138 = vadd.f32 %v1134, %v1137
        %vm1139 = vweird.f32 %v1088
        %vm1140 = vweird.f32 %v1134
        %vm1141 = vmor %vm1139, %vm1140
        %v1142 = vsel %vm1141, %v1134, %v1138
        %v1143 = vand.u32 2147483647, %v1088
        %vm1144 = vcmp.eq.f32.partialorder %v1143, 8.507059e+37
        %v1145 = vand.u32 %v1088, 2147483648
        %v1146 = vor.u32 1.1754944e-38, %v1145
        %v1147 = vsel %vm1144, %v1146, %v1142
        %v1148 = vmul.f32 %v1069, %v1147
        %v1149 = vrcp.pop %v1091
        %v1150 = vmul.f32 %v1091, %v1149
        %v1151 = vsub.f32 1.0, %v1150
        %v1152 = vmul.f32 %v1149, %v1151
        %v1153 = vadd.f32 %v1149, %v1152
        %vm1154 = vweird.f32 %v1091
        %vm1155 = vweird.f32 %v1149
        %vm1156 = vmor %vm1154, %vm1155
        %v1157 = vsel %vm1156, %v1149, %v1153
        %v1158 = vand.u32 2147483647, %v1091
        %vm1159 = vcmp.eq.f32.partialorder %v1158, 8.507059e+37
        %v1160 = vand.u32 %v1091, 2147483648
        %v1161 = vor.u32 1.1754944e-38, %v1160
        %v1162 = vsel %vm1159, %v1161, %v1157
        %v1163 = vmul.f32 %v1071, %v1162
        %v1164 = vrcp.pop %v1094
        %v1165 = vmul.f32 %v1094, %v1164
        %v1166 = vsub.f32 1.0, %v1165
        %v1167 = vmul.f32 %v1164, %v1166
        %v1168 = vadd.f32 %v1164, %v1167
        %vm1169 = vweird.f32 %v1094
        %vm1170 = vweird.f32 %v1164
        %vm1171 = vmor %vm1169, %vm1170
        %v1172 = vsel %vm1171, %v1164, %v1168
        %v1173 = vand.u32 2147483647, %v1094
        %vm1174 = vcmp.eq.f32.partialorder %v1173, 8.507059e+37
        %v1175 = vand.u32 %v1094, 2147483648
        %v1176 = vor.u32 1.1754944e-38, %v1175
        %v1177 = vsel %vm1174, %v1176, %v1172
        %v1178 = vmul.f32 %v1073, %v1177
        %v1179 = vrcp.pop %v1097
        %v1180 = vmul.f32 %v1097, %v1179
        %v1181 = vsub.f32 1.0, %v1180
        %v1182 = vmul.f32 %v1179, %v1181
        %v1183 = vadd.f32 %v1179, %v1182
        %vm1184 = vweird.f32 %v1097
        %vm1185 = vweird.f32 %v1179
        %vm1186 = vmor %vm1184, %vm1185
        %v1187 = vsel %vm1186, %v1179, %v1183
        %v1188 = vand.u32 2147483647, %v1097
        %vm1189 = vcmp.eq.f32.partialorder %v1188, 8.507059e+37
        %v1190 = vand.u32 %v1097, 2147483648
        %v1191 = vor.u32 1.1754944e-38, %v1190
        %v1192 = vsel %vm1189, %v1191, %v1187
        %v1193 = vmul.f32 %v1075, %v1192
        %v1194 = vrcp.pop %v1100
        %v1195 = vmul.f32 %v1100, %v1194
        %v1196 = vsub.f32 1.0, %v1195
        %v1197 = vmul.f32 %v1194, %v1196
        %v1198 = vadd.f32 %v1194, %v1197
        %vm1199 = vweird.f32 %v1100
        %vm1200 = vweird.f32 %v1194
        %vm1201 = vmor %vm1199, %vm1200
        %v1202 = vsel %vm1201, %v1194, %v1198
        %v1203 = vand.u32 2147483647, %v1100
        %vm1204 = vcmp.eq.f32.partialorder %v1203, 8.507059e+37
        %v1205 = vand.u32 %v1100, 2147483648
        %v1206 = vor.u32 1.1754944e-38, %v1205
        %v1207 = vsel %vm1204, %v1206, %v1202
        %v1208 = vmul.f32 %v1077, %v1207
        %v1209 = vrcp.pop %v1103
        %v1210 = vmul.f32 %v1103, %v1209
        %v1211 = vsub.f32 1.0, %v1210
        %v1212 = vmul.f32 %v1209, %v1211
        %v1213 = vadd.f32 %v1209, %v1212
        %vm1214 = vweird.f32 %v1103
        %vm1215 = vweird.f32 %v1209
        %vm1216 = vmor %vm1214, %vm1215
        %v1217 = vsel %vm1216, %v1209, %v1213
        %v1218 = vand.u32 2147483647, %v1103
        %vm1219 = vcmp.eq.f32.partialorder %v1218, 8.507059e+37
        %v1220 = vand.u32 %v1103, 2147483648
        %v1221 = vor.u32 1.1754944e-38, %v1220
        %v1222 = vsel %vm1219, %v1221, %v1217
        %v1223 = vmul.f32 %v1079, %v1222
        %1224 = vrot.lane.b32.xlu0 %v872, 64
        %v1225 = vpop.permute.xlu0 %1224
        %1226 = vrot.lane.b32.xlu0 %v874, 64
        %v1227 = vpop.permute.xlu0 %1226
        %v1231 = vsel %vm1031, %v1118, 0
        %v1234 = vsel %vm1031, %v1133, 0
        %1236 = vmatpush.msra.mxu0 0.0
        %1237 = vmatpush.msra.mxu0 0.0
        %1238 = vmatpush.msra.mxu0 0.0
        %1239 = vmatpush.msra.mxu0 0.0
        %1240 = vmatpush.msra.mxu0 0.0
        %1241 = vmatpush.msra.mxu0 0.0
        %1242 = vmatpush.msra.mxu0 0.0
        %1243 = vmatpush.msra.mxu0 0.0
        %1244 = vmatpush.msra.mxu0 0.0
        %1245 = vmatpush.msra.mxu0 0.0
        %1246 = vmatpush.msra.mxu0 0.0
        %1247 = vmatpush.msra.mxu0 0.0
        %1248 = vmatpush.msra.mxu0 0.0
        %1249 = vmatpush.msra.mxu0 0.0
        %1250 = vmatpush.msra.mxu0 %v1227
        %1251 = vmatpush.msra.mxu0 %v1225
        %1252 = vmatmul.f32.gmra.mxu0 %v1231
        %v1253 = vpop.f32.mrf.mxu0
        %v1254 = vadd.f32 0.0, %v1253
        %1255 = vmatmul.f32.gmra.mxu0 %v1234
        %v1256 = vpop.f32.mrf.mxu0
        %v1257 = vadd.f32 0.0, %v1256
        %1258 = vdwg.mxu0
        %1259 = vrot.lane.b32.xlu0 %v879, 64
        %v1260 = vpop.permute.xlu0 %1259
        %1261 = vrot.lane.b32.xlu0 %v881, 64
        %v1262 = vpop.permute.xlu0 %1261
        %v1266 = vsel %vm1031, %v1148, 0
        %v1269 = vsel %vm1031, %v1163, 0
        %1271 = vmatpush.msra.mxu0 0.0
        %1272 = vmatpush.msra.mxu0 0.0
        %1273 = vmatpush.msra.mxu0 0.0
        %1274 = vmatpush.msra.mxu0 0.0
        %1275 = vmatpush.msra.mxu0 0.0
        %1276 = vmatpush.msra.mxu0 0.0
        %1277 = vmatpush.msra.mxu0 0.0
        %1278 = vmatpush.msra.mxu0 0.0
        %1279 = vmatpush.msra.mxu0 0.0
        %1280 = vmatpush.msra.mxu0 0.0
        %1281 = vmatpush.msra.mxu0 0.0
        %1282 = vmatpush.msra.mxu0 0.0
        %1283 = vmatpush.msra.mxu0 0.0
        %1284 = vmatpush.msra.mxu0 0.0
        %1285 = vmatpush.msra.mxu0 %v1262
        %1286 = vmatpush.msra.mxu0 %v1260
        %1287 = vmatmul.f32.gmra.mxu0 %v1266
        %v1288 = vpop.f32.mrf.mxu0
        %v1289 = vadd.f32 0.0, %v1288
        %1290 = vmatmul.f32.gmra.mxu0 %v1269
        %v1291 = vpop.f32.mrf.mxu0
        %v1292 = vadd.f32 0.0, %v1291
        %1293 = vdwg.mxu0
        %1294 = vrot.lane.b32.xlu0 %v883, 64
        %v1295 = vpop.permute.xlu0 %1294
        %1296 = vrot.lane.b32.xlu0 %v885, 64
        %v1297 = vpop.permute.xlu0 %1296
        %v1301 = vsel %vm1031, %v1178, 0
        %v1304 = vsel %vm1031, %v1193, 0
        %1306 = vmatpush.msra.mxu0 0.0
        %1307 = vmatpush.msra.mxu0 0.0
        %1308 = vmatpush.msra.mxu0 0.0
        %1309 = vmatpush.msra.mxu0 0.0
        %1310 = vmatpush.msra.mxu0 0.0
        %1311 = vmatpush.msra.mxu0 0.0
        %1312 = vmatpush.msra.mxu0 0.0
        %1313 = vmatpush.msra.mxu0 0.0
        %1314 = vmatpush.msra.mxu0 0.0
        %1315 = vmatpush.msra.mxu0 0.0
        %1316 = vmatpush.msra.mxu0 0.0
        %1317 = vmatpush.msra.mxu0 0.0
        %1318 = vmatpush.msra.mxu0 0.0
        %1319 = vmatpush.msra.mxu0 0.0
        %1320 = vmatpush.msra.mxu0 %v1297
        %1321 = vmatpush.msra.mxu0 %v1295
        %1322 = vmatmul.f32.gmra.mxu0 %v1301
        %v1323 = vpop.f32.mrf.mxu0
        %v1324 = vadd.f32 0.0, %v1323
        %1325 = vmatmul.f32.gmra.mxu0 %v1304
        %v1326 = vpop.f32.mrf.mxu0
        %v1327 = vadd.f32 0.0, %v1326
        %1328 = vdwg.mxu0
        %1329 = vrot.lane.b32.xlu0 %v887, 64
        %v1330 = vpop.permute.xlu0 %1329
        %1331 = vrot.lane.b32.xlu0 %v889, 64
        %v1332 = vpop.permute.xlu0 %1331
        %v1336 = vsel %vm1031, %v1208, 0
        %v1339 = vsel %vm1031, %v1223, 0
        %1341 = vmatpush.msra.mxu0 0.0
        %1342 = vmatpush.msra.mxu0 0.0
        %1343 = vmatpush.msra.mxu0 0.0
        %1344 = vmatpush.msra.mxu0 0.0
        %1345 = vmatpush.msra.mxu0 0.0
        %1346 = vmatpush.msra.mxu0 0.0
        %1347 = vmatpush.msra.mxu0 0.0
        %1348 = vmatpush.msra.mxu0 0.0
        %1349 = vmatpush.msra.mxu0 0.0
        %1350 = vmatpush.msra.mxu0 0.0
        %1351 = vmatpush.msra.mxu0 0.0
        %1352 = vmatpush.msra.mxu0 0.0
        %1353 = vmatpush.msra.mxu0 0.0
        %1354 = vmatpush.msra.mxu0 0.0
        %1355 = vmatpush.msra.mxu0 %v1332
        %1356 = vmatpush.msra.mxu0 %v1330
        %1357 = vmatmul.f32.gmra.mxu0 %v1336
        %v1358 = vpop.f32.mrf.mxu0
        %v1359 = vadd.f32 0.0, %v1358
        %1360 = vmatmul.f32.gmra.mxu0 %v1339
        %v1361 = vpop.f32.mrf.mxu0
        %v1362 = vadd.f32 0.0, %v1361
        %1363 = vdwg.mxu0
        %1366 = vrot.lane.b32.xlu0 %v1289, 8
        %v1367 = vpop.permute.xlu0 %1366
        %1368 = vrot.lane.b32.xlu0 %v1292, 8
        %v1369 = vpop.permute.xlu0 %1368
        %1374 = vrot.lane.b32.xlu0 %v1324, 16
        %v1375 = vpop.permute.xlu0 %1374
        %1376 = vrot.lane.b32.xlu0 %v1327, 16
        %v1377 = vpop.permute.xlu0 %1376
        %1382 = vrot.lane.b32.xlu0 %v1359, 24
        %v1383 = vpop.permute.xlu0 %1382
        %1384 = vrot.lane.b32.xlu0 %v1362, 24
        %v1385 = vpop.permute.xlu0 %1384
        %v1388 = vsel %vm894, %v1254, %v1367
        %v1389 = vsel %vm894, %v1257, %v1369
        %v1390 = vsel %vm1031, %v1388, %v1375
        %v1391 = vsel %vm1031, %v1389, %v1377
        %vm1392 = vcmask 195584
        %v1393 = vsel %vm1392, %v1390, %v1383
        %v1394 = vsel %vm1392, %v1391, %v1385
        %v1395 = vpack.c.bf16 %v1394, %v1393
        %v1396 = vld [vmem:[%s677] sm:$0xf]
        %v1397 = vld [vmem:[%s677 + $0x4] sm:$0xf]
        %v1398 = vld [vmem:[%s677 + $0x8] sm:$0xf]
        %v1399 = vld [vmem:[%s677 + $0xc] sm:$0xf]
        %v1400 = vld [vmem:[%s680] sm:$0x1]
        %v1402 = vperm.slane %v1400, 0
        %v1408 = vunpack.c.l.b16 %v1396
        %v1409 = vunpack.c.l.b16 %v1397
        %v1410 = vunpack.c.l.b16 %v1398
        %v1411 = vunpack.c.l.b16 %v1399
        %v1412 = vpack.c.b16 %v1409, %v1408
        %v1413 = vpack.c.b16 %v1411, %v1410
        %v1417 = vsel %vm744, %v1395, 0
        %1419 = vmatpush.bf16.msra.mxu0 0
        %1420 = vmatpush.bf16.msra.mxu0 0
        %1421 = vmatpush.bf16.msra.mxu0 0
        %1422 = vmatpush.bf16.msra.mxu0 0
        %1423 = vmatpush.bf16.msra.mxu0 0
        %1424 = vmatpush.bf16.msra.mxu0 0
        %1425 = vmatpush.bf16.msra.mxu0 %v1413
        %1426 = vmatpush.bf16.msra.mxu0 %v1412
        %1427 = vmatmul.bf16.gmra.mxu0 %v1417
        %v1428 = vpop.f32.mrf.mxu0
        %v1429 = vadd.f32 %v1402, %v1428
        %v1430 = vpop.f32.mrf.mxu0
        %v1431 = vadd.f32 %v1402, %v1430
        %1432 = vdwg.mxu0
        %v1433 = vadd.f32 %v720, %v1429
        %v1434 = vadd.f32 %v721, %v1431
        %v1435 = vld [vmem:[%s689] sm:$0x1]
        %v1436 = vld [vmem:[%s692] sm:$0x1]
        %v1437 = vsel %vm744, %v1433, 0.0
        %1438 = vadd.xlane.f32.xlu0 %v1437
        %v1439 = vpop.xlane.xlu0 %1438
        %v1440 = vsel %vm744, %v1434, 0.0
        %1441 = vadd.xlane.f32.xlu0 %v1440
        %v1442 = vpop.xlane.xlu0 %1441
        %v1443 = vmul.f32 %v1439, %v757
        %v1444 = vmul.f32 %v1442, %v757
        %v1445 = vsub.f32 %v1433, %v1443
        %v1446 = vsub.f32 %v1434, %v1444
        %v1447 = vmul.f32 %v1445, %v1445
        %v1448 = vmul.f32 %v1446, %v1446
        %v1449 = vsel %vm744, %v1447, 0.0
        %1450 = vadd.xlane.f32.xlu0 %v1449
        %v1451 = vpop.xlane.xlu0 %1450
        %v1452 = vsel %vm744, %v1448, 0.0
        %1453 = vadd.xlane.f32.xlu0 %v1452
        %v1454 = vpop.xlane.xlu0 %1453
        %v1455 = vmul.f32 %v1451, 0.032258064
        %v1456 = vmul.f32 %v1454, 0.032258064
        %v1457 = vrsqrt.pop %v1455
        %v1458 = vmul.f32 %v1457, %v1455
        %v1459 = vmul.f32 %v1458, %v1457
        %v1460 = vmul.f32 0.5, %v1459
        %v1461 = vsub.f32 1.5, %v1460
        %v1462 = vmul.f32 %v1457, %v1461
        %v1463 = vmul.f32 %v1455, %v1462
        %vm1464 = vcmp.eq.f32.partialorder %v1455, inf
        %v1465 = vsel %vm1464, %v1455, %v1463
        %vm1466 = vcmp.eq.f32.partialorder %v1455, 0.0
        %v1467 = vand.u32 %v1455, 2147483648
        %v1468 = vsel %vm1466, %v1467, %v1465
        %v1469 = vrsqrt.pop %v1456
        %v1470 = vmul.f32 %v1469, %v1456
        %v1471 = vmul.f32 %v1470, %v1469
        %v1472 = vmul.f32 0.5, %v1471
        %v1473 = vsub.f32 1.5, %v1472
        %v1474 = vmul.f32 %v1469, %v1473
        %v1475 = vmul.f32 %v1456, %v1474
        %vm1476 = vcmp.eq.f32.partialorder %v1456, inf
        %v1477 = vsel %vm1476, %v1456, %v1475
        %vm1478 = vcmp.eq.f32.partialorder %v1456, 0.0
        %v1479 = vand.u32 %v1456, 2147483648
        %v1480 = vsel %vm1478, %v1479, %v1477
        %v1482 = vperm.slane %v1435, 0
        %v1484 = vmul.f32 %v1482, %v1445
        %v1485 = vmul.f32 %v1482, %v1446
        %v1486 = vadd.f32 %v1468, 1e-06
        %v1487 = vadd.f32 %v1480, 1e-06
        %v1488 = vrcp.pop %v1486
        %v1489 = vmul.f32 %v1486, %v1488
        %v1490 = vsub.f32 1.0, %v1489
        %v1491 = vmul.f32 %v1488, %v1490
        %v1492 = vadd.f32 %v1488, %v1491
        %vm1493 = vweird.f32 %v1486
        %vm1494 = vweird.f32 %v1488
        %vm1495 = vmor %vm1493, %vm1494
        %v1496 = vsel %vm1495, %v1488, %v1492
        %v1497 = vand.u32 2147483647, %v1486
        %vm1498 = vcmp.eq.f32.partialorder %v1497, 8.507059e+37
        %v1499 = vand.u32 %v1486, 2147483648
        %v1500 = vor.u32 1.1754944e-38, %v1499
        %v1501 = vsel %vm1498, %v1500, %v1496
        %v1502 = vmul.f32 %v1484, %v1501
        %v1503 = vrcp.pop %v1487
        %v1504 = vmul.f32 %v1487, %v1503
        %v1505 = vsub.f32 1.0, %v1504
        %v1506 = vmul.f32 %v1503, %v1505
        %v1507 = vadd.f32 %v1503, %v1506
        %vm1508 = vweird.f32 %v1487
        %vm1509 = vweird.f32 %v1503
        %vm1510 = vmor %vm1508, %vm1509
        %v1511 = vsel %vm1510, %v1503, %v1507
        %v1512 = vand.u32 2147483647, %v1487
        %vm1513 = vcmp.eq.f32.partialorder %v1512, 8.507059e+37
        %v1514 = vand.u32 %v1487, 2147483648
        %v1515 = vor.u32 1.1754944e-38, %v1514
        %v1516 = vsel %vm1513, %v1515, %v1511
        %v1517 = vmul.f32 %v1485, %v1516
        %v1519 = vperm.slane %v1436, 0
        %v1521 = vadd.f32 %v1502, %v1519
        %v1522 = vadd.f32 %v1517, %v1519
        %v1523 = vpack.c.bf16 %v1522, %v1521
        %v1524 = vld [vmem:[%s697] sm:$0xff]
        %v1525 = vld [vmem:[%s697 + $0x8] sm:$0xff]
        %v1526 = vld [vmem:[%s697 + $0x10] sm:$0xff]
        %v1527 = vld [vmem:[%s697 + $0x18] sm:$0xff]
        %v1528 = vld [vmem:[%s697 + $0x20] sm:$0xff]
        %v1529 = vld [vmem:[%s697 + $0x28] sm:$0xff]
        %v1530 = vld [vmem:[%s697 + $0x30] sm:$0xff]
        %v1531 = vld [vmem:[%s697 + $0x38] sm:$0xff]
        %v1532 = vld [vmem:[%s697 + $0x40] sm:$0xff]
        %v1533 = vld [vmem:[%s697 + $0x48] sm:$0xff]
        %v1534 = vld [vmem:[%s697 + $0x50] sm:$0xff]
        %v1535 = vld [vmem:[%s697 + $0x58] sm:$0xff]
        %v1536 = vld [vmem:[%s697 + $0x60] sm:$0xff]
        %v1537 = vld [vmem:[%s697 + $0x68] sm:$0xff]
        %v1538 = vld [vmem:[%s697 + $0x70] sm:$0xff]
        %v1539 = vld [vmem:[%s697 + $0x78] sm:$0xff]
        %v1540 = vld [vmem:[%s697 + $0x80] sm:$0xff]
        %v1541 = vld [vmem:[%s697 + $0x88] sm:$0xff]
        %v1542 = vld [vmem:[%s697 + $0x90] sm:$0xff]
        %v1543 = vld [vmem:[%s697 + $0x98] sm:$0xff]
        %v1544 = vld [vmem:[%s697 + $0xa0] sm:$0xff]
        %v1545 = vld [vmem:[%s697 + $0xa8] sm:$0xff]
        %v1546 = vld [vmem:[%s697 + $0xb0] sm:$0xff]
        %v1547 = vld [vmem:[%s697 + $0xb8] sm:$0xff]
        %v1548 = vld [vmem:[%s697 + $0xc0] sm:$0xff]
        %v1549 = vld [vmem:[%s697 + $0xc8] sm:$0xff]
        %v1550 = vld [vmem:[%s697 + $0xd0] sm:$0xff]
        %v1551 = vld [vmem:[%s697 + $0xd8] sm:$0xff]
        %v1552 = vld [vmem:[%s697 + $0xe0] sm:$0xff]
        %v1553 = vld [vmem:[%s697 + $0xe8] sm:$0xff]
        %v1554 = vld [vmem:[%s697 + $0xf0] sm:$0xff]
        %v1555 = vld [vmem:[%s697 + $0xf8] sm:$0xff]
        %v1556 = vld [vmem:[%s701] sm:$0xff]
        %v1557 = vld [vmem:[%s701 + $0x8] sm:$0xff]
        %v1560 = vperm.slane %v1556, 0
        %v1561 = vperm.slane %v1556, 1
        %v1562 = vperm.slane %v1556, 2
        %v1563 = vperm.slane %v1556, 3
        %v1564 = vperm.slane %v1556, 4
        %v1565 = vperm.slane %v1556, 5
        %v1566 = vperm.slane %v1556, 6
        %v1567 = vperm.slane %v1556, 7
        %v1568 = vperm.slane %v1557, 0
        %v1569 = vperm.slane %v1557, 1
        %v1570 = vperm.slane %v1557, 2
        %v1571 = vperm.slane %v1557, 3
        %v1572 = vperm.slane %v1557, 4
        %v1573 = vperm.slane %v1557, 5
        %v1574 = vperm.slane %v1557, 6
        %v1575 = vperm.slane %v1557, 7
        %v1624 = vunpack.c.l.b16 %v1524
        %v1625 = vunpack.c.h.b16 %v1524
        %v1626 = vunpack.c.l.b16 %v1525
        %v1627 = vunpack.c.h.b16 %v1525
        %v1628 = vunpack.c.l.b16 %v1526
        %v1629 = vunpack.c.h.b16 %v1526
        %v1630 = vunpack.c.l.b16 %v1527
        %v1631 = vunpack.c.h.b16 %v1527
        %v1632 = vunpack.c.l.b16 %v1528
        %v1633 = vunpack.c.h.b16 %v1528
        %v1634 = vunpack.c.l.b16 %v1529
        %v1635 = vunpack.c.h.b16 %v1529
        %v1636 = vunpack.c.l.b16 %v1530
        %v1637 = vunpack.c.h.b16 %v1530
        %v1638 = vunpack.c.l.b16 %v1531
        %v1639 = vunpack.c.h.b16 %v1531
        %v1640 = vunpack.c.l.b16 %v1532
        %v1641 = vunpack.c.h.b16 %v1532
        %v1642 = vunpack.c.l.b16 %v1533
        %v1643 = vunpack.c.h.b16 %v1533
        %v1644 = vunpack.c.l.b16 %v1534
        %v1645 = vunpack.c.h.b16 %v1534
        %v1646 = vunpack.c.l.b16 %v1535
        %v1647 = vunpack.c.h.b16 %v1535
        %v1648 = vunpack.c.l.b16 %v1536
        %v1649 = vunpack.c.h.b16 %v1536
        %v1650 = vunpack.c.l.b16 %v1537
        %v1651 = vunpack.c.h.b16 %v1537
        %v1652 = vunpack.c.l.b16 %v1538
        %v1653 = vunpack.c.h.b16 %v1538
        %v1654 = vunpack.c.l.b16 %v1539
        %v1655 = vunpack.c.h.b16 %v1539
        %v1656 = vunpack.c.l.b16 %v1540
        %v1657 = vunpack.c.h.b16 %v1540
        %v1658 = vunpack.c.l.b16 %v1541
        %v1659 = vunpack.c.h.b16 %v1541
        %v1660 = vunpack.c.l.b16 %v1542
        %v1661 = vunpack.c.h.b16 %v1542
        %v1662 = vunpack.c.l.b16 %v1543
        %v1663 = vunpack.c.h.b16 %v1543
        %v1664 = vunpack.c.l.b16 %v1544
        %v1665 = vunpack.c.h.b16 %v1544
        %v1666 = vunpack.c.l.b16 %v1545
        %v1667 = vunpack.c.h.b16 %v1545
        %v1668 = vunpack.c.l.b16 %v1546
        %v1669 = vunpack.c.h.b16 %v1546
        %v1670 = vunpack.c.l.b16 %v1547
        %v1671 = vunpack.c.h.b16 %v1547
        %v1672 = vunpack.c.l.b16 %v1548
        %v1673 = vunpack.c.h.b16 %v1548
        %v1674 = vunpack.c.l.b16 %v1549
        %v1675 = vunpack.c.h.b16 %v1549
        %v1676 = vunpack.c.l.b16 %v1550
        %v1677 = vunpack.c.h.b16 %v1550
        %v1678 = vunpack.c.l.b16 %v1551
        %v1679 = vunpack.c.h.b16 %v1551
        %v1680 = vunpack.c.l.b16 %v1552
        %v1681 = vunpack.c.h.b16 %v1552
        %v1682 = vunpack.c.l.b16 %v1553
        %v1683 = vunpack.c.h.b16 %v1553
        %v1684 = vunpack.c.l.b16 %v1554
        %v1685 = vunpack.c.h.b16 %v1554
        %v1686 = vunpack.c.l.b16 %v1555
        %v1687 = vunpack.c.h.b16 %v1555
        %v1688 = vpack.c.b16 %v1640, %v1624
        %v1689 = vpack.c.b16 %v1641, %v1625
        %v1690 = vpack.c.b16 %v1642, %v1626
        %v1691 = vpack.c.b16 %v1643, %v1627
        %v1692 = vpack.c.b16 %v1644, %v1628
        %v1693 = vpack.c.b16 %v1645, %v1629
        %v1694 = vpack.c.b16 %v1646, %v1630
        %v1695 = vpack.c.b16 %v1647, %v1631
        %v1696 = vpack.c.b16 %v1648, %v1632
        %v1697 = vpack.c.b16 %v1649, %v1633
        %v1698 = vpack.c.b16 %v1650, %v1634
        %v1699 = vpack.c.b16 %v1651, %v1635
        %v1700 = vpack.c.b16 %v1652, %v1636
        %v1701 = vpack.c.b16 %v1653, %v1637
        %v1702 = vpack.c.b16 %v1654, %v1638
        %v1703 = vpack.c.b16 %v1655, %v1639
        %v1704 = vpack.c.b16 %v1672, %v1656
        %v1705 = vpack.c.b16 %v1673, %v1657
        %v1706 = vpack.c.b16 %v1674, %v1658
        %v1707 = vpack.c.b16 %v1675, %v1659
        %v1708 = vpack.c.b16 %v1676, %v1660
        %v1709 = vpack.c.b16 %v1677, %v1661
        %v1710 = vpack.c.b16 %v1678, %v1662
        %v1711 = vpack.c.b16 %v1679, %v1663
        %v1712 = vpack.c.b16 %v1680, %v1664
        %v1713 = vpack.c.b16 %v1681, %v1665
        %v1714 = vpack.c.b16 %v1682, %v1666
        %v1715 = vpack.c.b16 %v1683, %v1667
        %v1716 = vpack.c.b16 %v1684, %v1668
        %v1717 = vpack.c.b16 %v1685, %v1669
        %v1718 = vpack.c.b16 %v1686, %v1670
        %v1719 = vpack.c.b16 %v1687, %v1671
        %v1753 = vsel %vm744, %v1523, 0
        %1755 = vmatpush.bf16.msra.mxu0 0
        %1756 = vmatpush.bf16.msra.mxu0 0
        %1757 = vmatpush.bf16.msra.mxu0 0
        %1758 = vmatpush.bf16.msra.mxu0 0
        %1759 = vmatpush.bf16.msra.mxu0 0
        %1760 = vmatpush.bf16.msra.mxu0 0
        %1761 = vmatpush.bf16.msra.mxu0 %v1704
        %1762 = vmatpush.bf16.msra.mxu0 %v1688
        %1763 = vmatmul.bf16.gmra.mxu0 %v1753
        %v1764 = vpop.f32.mrf.mxu0
        %v1765 = vadd.f32 %v1560, %v1764
        %v1766 = vpop.f32.mrf.mxu0
        %v1767 = vadd.f32 %v1560, %v1766
        %1768 = vdwg.mxu0
        %1769 = vmatpush.bf16.msra.mxu0 0
        %1770 = vmatpush.bf16.msra.mxu0 0
        %1771 = vmatpush.bf16.msra.mxu0 0
        %1772 = vmatpush.bf16.msra.mxu0 0
        %1773 = vmatpush.bf16.msra.mxu0 0
        %1774 = vmatpush.bf16.msra.mxu0 0
        %1775 = vmatpush.bf16.msra.mxu0 %v1705
        %1776 = vmatpush.bf16.msra.mxu0 %v1689
        %1777 = vmatmul.bf16.gmra.mxu0 %v1753
        %v1778 = vpop.f32.mrf.mxu0
        %v1779 = vadd.f32 %v1561, %v1778
        %v1780 = vpop.f32.mrf.mxu0
        %v1781 = vadd.f32 %v1561, %v1780
        %1782 = vdwg.mxu0
        %1783 = vmatpush.bf16.msra.mxu0 0
        %1784 = vmatpush.bf16.msra.mxu0 0
        %1785 = vmatpush.bf16.msra.mxu0 0
        %1786 = vmatpush.bf16.msra.mxu0 0
        %1787 = vmatpush.bf16.msra.mxu0 0
        %1788 = vmatpush.bf16.msra.mxu0 0
        %1789 = vmatpush.bf16.msra.mxu0 %v1706
        %1790 = vmatpush.bf16.msra.mxu0 %v1690
        %1791 = vmatmul.bf16.gmra.mxu0 %v1753
        %v1792 = vpop.f32.mrf.mxu0
        %v1793 = vadd.f32 %v1562, %v1792
        %v1794 = vpop.f32.mrf.mxu0
        %v1795 = vadd.f32 %v1562, %v1794
        %1796 = vdwg.mxu0
        %1797 = vmatpush.bf16.msra.mxu0 0
        %1798 = vmatpush.bf16.msra.mxu0 0
        %1799 = vmatpush.bf16.msra.mxu0 0
        %1800 = vmatpush.bf16.msra.mxu0 0
        %1801 = vmatpush.bf16.msra.mxu0 0
        %1802 = vmatpush.bf16.msra.mxu0 0
        %1803 = vmatpush.bf16.msra.mxu0 %v1707
        %1804 = vmatpush.bf16.msra.mxu0 %v1691
        %1805 = vmatmul.bf16.gmra.mxu0 %v1753
        %v1806 = vpop.f32.mrf.mxu0
        %v1807 = vadd.f32 %v1563, %v1806
        %v1808 = vpop.f32.mrf.mxu0
        %v1809 = vadd.f32 %v1563, %v1808
        %1810 = vdwg.mxu0
        %1811 = vmatpush.bf16.msra.mxu0 0
        %1812 = vmatpush.bf16.msra.mxu0 0
        %1813 = vmatpush.bf16.msra.mxu0 0
        %1814 = vmatpush.bf16.msra.mxu0 0
        %1815 = vmatpush.bf16.msra.mxu0 0
        %1816 = vmatpush.bf16.msra.mxu0 0
        %1817 = vmatpush.bf16.msra.mxu0 %v1708
        %1818 = vmatpush.bf16.msra.mxu0 %v1692
        %1819 = vmatmul.bf16.gmra.mxu0 %v1753
        %v1820 = vpop.f32.mrf.mxu0
        %v1821 = vadd.f32 %v1564, %v1820
        %v1822 = vpop.f32.mrf.mxu0
        %v1823 = vadd.f32 %v1564, %v1822
        %1824 = vdwg.mxu0
        %1825 = vmatpush.bf16.msra.mxu0 0
        %1826 = vmatpush.bf16.msra.mxu0 0
        %1827 = vmatpush.bf16.msra.mxu0 0
        %1828 = vmatpush.bf16.msra.mxu0 0
        %1829 = vmatpush.bf16.msra.mxu0 0
        %1830 = vmatpush.bf16.msra.mxu0 0
        %1831 = vmatpush.bf16.msra.mxu0 %v1709
        %1832 = vmatpush.bf16.msra.mxu0 %v1693
        %1833 = vmatmul.bf16.gmra.mxu0 %v1753
        %v1834 = vpop.f32.mrf.mxu0
        %v1835 = vadd.f32 %v1565, %v1834
        %v1836 = vpop.f32.mrf.mxu0
        %v1837 = vadd.f32 %v1565, %v1836
        %1838 = vdwg.mxu0
        %1839 = vmatpush.bf16.msra.mxu0 0
        %1840 = vmatpush.bf16.msra.mxu0 0
        %1841 = vmatpush.bf16.msra.mxu0 0
        %1842 = vmatpush.bf16.msra.mxu0 0
        %1843 = vmatpush.bf16.msra.mxu0 0
        %1844 = vmatpush.bf16.msra.mxu0 0
        %1845 = vmatpush.bf16.msra.mxu0 %v1710
        %1846 = vmatpush.bf16.msra.mxu0 %v1694
        %1847 = vmatmul.bf16.gmra.mxu0 %v1753
        %v1848 = vpop.f32.mrf.mxu0
        %v1849 = vadd.f32 %v1566, %v1848
        %v1850 = vpop.f32.mrf.mxu0
        %v1851 = vadd.f32 %v1566, %v1850
        %1852 = vdwg.mxu0
        %1853 = vmatpush.bf16.msra.mxu0 0
        %1854 = vmatpush.bf16.msra.mxu0 0
        %1855 = vmatpush.bf16.msra.mxu0 0
        %1856 = vmatpush.bf16.msra.mxu0 0
        %1857 = vmatpush.bf16.msra.mxu0 0
        %1858 = vmatpush.bf16.msra.mxu0 0
        %1859 = vmatpush.bf16.msra.mxu0 %v1711
        %1860 = vmatpush.bf16.msra.mxu0 %v1695
        %1861 = vmatmul.bf16.gmra.mxu0 %v1753
        %v1862 = vpop.f32.mrf.mxu0
        %v1863 = vadd.f32 %v1567, %v1862
        %v1864 = vpop.f32.mrf.mxu0
        %v1865 = vadd.f32 %v1567, %v1864
        %1866 = vdwg.mxu0
        %1867 = vmatpush.bf16.msra.mxu0 0
        %1868 = vmatpush.bf16.msra.mxu0 0
        %1869 = vmatpush.bf16.msra.mxu0 0
        %1870 = vmatpush.bf16.msra.mxu0 0
        %1871 = vmatpush.bf16.msra.mxu0 0
        %1872 = vmatpush.bf16.msra.mxu0 0
        %1873 = vmatpush.bf16.msra.mxu0 %v1712
        %1874 = vmatpush.bf16.msra.mxu0 %v1696
        %1875 = vmatmul.bf16.gmra.mxu0 %v1753
        %v1876 = vpop.f32.mrf.mxu0
        %v1877 = vadd.f32 %v1568, %v1876
        %v1878 = vpop.f32.mrf.mxu0
        %v1879 = vadd.f32 %v1568, %v1878
        %1880 = vdwg.mxu0
        %1881 = vmatpush.bf16.msra.mxu0 0
        %1882 = vmatpush.bf16.msra.mxu0 0
        %1883 = vmatpush.bf16.msra.mxu0 0
        %1884 = vmatpush.bf16.msra.mxu0 0
        %1885 = vmatpush.bf16.msra.mxu0 0
        %1886 = vmatpush.bf16.msra.mxu0 0
        %1887 = vmatpush.bf16.msra.mxu0 %v1713
        %1888 = vmatpush.bf16.msra.mxu0 %v1697
        %1889 = vmatmul.bf16.gmra.mxu0 %v1753
        %v1890 = vpop.f32.mrf.mxu0
        %v1891 = vadd.f32 %v1569, %v1890
        %v1892 = vpop.f32.mrf.mxu0
        %v1893 = vadd.f32 %v1569, %v1892
        %1894 = vdwg.mxu0
        %1895 = vmatpush.bf16.msra.mxu0 0
        %1896 = vmatpush.bf16.msra.mxu0 0
        %1897 = vmatpush.bf16.msra.mxu0 0
        %1898 = vmatpush.bf16.msra.mxu0 0
        %1899 = vmatpush.bf16.msra.mxu0 0
        %1900 = vmatpush.bf16.msra.mxu0 0
        %1901 = vmatpush.bf16.msra.mxu0 %v1714
        %1902 = vmatpush.bf16.msra.mxu0 %v1698
        %1903 = vmatmul.bf16.gmra.mxu0 %v1753
        %v1904 = vpop.f32.mrf.mxu0
        %v1905 = vadd.f32 %v1570, %v1904
        %v1906 = vpop.f32.mrf.mxu0
        %v1907 = vadd.f32 %v1570, %v1906
        %1908 = vdwg.mxu0
        %1909 = vmatpush.bf16.msra.mxu0 0
        %1910 = vmatpush.bf16.msra.mxu0 0
        %1911 = vmatpush.bf16.msra.mxu0 0
        %1912 = vmatpush.bf16.msra.mxu0 0
        %1913 = vmatpush.bf16.msra.mxu0 0
        %1914 = vmatpush.bf16.msra.mxu0 0
        %1915 = vmatpush.bf16.msra.mxu0 %v1715
        %1916 = vmatpush.bf16.msra.mxu0 %v1699
        %1917 = vmatmul.bf16.gmra.mxu0 %v1753
        %v1918 = vpop.f32.mrf.mxu0
        %v1919 = vadd.f32 %v1571, %v1918
        %v1920 = vpop.f32.mrf.mxu0
        %v1921 = vadd.f32 %v1571, %v1920
        %1922 = vdwg.mxu0
        %1923 = vmatpush.bf16.msra.mxu0 0
        %1924 = vmatpush.bf16.msra.mxu0 0
        %1925 = vmatpush.bf16.msra.mxu0 0
        %1926 = vmatpush.bf16.msra.mxu0 0
        %1927 = vmatpush.bf16.msra.mxu0 0
        %1928 = vmatpush.bf16.msra.mxu0 0
        %1929 = vmatpush.bf16.msra.mxu0 %v1716
        %1930 = vmatpush.bf16.msra.mxu0 %v1700
        %1931 = vmatmul.bf16.gmra.mxu0 %v1753
        %v1932 = vpop.f32.mrf.mxu0
        %v1933 = vadd.f32 %v1572, %v1932
        %v1934 = vpop.f32.mrf.mxu0
        %v1935 = vadd.f32 %v1572, %v1934
        %1936 = vdwg.mxu0
        %1937 = vmatpush.bf16.msra.mxu0 0
        %1938 = vmatpush.bf16.msra.mxu0 0
        %1939 = vmatpush.bf16.msra.mxu0 0
        %1940 = vmatpush.bf16.msra.mxu0 0
        %1941 = vmatpush.bf16.msra.mxu0 0
        %1942 = vmatpush.bf16.msra.mxu0 0
        %1943 = vmatpush.bf16.msra.mxu0 %v1717
        %1944 = vmatpush.bf16.msra.mxu0 %v1701
        %1945 = vmatmul.bf16.gmra.mxu0 %v1753
        %v1946 = vpop.f32.mrf.mxu0
        %v1947 = vadd.f32 %v1573, %v1946
        %v1948 = vpop.f32.mrf.mxu0
        %v1949 = vadd.f32 %v1573, %v1948
        %1950 = vdwg.mxu0
        %1951 = vmatpush.bf16.msra.mxu0 0
        %1952 = vmatpush.bf16.msra.mxu0 0
        %1953 = vmatpush.bf16.msra.mxu0 0
        %1954 = vmatpush.bf16.msra.mxu0 0
        %1955 = vmatpush.bf16.msra.mxu0 0
        %1956 = vmatpush.bf16.msra.mxu0 0
        %1957 = vmatpush.bf16.msra.mxu0 %v1718
        %1958 = vmatpush.bf16.msra.mxu0 %v1702
        %1959 = vmatmul.bf16.gmra.mxu0 %v1753
        %v1960 = vpop.f32.mrf.mxu0
        %v1961 = vadd.f32 %v1574, %v1960
        %v1962 = vpop.f32.mrf.mxu0
        %v1963 = vadd.f32 %v1574, %v1962
        %1964 = vdwg.mxu0
        %1965 = vmatpush.bf16.msra.mxu0 0
        %1966 = vmatpush.bf16.msra.mxu0 0
        %1967 = vmatpush.bf16.msra.mxu0 0
        %1968 = vmatpush.bf16.msra.mxu0 0
        %1969 = vmatpush.bf16.msra.mxu0 0
        %1970 = vmatpush.bf16.msra.mxu0 0
        %1971 = vmatpush.bf16.msra.mxu0 %v1719
        %1972 = vmatpush.bf16.msra.mxu0 %v1703
        %1973 = vmatmul.bf16.gmra.mxu0 %v1753
        %v1974 = vpop.f32.mrf.mxu0
        %v1975 = vadd.f32 %v1575, %v1974
        %v1976 = vpop.f32.mrf.mxu0
        %v1977 = vadd.f32 %v1575, %v1976
        %1978 = vdwg.mxu0
        %v1979 = vmax.f32 %v1765, 0.0
        %v1980 = vmax.f32 %v1779, 0.0
        %v1981 = vmax.f32 %v1793, 0.0
        %v1982 = vmax.f32 %v1807, 0.0
        %v1983 = vmax.f32 %v1821, 0.0
        %v1984 = vmax.f32 %v1835, 0.0
        %v1985 = vmax.f32 %v1849, 0.0
        %v1986 = vmax.f32 %v1863, 0.0
        %v1987 = vmax.f32 %v1877, 0.0
        %v1988 = vmax.f32 %v1891, 0.0
        %v1989 = vmax.f32 %v1905, 0.0
        %v1990 = vmax.f32 %v1919, 0.0
        %v1991 = vmax.f32 %v1933, 0.0
        %v1992 = vmax.f32 %v1947, 0.0
        %v1993 = vmax.f32 %v1961, 0.0
        %v1994 = vmax.f32 %v1975, 0.0
        %v1995 = vmax.f32 %v1767, 0.0
        %v1996 = vmax.f32 %v1781, 0.0
        %v1997 = vmax.f32 %v1795, 0.0
        %v1998 = vmax.f32 %v1809, 0.0
        %v1999 = vmax.f32 %v1823, 0.0
        %v2000 = vmax.f32 %v1837, 0.0
        %v2001 = vmax.f32 %v1851, 0.0
        %v2002 = vmax.f32 %v1865, 0.0
        %v2003 = vmax.f32 %v1879, 0.0
        %v2004 = vmax.f32 %v1893, 0.0
        %v2005 = vmax.f32 %v1907, 0.0
        %v2006 = vmax.f32 %v1921, 0.0
        %v2007 = vmax.f32 %v1935, 0.0
        %v2008 = vmax.f32 %v1949, 0.0
        %v2009 = vmax.f32 %v1963, 0.0
        %v2010 = vmax.f32 %v1977, 0.0
        %v2011 = vpack.c.bf16 %v1995, %v1979
        %v2012 = vpack.c.bf16 %v1996, %v1980
        %v2013 = vpack.c.bf16 %v1997, %v1981
        %v2014 = vpack.c.bf16 %v1998, %v1982
        %v2015 = vpack.c.bf16 %v1999, %v1983
        %v2016 = vpack.c.bf16 %v2000, %v1984
        %v2017 = vpack.c.bf16 %v2001, %v1985
        %v2018 = vpack.c.bf16 %v2002, %v1986
        %v2019 = vpack.c.bf16 %v2003, %v1987
        %v2020 = vpack.c.bf16 %v2004, %v1988
        %v2021 = vpack.c.bf16 %v2005, %v1989
        %v2022 = vpack.c.bf16 %v2006, %v1990
        %v2023 = vpack.c.bf16 %v2007, %v1991
        %v2024 = vpack.c.bf16 %v2008, %v1992
        %v2025 = vpack.c.bf16 %v2009, %v1993
        %v2026 = vpack.c.bf16 %v2010, %v1994
        %v2027 = vld [vmem:[%s706] sm:$0xf]
        %v2028 = vld [vmem:[%s706 + $0x4] sm:$0xf]
        %v2029 = vld [vmem:[%s706 + $0x8] sm:$0xf]
        %v2030 = vld [vmem:[%s706 + $0xc] sm:$0xf]
        %v2031 = vld [vmem:[%s706 + $0x10] sm:$0xf]
        %v2032 = vld [vmem:[%s706 + $0x14] sm:$0xf]
        %v2033 = vld [vmem:[%s706 + $0x18] sm:$0xf]
        %v2034 = vld [vmem:[%s706 + $0x1c] sm:$0xf]
        %v2035 = vld [vmem:[%s706 + $0x20] sm:$0xf]
        %v2036 = vld [vmem:[%s706 + $0x24] sm:$0xf]
        %v2037 = vld [vmem:[%s706 + $0x28] sm:$0xf]
        %v2038 = vld [vmem:[%s706 + $0x2c] sm:$0xf]
        %v2039 = vld [vmem:[%s706 + $0x30] sm:$0xf]
        %v2040 = vld [vmem:[%s706 + $0x34] sm:$0xf]
        %v2041 = vld [vmem:[%s706 + $0x38] sm:$0xf]
        %v2042 = vld [vmem:[%s706 + $0x3c] sm:$0xf]
        %v2043 = vld [vmem:[%s706 + $0x40] sm:$0xf]
        %v2044 = vld [vmem:[%s706 + $0x44] sm:$0xf]
        %v2045 = vld [vmem:[%s706 + $0x48] sm:$0xf]
        %v2046 = vld [vmem:[%s706 + $0x4c] sm:$0xf]
        %v2047 = vld [vmem:[%s706 + $0x50] sm:$0xf]
        %v2048 = vld [vmem:[%s706 + $0x54] sm:$0xf]
        %v2049 = vld [vmem:[%s706 + $0x58] sm:$0xf]
        %v2050 = vld [vmem:[%s706 + $0x5c] sm:$0xf]
        %v2051 = vld [vmem:[%s706 + $0x60] sm:$0xf]
        %v2052 = vld [vmem:[%s706 + $0x64] sm:$0xf]
        %v2053 = vld [vmem:[%s706 + $0x68] sm:$0xf]
        %v2054 = vld [vmem:[%s706 + $0x6c] sm:$0xf]
        %v2055 = vld [vmem:[%s706 + $0x70] sm:$0xf]
        %v2056 = vld [vmem:[%s706 + $0x74] sm:$0xf]
        %v2057 = vld [vmem:[%s706 + $0x78] sm:$0xf]
        %v2058 = vld [vmem:[%s706 + $0x7c] sm:$0xf]
        %v2059 = vld [vmem:[%s706 + $0x80] sm:$0xf]
        %v2060 = vld [vmem:[%s706 + $0x84] sm:$0xf]
        %v2061 = vld [vmem:[%s706 + $0x88] sm:$0xf]
        %v2062 = vld [vmem:[%s706 + $0x8c] sm:$0xf]
        %v2063 = vld [vmem:[%s706 + $0x90] sm:$0xf]
        %v2064 = vld [vmem:[%s706 + $0x94] sm:$0xf]
        %v2065 = vld [vmem:[%s706 + $0x98] sm:$0xf]
        %v2066 = vld [vmem:[%s706 + $0x9c] sm:$0xf]
        %v2067 = vld [vmem:[%s706 + $0xa0] sm:$0xf]
        %v2068 = vld [vmem:[%s706 + $0xa4] sm:$0xf]
        %v2069 = vld [vmem:[%s706 + $0xa8] sm:$0xf]
        %v2070 = vld [vmem:[%s706 + $0xac] sm:$0xf]
        %v2071 = vld [vmem:[%s706 + $0xb0] sm:$0xf]
        %v2072 = vld [vmem:[%s706 + $0xb4] sm:$0xf]
        %v2073 = vld [vmem:[%s706 + $0xb8] sm:$0xf]
        %v2074 = vld [vmem:[%s706 + $0xbc] sm:$0xf]
        %v2075 = vld [vmem:[%s706 + $0xc0] sm:$0xf]
        %v2076 = vld [vmem:[%s706 + $0xc4] sm:$0xf]
        %v2077 = vld [vmem:[%s706 + $0xc8] sm:$0xf]
        %v2078 = vld [vmem:[%s706 + $0xcc] sm:$0xf]
        %v2079 = vld [vmem:[%s706 + $0xd0] sm:$0xf]
        %v2080 = vld [vmem:[%s706 + $0xd4] sm:$0xf]
        %v2081 = vld [vmem:[%s706 + $0xd8] sm:$0xf]
        %v2082 = vld [vmem:[%s706 + $0xdc] sm:$0xf]
        %v2083 = vld [vmem:[%s706 + $0xe0] sm:$0xf]
        %v2084 = vld [vmem:[%s706 + $0xe4] sm:$0xf]
        %v2085 = vld [vmem:[%s706 + $0xe8] sm:$0xf]
        %v2086 = vld [vmem:[%s706 + $0xec] sm:$0xf]
        %v2087 = vld [vmem:[%s706 + $0xf0] sm:$0xf]
        %v2088 = vld [vmem:[%s706 + $0xf4] sm:$0xf]
        %v2089 = vld [vmem:[%s706 + $0xf8] sm:$0xf]
        %v2090 = vld [vmem:[%s706 + $0xfc] sm:$0xf]
        %v2091 = vld [vmem:[%s706 + $0x100] sm:$0xf]
        %v2092 = vld [vmem:[%s706 + $0x104] sm:$0xf]
        %v2093 = vld [vmem:[%s706 + $0x108] sm:$0xf]
        %v2094 = vld [vmem:[%s706 + $0x10c] sm:$0xf]
        %v2095 = vld [vmem:[%s706 + $0x110] sm:$0xf]
        %v2096 = vld [vmem:[%s706 + $0x114] sm:$0xf]
        %v2097 = vld [vmem:[%s706 + $0x118] sm:$0xf]
        %v2098 = vld [vmem:[%s706 + $0x11c] sm:$0xf]
        %v2099 = vld [vmem:[%s706 + $0x120] sm:$0xf]
        %v2100 = vld [vmem:[%s706 + $0x124] sm:$0xf]
        %v2101 = vld [vmem:[%s706 + $0x128] sm:$0xf]
        %v2102 = vld [vmem:[%s706 + $0x12c] sm:$0xf]
        %v2103 = vld [vmem:[%s706 + $0x130] sm:$0xf]
        %v2104 = vld [vmem:[%s706 + $0x134] sm:$0xf]
        %v2105 = vld [vmem:[%s706 + $0x138] sm:$0xf]
        %v2106 = vld [vmem:[%s706 + $0x13c] sm:$0xf]
        %v2107 = vld [vmem:[%s706 + $0x140] sm:$0xf]
        %v2108 = vld [vmem:[%s706 + $0x144] sm:$0xf]
        %v2109 = vld [vmem:[%s706 + $0x148] sm:$0xf]
        %v2110 = vld [vmem:[%s706 + $0x14c] sm:$0xf]
        %v2111 = vld [vmem:[%s706 + $0x150] sm:$0xf]
        %v2112 = vld [vmem:[%s706 + $0x154] sm:$0xf]
        %v2113 = vld [vmem:[%s706 + $0x158] sm:$0xf]
        %v2114 = vld [vmem:[%s706 + $0x15c] sm:$0xf]
        %v2115 = vld [vmem:[%s706 + $0x160] sm:$0xf]
        %v2116 = vld [vmem:[%s706 + $0x164] sm:$0xf]
        %v2117 = vld [vmem:[%s706 + $0x168] sm:$0xf]
        %v2118 = vld [vmem:[%s706 + $0x16c] sm:$0xf]
        %v2119 = vld [vmem:[%s706 + $0x170] sm:$0xf]
        %v2120 = vld [vmem:[%s706 + $0x174] sm:$0xf]
        %v2121 = vld [vmem:[%s706 + $0x178] sm:$0xf]
        %v2122 = vld [vmem:[%s706 + $0x17c] sm:$0xf]
        %v2123 = vld [vmem:[%s706 + $0x180] sm:$0xf]
        %v2124 = vld [vmem:[%s706 + $0x184] sm:$0xf]
        %v2125 = vld [vmem:[%s706 + $0x188] sm:$0xf]
        %v2126 = vld [vmem:[%s706 + $0x18c] sm:$0xf]
        %v2127 = vld [vmem:[%s706 + $0x190] sm:$0xf]
        %v2128 = vld [vmem:[%s706 + $0x194] sm:$0xf]
        %v2129 = vld [vmem:[%s706 + $0x198] sm:$0xf]
        %v2130 = vld [vmem:[%s706 + $0x19c] sm:$0xf]
        %v2131 = vld [vmem:[%s706 + $0x1a0] sm:$0xf]
        %v2132 = vld [vmem:[%s706 + $0x1a4] sm:$0xf]
        %v2133 = vld [vmem:[%s706 + $0x1a8] sm:$0xf]
        %v2134 = vld [vmem:[%s706 + $0x1ac] sm:$0xf]
        %v2135 = vld [vmem:[%s706 + $0x1b0] sm:$0xf]
        %v2136 = vld [vmem:[%s706 + $0x1b4] sm:$0xf]
        %v2137 = vld [vmem:[%s706 + $0x1b8] sm:$0xf]
        %v2138 = vld [vmem:[%s706 + $0x1bc] sm:$0xf]
        %v2139 = vld [vmem:[%s706 + $0x1c0] sm:$0xf]
        %v2140 = vld [vmem:[%s706 + $0x1c4] sm:$0xf]
        %v2141 = vld [vmem:[%s706 + $0x1c8] sm:$0xf]
        %v2142 = vld [vmem:[%s706 + $0x1cc] sm:$0xf]
        %v2143 = vld [vmem:[%s706 + $0x1d0] sm:$0xf]
        %v2144 = vld [vmem:[%s706 + $0x1d4] sm:$0xf]
        %v2145 = vld [vmem:[%s706 + $0x1d8] sm:$0xf]
        %v2146 = vld [vmem:[%s706 + $0x1dc] sm:$0xf]
        %v2147 = vld [vmem:[%s706 + $0x1e0] sm:$0xf]
        %v2148 = vld [vmem:[%s706 + $0x1e4] sm:$0xf]
        %v2149 = vld [vmem:[%s706 + $0x1e8] sm:$0xf]
        %v2150 = vld [vmem:[%s706 + $0x1ec] sm:$0xf]
        %v2151 = vld [vmem:[%s706 + $0x1f0] sm:$0xf]
        %v2152 = vld [vmem:[%s706 + $0x1f4] sm:$0xf]
        %v2153 = vld [vmem:[%s706 + $0x1f8] sm:$0xf]
        %v2154 = vld [vmem:[%s706 + $0x1fc] sm:$0xf]
        %v2155 = vld [vmem:[%s706 + $0x200] sm:$0xf]
        %v2156 = vld [vmem:[%s706 + $0x204] sm:$0xf]
        %v2157 = vld [vmem:[%s706 + $0x208] sm:$0xf]
        %v2158 = vld [vmem:[%s706 + $0x20c] sm:$0xf]
        %v2159 = vld [vmem:[%s706 + $0x210] sm:$0xf]
        %v2160 = vld [vmem:[%s706 + $0x214] sm:$0xf]
        %v2161 = vld [vmem:[%s706 + $0x218] sm:$0xf]
        %v2162 = vld [vmem:[%s706 + $0x21c] sm:$0xf]
        %v2163 = vld [vmem:[%s706 + $0x220] sm:$0xf]
        %v2164 = vld [vmem:[%s706 + $0x224] sm:$0xf]
        %v2165 = vld [vmem:[%s706 + $0x228] sm:$0xf]
        %v2166 = vld [vmem:[%s706 + $0x22c] sm:$0xf]
        %v2167 = vld [vmem:[%s706 + $0x230] sm:$0xf]
        %v2168 = vld [vmem:[%s706 + $0x234] sm:$0xf]
        %v2169 = vld [vmem:[%s706 + $0x238] sm:$0xf]
        %v2170 = vld [vmem:[%s706 + $0x23c] sm:$0xf]
        %v2171 = vld [vmem:[%s706 + $0x240] sm:$0xf]
        %v2172 = vld [vmem:[%s706 + $0x244] sm:$0xf]
        %v2173 = vld [vmem:[%s706 + $0x248] sm:$0xf]
        %v2174 = vld [vmem:[%s706 + $0x24c] sm:$0xf]
        %v2175 = vld [vmem:[%s706 + $0x250] sm:$0xf]
        %v2176 = vld [vmem:[%s706 + $0x254] sm:$0xf]
        %v2177 = vld [vmem:[%s706 + $0x258] sm:$0xf]
        %v2178 = vld [vmem:[%s706 + $0x25c] sm:$0xf]
        %v2179 = vld [vmem:[%s706 + $0x260] sm:$0xf]
        %v2180 = vld [vmem:[%s706 + $0x264] sm:$0xf]
        %v2181 = vld [vmem:[%s706 + $0x268] sm:$0xf]
        %v2182 = vld [vmem:[%s706 + $0x26c] sm:$0xf]
        %v2183 = vld [vmem:[%s706 + $0x270] sm:$0xf]
        %v2184 = vld [vmem:[%s706 + $0x274] sm:$0xf]
        %v2185 = vld [vmem:[%s706 + $0x278] sm:$0xf]
        %v2186 = vld [vmem:[%s706 + $0x27c] sm:$0xf]
        %v2187 = vld [vmem:[%s706 + $0x280] sm:$0xf]
        %v2188 = vld [vmem:[%s706 + $0x284] sm:$0xf]
        %v2189 = vld [vmem:[%s706 + $0x288] sm:$0xf]
        %v2190 = vld [vmem:[%s706 + $0x28c] sm:$0xf]
        %v2191 = vld [vmem:[%s706 + $0x290] sm:$0xf]
        %v2192 = vld [vmem:[%s706 + $0x294] sm:$0xf]
        %v2193 = vld [vmem:[%s706 + $0x298] sm:$0xf]
        %v2194 = vld [vmem:[%s706 + $0x29c] sm:$0xf]
        %v2195 = vld [vmem:[%s706 + $0x2a0] sm:$0xf]
        %v2196 = vld [vmem:[%s706 + $0x2a4] sm:$0xf]
        %v2197 = vld [vmem:[%s706 + $0x2a8] sm:$0xf]
        %v2198 = vld [vmem:[%s706 + $0x2ac] sm:$0xf]
        %v2199 = vld [vmem:[%s706 + $0x2b0] sm:$0xf]
        %v2200 = vld [vmem:[%s706 + $0x2b4] sm:$0xf]
        %v2201 = vld [vmem:[%s706 + $0x2b8] sm:$0xf]
        %v2202 = vld [vmem:[%s706 + $0x2bc] sm:$0xf]
        %v2203 = vld [vmem:[%s706 + $0x2c0] sm:$0xf]
        %v2204 = vld [vmem:[%s706 + $0x2c4] sm:$0xf]
        %v2205 = vld [vmem:[%s706 + $0x2c8] sm:$0xf]
        %v2206 = vld [vmem:[%s706 + $0x2cc] sm:$0xf]
        %v2207 = vld [vmem:[%s706 + $0x2d0] sm:$0xf]
        %v2208 = vld [vmem:[%s706 + $0x2d4] sm:$0xf]
        %v2209 = vld [vmem:[%s706 + $0x2d8] sm:$0xf]
        %v2210 = vld [vmem:[%s706 + $0x2dc] sm:$0xf]
        %v2211 = vld [vmem:[%s706 + $0x2e0] sm:$0xf]
        %v2212 = vld [vmem:[%s706 + $0x2e4] sm:$0xf]
        %v2213 = vld [vmem:[%s706 + $0x2e8] sm:$0xf]
        %v2214 = vld [vmem:[%s706 + $0x2ec] sm:$0xf]
        %v2215 = vld [vmem:[%s706 + $0x2f0] sm:$0xf]
        %v2216 = vld [vmem:[%s706 + $0x2f4] sm:$0xf]
        %v2217 = vld [vmem:[%s706 + $0x2f8] sm:$0xf]
        %v2218 = vld [vmem:[%s706 + $0x2fc] sm:$0xf]
        %v2219 = vld [vmem:[%s706 + $0x300] sm:$0xf]
        %v2220 = vld [vmem:[%s706 + $0x304] sm:$0xf]
        %v2221 = vld [vmem:[%s706 + $0x308] sm:$0xf]
        %v2222 = vld [vmem:[%s706 + $0x30c] sm:$0xf]
        %v2223 = vld [vmem:[%s706 + $0x310] sm:$0xf]
        %v2224 = vld [vmem:[%s706 + $0x314] sm:$0xf]
        %v2225 = vld [vmem:[%s706 + $0x318] sm:$0xf]
        %v2226 = vld [vmem:[%s706 + $0x31c] sm:$0xf]
        %v2227 = vld [vmem:[%s706 + $0x320] sm:$0xf]
        %v2228 = vld [vmem:[%s706 + $0x324] sm:$0xf]
        %v2229 = vld [vmem:[%s706 + $0x328] sm:$0xf]
        %v2230 = vld [vmem:[%s706 + $0x32c] sm:$0xf]
        %v2231 = vld [vmem:[%s706 + $0x330] sm:$0xf]
        %v2232 = vld [vmem:[%s706 + $0x334] sm:$0xf]
        %v2233 = vld [vmem:[%s706 + $0x338] sm:$0xf]
        %v2234 = vld [vmem:[%s706 + $0x33c] sm:$0xf]
        %v2235 = vld [vmem:[%s706 + $0x340] sm:$0xf]
        %v2236 = vld [vmem:[%s706 + $0x344] sm:$0xf]
        %v2237 = vld [vmem:[%s706 + $0x348] sm:$0xf]
        %v2238 = vld [vmem:[%s706 + $0x34c] sm:$0xf]
        %v2239 = vld [vmem:[%s706 + $0x350] sm:$0xf]
        %v2240 = vld [vmem:[%s706 + $0x354] sm:$0xf]
        %v2241 = vld [vmem:[%s706 + $0x358] sm:$0xf]
        %v2242 = vld [vmem:[%s706 + $0x35c] sm:$0xf]
        %v2243 = vld [vmem:[%s706 + $0x360] sm:$0xf]
        %v2244 = vld [vmem:[%s706 + $0x364] sm:$0xf]
        %v2245 = vld [vmem:[%s706 + $0x368] sm:$0xf]
        %v2246 = vld [vmem:[%s706 + $0x36c] sm:$0xf]
        %v2247 = vld [vmem:[%s706 + $0x370] sm:$0xf]
        %v2248 = vld [vmem:[%s706 + $0x374] sm:$0xf]
        %v2249 = vld [vmem:[%s706 + $0x378] sm:$0xf]
        %v2250 = vld [vmem:[%s706 + $0x37c] sm:$0xf]
        %v2251 = vld [vmem:[%s706 + $0x380] sm:$0xf]
        %v2252 = vld [vmem:[%s706 + $0x384] sm:$0xf]
        %v2253 = vld [vmem:[%s706 + $0x388] sm:$0xf]
        %v2254 = vld [vmem:[%s706 + $0x38c] sm:$0xf]
        %v2255 = vld [vmem:[%s706 + $0x390] sm:$0xf]
        %v2256 = vld [vmem:[%s706 + $0x394] sm:$0xf]
        %v2257 = vld [vmem:[%s706 + $0x398] sm:$0xf]
        %v2258 = vld [vmem:[%s706 + $0x39c] sm:$0xf]
        %v2259 = vld [vmem:[%s706 + $0x3a0] sm:$0xf]
        %v2260 = vld [vmem:[%s706 + $0x3a4] sm:$0xf]
        %v2261 = vld [vmem:[%s706 + $0x3a8] sm:$0xf]
        %v2262 = vld [vmem:[%s706 + $0x3ac] sm:$0xf]
        %v2263 = vld [vmem:[%s706 + $0x3b0] sm:$0xf]
        %v2264 = vld [vmem:[%s706 + $0x3b4] sm:$0xf]
        %v2265 = vld [vmem:[%s706 + $0x3b8] sm:$0xf]
        %v2266 = vld [vmem:[%s706 + $0x3bc] sm:$0xf]
        %v2267 = vld [vmem:[%s706 + $0x3c0] sm:$0xf]
        %v2268 = vld [vmem:[%s706 + $0x3c4] sm:$0xf]
        %v2269 = vld [vmem:[%s706 + $0x3c8] sm:$0xf]
        %v2270 = vld [vmem:[%s706 + $0x3cc] sm:$0xf]
        %v2271 = vld [vmem:[%s706 + $0x3d0] sm:$0xf]
        %v2272 = vld [vmem:[%s706 + $0x3d4] sm:$0xf]
        %v2273 = vld [vmem:[%s706 + $0x3d8] sm:$0xf]
        %v2274 = vld [vmem:[%s706 + $0x3dc] sm:$0xf]
        %v2275 = vld [vmem:[%s706 + $0x3e0] sm:$0xf]
        %v2276 = vld [vmem:[%s706 + $0x3e4] sm:$0xf]
        %v2277 = vld [vmem:[%s706 + $0x3e8] sm:$0xf]
        %v2278 = vld [vmem:[%s706 + $0x3ec] sm:$0xf]
        %v2279 = vld [vmem:[%s706 + $0x3f0] sm:$0xf]
        %v2280 = vld [vmem:[%s706 + $0x3f4] sm:$0xf]
        %v2281 = vld [vmem:[%s706 + $0x3f8] sm:$0xf]
        %v2282 = vld [vmem:[%s706 + $0x3fc] sm:$0xf]
        %v2283 = vld [vmem:[%s709] sm:$0x1]
        %v2285 = vperm.slane %v2283, 0
        %v2543 = vunpack.c.l.b16 %v2027
        %v2544 = vunpack.c.l.b16 %v2028
        %v2545 = vunpack.c.l.b16 %v2029
        %v2546 = vunpack.c.l.b16 %v2030
        %v2547 = vunpack.c.l.b16 %v2031
        %v2548 = vunpack.c.l.b16 %v2032
        %v2549 = vunpack.c.l.b16 %v2033
        %v2550 = vunpack.c.l.b16 %v2034
        %v2551 = vunpack.c.l.b16 %v2035
        %v2552 = vunpack.c.l.b16 %v2036
        %v2553 = vunpack.c.l.b16 %v2037
        %v2554 = vunpack.c.l.b16 %v2038
        %v2555 = vunpack.c.l.b16 %v2039
        %v2556 = vunpack.c.l.b16 %v2040
        %v2557 = vunpack.c.l.b16 %v2041
        %v2558 = vunpack.c.l.b16 %v2042
        %v2559 = vunpack.c.l.b16 %v2043
        %v2560 = vunpack.c.l.b16 %v2044
        %v2561 = vunpack.c.l.b16 %v2045
        %v2562 = vunpack.c.l.b16 %v2046
        %v2563 = vunpack.c.l.b16 %v2047
        %v2564 = vunpack.c.l.b16 %v2048
        %v2565 = vunpack.c.l.b16 %v2049
        %v2566 = vunpack.c.l.b16 %v2050
        %v2567 = vunpack.c.l.b16 %v2051
        %v2568 = vunpack.c.l.b16 %v2052
        %v2569 = vunpack.c.l.b16 %v2053
        %v2570 = vunpack.c.l.b16 %v2054
        %v2571 = vunpack.c.l.b16 %v2055
        %v2572 = vunpack.c.l.b16 %v2056
        %v2573 = vunpack.c.l.b16 %v2057
        %v2574 = vunpack.c.l.b16 %v2058
        %v2575 = vunpack.c.l.b16 %v2059
        %v2576 = vunpack.c.l.b16 %v2060
        %v2577 = vunpack.c.l.b16 %v2061
        %v2578 = vunpack.c.l.b16 %v2062
        %v2579 = vunpack.c.l.b16 %v2063
        %v2580 = vunpack.c.l.b16 %v2064
        %v2581 = vunpack.c.l.b16 %v2065
        %v2582 = vunpack.c.l.b16 %v2066
        %v2583 = vunpack.c.l.b16 %v2067
        %v2584 = vunpack.c.l.b16 %v2068
        %v2585 = vunpack.c.l.b16 %v2069
        %v2586 = vunpack.c.l.b16 %v2070
        %v2587 = vunpack.c.l.b16 %v2071
        %v2588 = vunpack.c.l.b16 %v2072
        %v2589 = vunpack.c.l.b16 %v2073
        %v2590 = vunpack.c.l.b16 %v2074
        %v2591 = vunpack.c.l.b16 %v2075
        %v2592 = vunpack.c.l.b16 %v2076
        %v2593 = vunpack.c.l.b16 %v2077
        %v2594 = vunpack.c.l.b16 %v2078
        %v2595 = vunpack.c.l.b16 %v2079
        %v2596 = vunpack.c.l.b16 %v2080
        %v2597 = vunpack.c.l.b16 %v2081
        %v2598 = vunpack.c.l.b16 %v2082
        %v2599 = vunpack.c.l.b16 %v2083
        %v2600 = vunpack.c.l.b16 %v2084
        %v2601 = vunpack.c.l.b16 %v2085
        %v2602 = vunpack.c.l.b16 %v2086
        %v2603 = vunpack.c.l.b16 %v2087
        %v2604 = vunpack.c.l.b16 %v2088
        %v2605 = vunpack.c.l.b16 %v2089
        %v2606 = vunpack.c.l.b16 %v2090
        %v2607 = vunpack.c.l.b16 %v2091
        %v2608 = vunpack.c.l.b16 %v2092
        %v2609 = vunpack.c.l.b16 %v2093
        %v2610 = vunpack.c.l.b16 %v2094
        %v2611 = vunpack.c.l.b16 %v2095
        %v2612 = vunpack.c.l.b16 %v2096
        %v2613 = vunpack.c.l.b16 %v2097
        %v2614 = vunpack.c.l.b16 %v2098
        %v2615 = vunpack.c.l.b16 %v2099
        %v2616 = vunpack.c.l.b16 %v2100
        %v2617 = vunpack.c.l.b16 %v2101
        %v2618 = vunpack.c.l.b16 %v2102
        %v2619 = vunpack.c.l.b16 %v2103
        %v2620 = vunpack.c.l.b16 %v2104
        %v2621 = vunpack.c.l.b16 %v2105
        %v2622 = vunpack.c.l.b16 %v2106
        %v2623 = vunpack.c.l.b16 %v2107
        %v2624 = vunpack.c.l.b16 %v2108
        %v2625 = vunpack.c.l.b16 %v2109
        %v2626 = vunpack.c.l.b16 %v2110
        %v2627 = vunpack.c.l.b16 %v2111
        %v2628 = vunpack.c.l.b16 %v2112
        %v2629 = vunpack.c.l.b16 %v2113
        %v2630 = vunpack.c.l.b16 %v2114
        %v2631 = vunpack.c.l.b16 %v2115
        %v2632 = vunpack.c.l.b16 %v2116
        %v2633 = vunpack.c.l.b16 %v2117
        %v2634 = vunpack.c.l.b16 %v2118
        %v2635 = vunpack.c.l.b16 %v2119
        %v2636 = vunpack.c.l.b16 %v2120
        %v2637 = vunpack.c.l.b16 %v2121
        %v2638 = vunpack.c.l.b16 %v2122
        %v2639 = vunpack.c.l.b16 %v2123
        %v2640 = vunpack.c.l.b16 %v2124
        %v2641 = vunpack.c.l.b16 %v2125
        %v2642 = vunpack.c.l.b16 %v2126
        %v2643 = vunpack.c.l.b16 %v2127
        %v2644 = vunpack.c.l.b16 %v2128
        %v2645 = vunpack.c.l.b16 %v2129
        %v2646 = vunpack.c.l.b16 %v2130
        %v2647 = vunpack.c.l.b16 %v2131
        %v2648 = vunpack.c.l.b16 %v2132
        %v2649 = vunpack.c.l.b16 %v2133
        %v2650 = vunpack.c.l.b16 %v2134
        %v2651 = vunpack.c.l.b16 %v2135
        %v2652 = vunpack.c.l.b16 %v2136
        %v2653 = vunpack.c.l.b16 %v2137
        %v2654 = vunpack.c.l.b16 %v2138
        %v2655 = vunpack.c.l.b16 %v2139
        %v2656 = vunpack.c.l.b16 %v2140
        %v2657 = vunpack.c.l.b16 %v2141
        %v2658 = vunpack.c.l.b16 %v2142
        %v2659 = vunpack.c.l.b16 %v2143
        %v2660 = vunpack.c.l.b16 %v2144
        %v2661 = vunpack.c.l.b16 %v2145
        %v2662 = vunpack.c.l.b16 %v2146
        %v2663 = vunpack.c.l.b16 %v2147
        %v2664 = vunpack.c.l.b16 %v2148
        %v2665 = vunpack.c.l.b16 %v2149
        %v2666 = vunpack.c.l.b16 %v2150
        %v2667 = vunpack.c.l.b16 %v2151
        %v2668 = vunpack.c.l.b16 %v2152
        %v2669 = vunpack.c.l.b16 %v2153
        %v2670 = vunpack.c.l.b16 %v2154
        %v2671 = vunpack.c.l.b16 %v2155
        %v2672 = vunpack.c.l.b16 %v2156
        %v2673 = vunpack.c.l.b16 %v2157
        %v2674 = vunpack.c.l.b16 %v2158
        %v2675 = vunpack.c.l.b16 %v2159
        %v2676 = vunpack.c.l.b16 %v2160
        %v2677 = vunpack.c.l.b16 %v2161
        %v2678 = vunpack.c.l.b16 %v2162
        %v2679 = vunpack.c.l.b16 %v2163
        %v2680 = vunpack.c.l.b16 %v2164
        %v2681 = vunpack.c.l.b16 %v2165
        %v2682 = vunpack.c.l.b16 %v2166
        %v2683 = vunpack.c.l.b16 %v2167
        %v2684 = vunpack.c.l.b16 %v2168
        %v2685 = vunpack.c.l.b16 %v2169
        %v2686 = vunpack.c.l.b16 %v2170
        %v2687 = vunpack.c.l.b16 %v2171
        %v2688 = vunpack.c.l.b16 %v2172
        %v2689 = vunpack.c.l.b16 %v2173
        %v2690 = vunpack.c.l.b16 %v2174
        %v2691 = vunpack.c.l.b16 %v2175
        %v2692 = vunpack.c.l.b16 %v2176
        %v2693 = vunpack.c.l.b16 %v2177
        %v2694 = vunpack.c.l.b16 %v2178
        %v2695 = vunpack.c.l.b16 %v2179
        %v2696 = vunpack.c.l.b16 %v2180
        %v2697 = vunpack.c.l.b16 %v2181
        %v2698 = vunpack.c.l.b16 %v2182
        %v2699 = vunpack.c.l.b16 %v2183
        %v2700 = vunpack.c.l.b16 %v2184
        %v2701 = vunpack.c.l.b16 %v2185
        %v2702 = vunpack.c.l.b16 %v2186
        %v2703 = vunpack.c.l.b16 %v2187
        %v2704 = vunpack.c.l.b16 %v2188
        %v2705 = vunpack.c.l.b16 %v2189
        %v2706 = vunpack.c.l.b16 %v2190
        %v2707 = vunpack.c.l.b16 %v2191
        %v2708 = vunpack.c.l.b16 %v2192
        %v2709 = vunpack.c.l.b16 %v2193
        %v2710 = vunpack.c.l.b16 %v2194
        %v2711 = vunpack.c.l.b16 %v2195
        %v2712 = vunpack.c.l.b16 %v2196
        %v2713 = vunpack.c.l.b16 %v2197
        %v2714 = vunpack.c.l.b16 %v2198
        %v2715 = vunpack.c.l.b16 %v2199
        %v2716 = vunpack.c.l.b16 %v2200
        %v2717 = vunpack.c.l.b16 %v2201
        %v2718 = vunpack.c.l.b16 %v2202
        %v2719 = vunpack.c.l.b16 %v2203
        %v2720 = vunpack.c.l.b16 %v2204
        %v2721 = vunpack.c.l.b16 %v2205
        %v2722 = vunpack.c.l.b16 %v2206
        %v2723 = vunpack.c.l.b16 %v2207
        %v2724 = vunpack.c.l.b16 %v2208
        %v2725 = vunpack.c.l.b16 %v2209
        %v2726 = vunpack.c.l.b16 %v2210
        %v2727 = vunpack.c.l.b16 %v2211
        %v2728 = vunpack.c.l.b16 %v2212
        %v2729 = vunpack.c.l.b16 %v2213
        %v2730 = vunpack.c.l.b16 %v2214
        %v2731 = vunpack.c.l.b16 %v2215
        %v2732 = vunpack.c.l.b16 %v2216
        %v2733 = vunpack.c.l.b16 %v2217
        %v2734 = vunpack.c.l.b16 %v2218
        %v2735 = vunpack.c.l.b16 %v2219
        %v2736 = vunpack.c.l.b16 %v2220
        %v2737 = vunpack.c.l.b16 %v2221
        %v2738 = vunpack.c.l.b16 %v2222
        %v2739 = vunpack.c.l.b16 %v2223
        %v2740 = vunpack.c.l.b16 %v2224
        %v2741 = vunpack.c.l.b16 %v2225
        %v2742 = vunpack.c.l.b16 %v2226
        %v2743 = vunpack.c.l.b16 %v2227
        %v2744 = vunpack.c.l.b16 %v2228
        %v2745 = vunpack.c.l.b16 %v2229
        %v2746 = vunpack.c.l.b16 %v2230
        %v2747 = vunpack.c.l.b16 %v2231
        %v2748 = vunpack.c.l.b16 %v2232
        %v2749 = vunpack.c.l.b16 %v2233
        %v2750 = vunpack.c.l.b16 %v2234
        %v2751 = vunpack.c.l.b16 %v2235
        %v2752 = vunpack.c.l.b16 %v2236
        %v2753 = vunpack.c.l.b16 %v2237
        %v2754 = vunpack.c.l.b16 %v2238
        %v2755 = vunpack.c.l.b16 %v2239
        %v2756 = vunpack.c.l.b16 %v2240
        %v2757 = vunpack.c.l.b16 %v2241
        %v2758 = vunpack.c.l.b16 %v2242
        %v2759 = vunpack.c.l.b16 %v2243
        %v2760 = vunpack.c.l.b16 %v2244
        %v2761 = vunpack.c.l.b16 %v2245
        %v2762 = vunpack.c.l.b16 %v2246
        %v2763 = vunpack.c.l.b16 %v2247
        %v2764 = vunpack.c.l.b16 %v2248
        %v2765 = vunpack.c.l.b16 %v2249
        %v2766 = vunpack.c.l.b16 %v2250
        %v2767 = vunpack.c.l.b16 %v2251
        %v2768 = vunpack.c.l.b16 %v2252
        %v2769 = vunpack.c.l.b16 %v2253
        %v2770 = vunpack.c.l.b16 %v2254
        %v2771 = vunpack.c.l.b16 %v2255
        %v2772 = vunpack.c.l.b16 %v2256
        %v2773 = vunpack.c.l.b16 %v2257
        %v2774 = vunpack.c.l.b16 %v2258
        %v2775 = vunpack.c.l.b16 %v2259
        %v2776 = vunpack.c.l.b16 %v2260
        %v2777 = vunpack.c.l.b16 %v2261
        %v2778 = vunpack.c.l.b16 %v2262
        %v2779 = vunpack.c.l.b16 %v2263
        %v2780 = vunpack.c.l.b16 %v2264
        %v2781 = vunpack.c.l.b16 %v2265
        %v2782 = vunpack.c.l.b16 %v2266
        %v2783 = vunpack.c.l.b16 %v2267
        %v2784 = vunpack.c.l.b16 %v2268
        %v2785 = vunpack.c.l.b16 %v2269
        %v2786 = vunpack.c.l.b16 %v2270
        %v2787 = vunpack.c.l.b16 %v2271
        %v2788 = vunpack.c.l.b16 %v2272
        %v2789 = vunpack.c.l.b16 %v2273
        %v2790 = vunpack.c.l.b16 %v2274
        %v2791 = vunpack.c.l.b16 %v2275
        %v2792 = vunpack.c.l.b16 %v2276
        %v2793 = vunpack.c.l.b16 %v2277
        %v2794 = vunpack.c.l.b16 %v2278
        %v2795 = vunpack.c.l.b16 %v2279
        %v2796 = vunpack.c.l.b16 %v2280
        %v2797 = vunpack.c.l.b16 %v2281
        %v2798 = vunpack.c.l.b16 %v2282
        %v2799 = vpack.c.b16 %v2544, %v2543
        %v2800 = vpack.c.b16 %v2546, %v2545
        %v2801 = vpack.c.b16 %v2548, %v2547
        %v2802 = vpack.c.b16 %v2550, %v2549
        %v2803 = vpack.c.b16 %v2552, %v2551
        %v2804 = vpack.c.b16 %v2554, %v2553
        %v2805 = vpack.c.b16 %v2556, %v2555
        %v2806 = vpack.c.b16 %v2558, %v2557
        %v2807 = vpack.c.b16 %v2560, %v2559
        %v2808 = vpack.c.b16 %v2562, %v2561
        %v2809 = vpack.c.b16 %v2564, %v2563
        %v2810 = vpack.c.b16 %v2566, %v2565
        %v2811 = vpack.c.b16 %v2568, %v2567
        %v2812 = vpack.c.b16 %v2570, %v2569
        %v2813 = vpack.c.b16 %v2572, %v2571
        %v2814 = vpack.c.b16 %v2574, %v2573
        %v2815 = vpack.c.b16 %v2576, %v2575
        %v2816 = vpack.c.b16 %v2578, %v2577
        %v2817 = vpack.c.b16 %v2580, %v2579
        %v2818 = vpack.c.b16 %v2582, %v2581
        %v2819 = vpack.c.b16 %v2584, %v2583
        %v2820 = vpack.c.b16 %v2586, %v2585
        %v2821 = vpack.c.b16 %v2588, %v2587
        %v2822 = vpack.c.b16 %v2590, %v2589
        %v2823 = vpack.c.b16 %v2592, %v2591
        %v2824 = vpack.c.b16 %v2594, %v2593
        %v2825 = vpack.c.b16 %v2596, %v2595
        %v2826 = vpack.c.b16 %v2598, %v2597
        %v2827 = vpack.c.b16 %v2600, %v2599
        %v2828 = vpack.c.b16 %v2602, %v2601
        %v2829 = vpack.c.b16 %v2604, %v2603
        %v2830 = vpack.c.b16 %v2606, %v2605
        %v2831 = vpack.c.b16 %v2608, %v2607
        %v2832 = vpack.c.b16 %v2610, %v2609
        %v2833 = vpack.c.b16 %v2612, %v2611
        %v2834 = vpack.c.b16 %v2614, %v2613
        %v2835 = vpack.c.b16 %v2616, %v2615
        %v2836 = vpack.c.b16 %v2618, %v2617
        %v2837 = vpack.c.b16 %v2620, %v2619
        %v2838 = vpack.c.b16 %v2622, %v2621
        %v2839 = vpack.c.b16 %v2624, %v2623
        %v2840 = vpack.c.b16 %v2626, %v2625
        %v2841 = vpack.c.b16 %v2628, %v2627
        %v2842 = vpack.c.b16 %v2630, %v2629
        %v2843 = vpack.c.b16 %v2632, %v2631
        %v2844 = vpack.c.b16 %v2634, %v2633
        %v2845 = vpack.c.b16 %v2636, %v2635
        %v2846 = vpack.c.b16 %v2638, %v2637
        %v2847 = vpack.c.b16 %v2640, %v2639
        %v2848 = vpack.c.b16 %v2642, %v2641
        %v2849 = vpack.c.b16 %v2644, %v2643
        %v2850 = vpack.c.b16 %v2646, %v2645
        %v2851 = vpack.c.b16 %v2648, %v2647
        %v2852 = vpack.c.b16 %v2650, %v2649
        %v2853 = vpack.c.b16 %v2652, %v2651
        %v2854 = vpack.c.b16 %v2654, %v2653
        %v2855 = vpack.c.b16 %v2656, %v2655
        %v2856 = vpack.c.b16 %v2658, %v2657
        %v2857 = vpack.c.b16 %v2660, %v2659
        %v2858 = vpack.c.b16 %v2662, %v2661
        %v2859 = vpack.c.b16 %v2664, %v2663
        %v2860 = vpack.c.b16 %v2666, %v2665
        %v2861 = vpack.c.b16 %v2668, %v2667
        %v2862 = vpack.c.b16 %v2670, %v2669
        %v2863 = vpack.c.b16 %v2672, %v2671
        %v2864 = vpack.c.b16 %v2674, %v2673
        %v2865 = vpack.c.b16 %v2676, %v2675
        %v2866 = vpack.c.b16 %v2678, %v2677
        %v2867 = vpack.c.b16 %v2680, %v2679
        %v2868 = vpack.c.b16 %v2682, %v2681
        %v2869 = vpack.c.b16 %v2684, %v2683
        %v2870 = vpack.c.b16 %v2686, %v2685
        %v2871 = vpack.c.b16 %v2688, %v2687
        %v2872 = vpack.c.b16 %v2690, %v2689
        %v2873 = vpack.c.b16 %v2692, %v2691
        %v2874 = vpack.c.b16 %v2694, %v2693
        %v2875 = vpack.c.b16 %v2696, %v2695
        %v2876 = vpack.c.b16 %v2698, %v2697
        %v2877 = vpack.c.b16 %v2700, %v2699
        %v2878 = vpack.c.b16 %v2702, %v2701
        %v2879 = vpack.c.b16 %v2704, %v2703
        %v2880 = vpack.c.b16 %v2706, %v2705
        %v2881 = vpack.c.b16 %v2708, %v2707
        %v2882 = vpack.c.b16 %v2710, %v2709
        %v2883 = vpack.c.b16 %v2712, %v2711
        %v2884 = vpack.c.b16 %v2714, %v2713
        %v2885 = vpack.c.b16 %v2716, %v2715
        %v2886 = vpack.c.b16 %v2718, %v2717
        %v2887 = vpack.c.b16 %v2720, %v2719
        %v2888 = vpack.c.b16 %v2722, %v2721
        %v2889 = vpack.c.b16 %v2724, %v2723
        %v2890 = vpack.c.b16 %v2726, %v2725
        %v2891 = vpack.c.b16 %v2728, %v2727
        %v2892 = vpack.c.b16 %v2730, %v2729
        %v2893 = vpack.c.b16 %v2732, %v2731
        %v2894 = vpack.c.b16 %v2734, %v2733
        %v2895 = vpack.c.b16 %v2736, %v2735
        %v2896 = vpack.c.b16 %v2738, %v2737
        %v2897 = vpack.c.b16 %v2740, %v2739
        %v2898 = vpack.c.b16 %v2742, %v2741
        %v2899 = vpack.c.b16 %v2744, %v2743
        %v2900 = vpack.c.b16 %v2746, %v2745
        %v2901 = vpack.c.b16 %v2748, %v2747
        %v2902 = vpack.c.b16 %v2750, %v2749
        %v2903 = vpack.c.b16 %v2752, %v2751
        %v2904 = vpack.c.b16 %v2754, %v2753
        %v2905 = vpack.c.b16 %v2756, %v2755
        %v2906 = vpack.c.b16 %v2758, %v2757
        %v2907 = vpack.c.b16 %v2760, %v2759
        %v2908 = vpack.c.b16 %v2762, %v2761
        %v2909 = vpack.c.b16 %v2764, %v2763
        %v2910 = vpack.c.b16 %v2766, %v2765
        %v2911 = vpack.c.b16 %v2768, %v2767
        %v2912 = vpack.c.b16 %v2770, %v2769
        %v2913 = vpack.c.b16 %v2772, %v2771
        %v2914 = vpack.c.b16 %v2774, %v2773
        %v2915 = vpack.c.b16 %v2776, %v2775
        %v2916 = vpack.c.b16 %v2778, %v2777
        %v2917 = vpack.c.b16 %v2780, %v2779
        %v2918 = vpack.c.b16 %v2782, %v2781
        %v2919 = vpack.c.b16 %v2784, %v2783
        %v2920 = vpack.c.b16 %v2786, %v2785
        %v2921 = vpack.c.b16 %v2788, %v2787
        %v2922 = vpack.c.b16 %v2790, %v2789
        %v2923 = vpack.c.b16 %v2792, %v2791
        %v2924 = vpack.c.b16 %v2794, %v2793
        %v2925 = vpack.c.b16 %v2796, %v2795
        %v2926 = vpack.c.b16 %v2798, %v2797
        %3055 = vmatpush.bf16.msra.mxu0 %v2806
        %3056 = vmatpush.bf16.msra.mxu0 %v2805
        %3057 = vmatpush.bf16.msra.mxu0 %v2804
        %3058 = vmatpush.bf16.msra.mxu0 %v2803
        %3059 = vmatpush.bf16.msra.mxu0 %v2802
        %3060 = vmatpush.bf16.msra.mxu0 %v2801
        %3061 = vmatpush.bf16.msra.mxu0 %v2800
        %3062 = vmatpush.bf16.msra.mxu0 %v2799
        %3063 = vmatmul.bf16.gmra.mxu0 %v2011
        %v3064 = vpop.f32.mrf.mxu0
        %v3065 = vadd.f32 %v2285, %v3064
        %v3066 = vpop.f32.mrf.mxu0
        %v3067 = vadd.f32 %v2285, %v3066
        %3068 = vdwg.mxu0
        %3069 = vmatpush.bf16.msra.mxu0 %v2814
        %3070 = vmatpush.bf16.msra.mxu0 %v2813
        %3071 = vmatpush.bf16.msra.mxu0 %v2812
        %3072 = vmatpush.bf16.msra.mxu0 %v2811
        %3073 = vmatpush.bf16.msra.mxu0 %v2810
        %3074 = vmatpush.bf16.msra.mxu0 %v2809
        %3075 = vmatpush.bf16.msra.mxu0 %v2808
        %3076 = vmatpush.bf16.msra.mxu0 %v2807
        %3077 = vmatmul.bf16.gmra.mxu0 %v2012
        %v3078 = vpop.f32.mrf.mxu0
        %v3079 = vadd.f32 %v3065, %v3078
        %v3080 = vpop.f32.mrf.mxu0
        %v3081 = vadd.f32 %v3067, %v3080
        %3082 = vdwg.mxu0
        %3083 = vmatpush.bf16.msra.mxu0 %v2822
        %3084 = vmatpush.bf16.msra.mxu0 %v2821
        %3085 = vmatpush.bf16.msra.mxu0 %v2820
        %3086 = vmatpush.bf16.msra.mxu0 %v2819
        %3087 = vmatpush.bf16.msra.mxu0 %v2818
        %3088 = vmatpush.bf16.msra.mxu0 %v2817
        %3089 = vmatpush.bf16.msra.mxu0 %v2816
        %3090 = vmatpush.bf16.msra.mxu0 %v2815
        %3091 = vmatmul.bf16.gmra.mxu0 %v2013
        %v3092 = vpop.f32.mrf.mxu0
        %v3093 = vadd.f32 %v3079, %v3092
        %v3094 = vpop.f32.mrf.mxu0
        %v3095 = vadd.f32 %v3081, %v3094
        %3096 = vdwg.mxu0
        %3097 = vmatpush.bf16.msra.mxu0 %v2830
        %3098 = vmatpush.bf16.msra.mxu0 %v2829
        %3099 = vmatpush.bf16.msra.mxu0 %v2828
        %3100 = vmatpush.bf16.msra.mxu0 %v2827
        %3101 = vmatpush.bf16.msra.mxu0 %v2826
        %3102 = vmatpush.bf16.msra.mxu0 %v2825
        %3103 = vmatpush.bf16.msra.mxu0 %v2824
        %3104 = vmatpush.bf16.msra.mxu0 %v2823
        %3105 = vmatmul.bf16.gmra.mxu0 %v2014
        %v3106 = vpop.f32.mrf.mxu0
        %v3107 = vadd.f32 %v3093, %v3106
        %v3108 = vpop.f32.mrf.mxu0
        %v3109 = vadd.f32 %v3095, %v3108
        %3110 = vdwg.mxu0
        %3111 = vmatpush.bf16.msra.mxu0 %v2838
        %3112 = vmatpush.bf16.msra.mxu0 %v2837
        %3113 = vmatpush.bf16.msra.mxu0 %v2836
        %3114 = vmatpush.bf16.msra.mxu0 %v2835
        %3115 = vmatpush.bf16.msra.mxu0 %v2834
        %3116 = vmatpush.bf16.msra.mxu0 %v2833
        %3117 = vmatpush.bf16.msra.mxu0 %v2832
        %3118 = vmatpush.bf16.msra.mxu0 %v2831
        %3119 = vmatmul.bf16.gmra.mxu0 %v2015
        %v3120 = vpop.f32.mrf.mxu0
        %v3121 = vadd.f32 %v3107, %v3120
        %v3122 = vpop.f32.mrf.mxu0
        %v3123 = vadd.f32 %v3109, %v3122
        %3124 = vdwg.mxu0
        %3125 = vmatpush.bf16.msra.mxu0 %v2846
        %3126 = vmatpush.bf16.msra.mxu0 %v2845
        %3127 = vmatpush.bf16.msra.mxu0 %v2844
        %3128 = vmatpush.bf16.msra.mxu0 %v2843
        %3129 = vmatpush.bf16.msra.mxu0 %v2842
        %3130 = vmatpush.bf16.msra.mxu0 %v2841
        %3131 = vmatpush.bf16.msra.mxu0 %v2840
        %3132 = vmatpush.bf16.msra.mxu0 %v2839
        %3133 = vmatmul.bf16.gmra.mxu0 %v2016
        %v3134 = vpop.f32.mrf.mxu0
        %v3135 = vadd.f32 %v3121, %v3134
        %v3136 = vpop.f32.mrf.mxu0
        %v3137 = vadd.f32 %v3123, %v3136
        %3138 = vdwg.mxu0
        %3139 = vmatpush.bf16.msra.mxu0 %v2854
        %3140 = vmatpush.bf16.msra.mxu0 %v2853
        %3141 = vmatpush.bf16.msra.mxu0 %v2852
        %3142 = vmatpush.bf16.msra.mxu0 %v2851
        %3143 = vmatpush.bf16.msra.mxu0 %v2850
        %3144 = vmatpush.bf16.msra.mxu0 %v2849
        %3145 = vmatpush.bf16.msra.mxu0 %v2848
        %3146 = vmatpush.bf16.msra.mxu0 %v2847
        %3147 = vmatmul.bf16.gmra.mxu0 %v2017
        %v3148 = vpop.f32.mrf.mxu0
        %v3149 = vadd.f32 %v3135, %v3148
        %v3150 = vpop.f32.mrf.mxu0
        %v3151 = vadd.f32 %v3137, %v3150
        %3152 = vdwg.mxu0
        %3153 = vmatpush.bf16.msra.mxu0 %v2862
        %3154 = vmatpush.bf16.msra.mxu0 %v2861
        %3155 = vmatpush.bf16.msra.mxu0 %v2860
        %3156 = vmatpush.bf16.msra.mxu0 %v2859
        %3157 = vmatpush.bf16.msra.mxu0 %v2858
        %3158 = vmatpush.bf16.msra.mxu0 %v2857
        %3159 = vmatpush.bf16.msra.mxu0 %v2856
        %3160 = vmatpush.bf16.msra.mxu0 %v2855
        %3161 = vmatmul.bf16.gmra.mxu0 %v2018
        %v3162 = vpop.f32.mrf.mxu0
        %v3163 = vadd.f32 %v3149, %v3162
        %v3164 = vpop.f32.mrf.mxu0
        %v3165 = vadd.f32 %v3151, %v3164
        %3166 = vdwg.mxu0
        %3167 = vmatpush.bf16.msra.mxu0 %v2870
        %3168 = vmatpush.bf16.msra.mxu0 %v2869
        %3169 = vmatpush.bf16.msra.mxu0 %v2868
        %3170 = vmatpush.bf16.msra.mxu0 %v2867
        %3171 = vmatpush.bf16.msra.mxu0 %v2866
        %3172 = vmatpush.bf16.msra.mxu0 %v2865
        %3173 = vmatpush.bf16.msra.mxu0 %v2864
        %3174 = vmatpush.bf16.msra.mxu0 %v2863
        %3175 = vmatmul.bf16.gmra.mxu0 %v2019
        %v3176 = vpop.f32.mrf.mxu0
        %v3177 = vadd.f32 %v3163, %v3176
        %v3178 = vpop.f32.mrf.mxu0
        %v3179 = vadd.f32 %v3165, %v3178
        %3180 = vdwg.mxu0
        %3181 = vmatpush.bf16.msra.mxu0 %v2878
        %3182 = vmatpush.bf16.msra.mxu0 %v2877
        %3183 = vmatpush.bf16.msra.mxu0 %v2876
        %3184 = vmatpush.bf16.msra.mxu0 %v2875
        %3185 = vmatpush.bf16.msra.mxu0 %v2874
        %3186 = vmatpush.bf16.msra.mxu0 %v2873
        %3187 = vmatpush.bf16.msra.mxu0 %v2872
        %3188 = vmatpush.bf16.msra.mxu0 %v2871
        %3189 = vmatmul.bf16.gmra.mxu0 %v2020
        %v3190 = vpop.f32.mrf.mxu0
        %v3191 = vadd.f32 %v3177, %v3190
        %v3192 = vpop.f32.mrf.mxu0
        %v3193 = vadd.f32 %v3179, %v3192
        %3194 = vdwg.mxu0
        %3195 = vmatpush.bf16.msra.mxu0 %v2886
        %3196 = vmatpush.bf16.msra.mxu0 %v2885
        %3197 = vmatpush.bf16.msra.mxu0 %v2884
        %3198 = vmatpush.bf16.msra.mxu0 %v2883
        %3199 = vmatpush.bf16.msra.mxu0 %v2882
        %3200 = vmatpush.bf16.msra.mxu0 %v2881
        %3201 = vmatpush.bf16.msra.mxu0 %v2880
        %3202 = vmatpush.bf16.msra.mxu0 %v2879
        %3203 = vmatmul.bf16.gmra.mxu0 %v2021
        %v3204 = vpop.f32.mrf.mxu0
        %v3205 = vadd.f32 %v3191, %v3204
        %v3206 = vpop.f32.mrf.mxu0
        %v3207 = vadd.f32 %v3193, %v3206
        %3208 = vdwg.mxu0
        %3209 = vmatpush.bf16.msra.mxu0 %v2894
        %3210 = vmatpush.bf16.msra.mxu0 %v2893
        %3211 = vmatpush.bf16.msra.mxu0 %v2892
        %3212 = vmatpush.bf16.msra.mxu0 %v2891
        %3213 = vmatpush.bf16.msra.mxu0 %v2890
        %3214 = vmatpush.bf16.msra.mxu0 %v2889
        %3215 = vmatpush.bf16.msra.mxu0 %v2888
        %3216 = vmatpush.bf16.msra.mxu0 %v2887
        %3217 = vmatmul.bf16.gmra.mxu0 %v2022
        %v3218 = vpop.f32.mrf.mxu0
        %v3219 = vadd.f32 %v3205, %v3218
        %v3220 = vpop.f32.mrf.mxu0
        %v3221 = vadd.f32 %v3207, %v3220
        %3222 = vdwg.mxu0
        %3223 = vmatpush.bf16.msra.mxu0 %v2902
        %3224 = vmatpush.bf16.msra.mxu0 %v2901
        %3225 = vmatpush.bf16.msra.mxu0 %v2900
        %3226 = vmatpush.bf16.msra.mxu0 %v2899
        %3227 = vmatpush.bf16.msra.mxu0 %v2898
        %3228 = vmatpush.bf16.msra.mxu0 %v2897
        %3229 = vmatpush.bf16.msra.mxu0 %v2896
        %3230 = vmatpush.bf16.msra.mxu0 %v2895
        %3231 = vmatmul.bf16.gmra.mxu0 %v2023
        %v3232 = vpop.f32.mrf.mxu0
        %v3233 = vadd.f32 %v3219, %v3232
        %v3234 = vpop.f32.mrf.mxu0
        %v3235 = vadd.f32 %v3221, %v3234
        %3236 = vdwg.mxu0
        %3237 = vmatpush.bf16.msra.mxu0 %v2910
        %3238 = vmatpush.bf16.msra.mxu0 %v2909
        %3239 = vmatpush.bf16.msra.mxu0 %v2908
        %3240 = vmatpush.bf16.msra.mxu0 %v2907
        %3241 = vmatpush.bf16.msra.mxu0 %v2906
        %3242 = vmatpush.bf16.msra.mxu0 %v2905
        %3243 = vmatpush.bf16.msra.mxu0 %v2904
        %3244 = vmatpush.bf16.msra.mxu0 %v2903
        %3245 = vmatmul.bf16.gmra.mxu0 %v2024
        %v3246 = vpop.f32.mrf.mxu0
        %v3247 = vadd.f32 %v3233, %v3246
        %v3248 = vpop.f32.mrf.mxu0
        %v3249 = vadd.f32 %v3235, %v3248
        %3250 = vdwg.mxu0
        %3251 = vmatpush.bf16.msra.mxu0 %v2918
        %3252 = vmatpush.bf16.msra.mxu0 %v2917
        %3253 = vmatpush.bf16.msra.mxu0 %v2916
        %3254 = vmatpush.bf16.msra.mxu0 %v2915
        %3255 = vmatpush.bf16.msra.mxu0 %v2914
        %3256 = vmatpush.bf16.msra.mxu0 %v2913
        %3257 = vmatpush.bf16.msra.mxu0 %v2912
        %3258 = vmatpush.bf16.msra.mxu0 %v2911
        %3259 = vmatmul.bf16.gmra.mxu0 %v2025
        %v3260 = vpop.f32.mrf.mxu0
        %v3261 = vadd.f32 %v3247, %v3260
        %v3262 = vpop.f32.mrf.mxu0
        %v3263 = vadd.f32 %v3249, %v3262
        %3264 = vdwg.mxu0
        %3265 = vmatpush.bf16.msra.mxu0 %v2926
        %3266 = vmatpush.bf16.msra.mxu0 %v2925
        %3267 = vmatpush.bf16.msra.mxu0 %v2924
        %3268 = vmatpush.bf16.msra.mxu0 %v2923
        %3269 = vmatpush.bf16.msra.mxu0 %v2922
        %3270 = vmatpush.bf16.msra.mxu0 %v2921
        %3271 = vmatpush.bf16.msra.mxu0 %v2920
        %3272 = vmatpush.bf16.msra.mxu0 %v2919
        %3273 = vmatmul.bf16.gmra.mxu0 %v2026
        %v3274 = vpop.f32.mrf.mxu0
        %v3275 = vadd.f32 %v3261, %v3274
        %v3276 = vpop.f32.mrf.mxu0
        %v3277 = vadd.f32 %v3263, %v3276
        %3278 = vdwg.mxu0
        %v3279 = vadd.f32 %v1433, %v3275
        %v3280 = vadd.f32 %v1434, %v3277
        %3281 = vst.msk [vmem:[#allocation2] sm:$0xff] %vm744, %v3279
        %3282 = vst.msk [vmem:[#allocation2 + $0x8] sm:$0xff] %vm744, %v3280
        %p3283 = scmp.eq.s32.totalorder %s29, 1
        // Predicated region
        $region93: #{tpu_custom_call.1} parent=87 // pred_check
          %p3284 = pneg %p3283
        $region94: #{tpu_custom_call.1} parent=87 // pred_check_branch
          %3286 = sbr.rel (%p3284) target = $region96
        $region95: #{tpu_custom_call.1} parent=87 // pred_region
          %v3287 = vld [vmem:[%s15] sm:$0x1]
          %v3288 = vld [vmem:[%s16] sm:$0x1]
          %v3289 = vsel %vm744, %v3279, 0.0
          %3290 = vadd.xlane.f32.xlu0 %v3289
          %v3291 = vpop.xlane.xlu0 %3290
          %v3292 = vsel %vm744, %v3280, 0.0
          %3293 = vadd.xlane.f32.xlu0 %v3292
          %v3294 = vpop.xlane.xlu0 %3293
          %v3295 = vmul.f32 %v3291, %v757
          %v3296 = vmul.f32 %v3294, %v757
          %v3297 = vsub.f32 %v3279, %v3295
          %v3298 = vsub.f32 %v3280, %v3296
          %v3299 = vmul.f32 %v3297, %v3297
          %v3300 = vmul.f32 %v3298, %v3298
          %v3301 = vsel %vm744, %v3299, 0.0
          %3302 = vadd.xlane.f32.xlu0 %v3301
          %v3303 = vpop.xlane.xlu0 %3302
          %v3304 = vsel %vm744, %v3300, 0.0
          %3305 = vadd.xlane.f32.xlu0 %v3304
          %v3306 = vpop.xlane.xlu0 %3305
          %v3307 = vmul.f32 %v3303, 0.032258064
          %v3308 = vmul.f32 %v3306, 0.032258064
          %v3309 = vrsqrt.pop %v3307
          %v3310 = vmul.f32 %v3309, %v3307
          %v3311 = vmul.f32 %v3310, %v3309
          %v3312 = vmul.f32 0.5, %v3311
          %v3313 = vsub.f32 1.5, %v3312
          %v3314 = vmul.f32 %v3309, %v3313
          %v3315 = vmul.f32 %v3307, %v3314
          %vm3316 = vcmp.eq.f32.partialorder %v3307, inf
          %v3317 = vsel %vm3316, %v3307, %v3315
          %vm3318 = vcmp.eq.f32.partialorder %v3307, 0.0
          %v3319 = vand.u32 %v3307, 2147483648
          %v3320 = vsel %vm3318, %v3319, %v3317
          %v3321 = vrsqrt.pop %v3308
          %v3322 = vmul.f32 %v3321, %v3308
          %v3323 = vmul.f32 %v3322, %v3321
          %v3324 = vmul.f32 0.5, %v3323
          %v3325 = vsub.f32 1.5, %v3324
          %v3326 = vmul.f32 %v3321, %v3325
          %v3327 = vmul.f32 %v3308, %v3326
          %vm3328 = vcmp.eq.f32.partialorder %v3308, inf
          %v3329 = vsel %vm3328, %v3308, %v3327
          %vm3330 = vcmp.eq.f32.partialorder %v3308, 0.0
          %v3331 = vand.u32 %v3308, 2147483648
          %v3332 = vsel %vm3330, %v3331, %v3329
          %v3334 = vperm.slane %v3287, 0
          %v3336 = vmul.f32 %v3334, %v3297
          %v3337 = vmul.f32 %v3334, %v3298
          %v3338 = vadd.f32 %v3320, 1e-06
          %v3339 = vadd.f32 %v3332, 1e-06
          %v3340 = vrcp.pop %v3338
          %v3341 = vmul.f32 %v3338, %v3340
          %v3342 = vsub.f32 1.0, %v3341
          %v3343 = vmul.f32 %v3340, %v3342
          %v3344 = vadd.f32 %v3340, %v3343
          %vm3345 = vweird.f32 %v3338
          %vm3346 = vweird.f32 %v3340
          %vm3347 = vmor %vm3345, %vm3346
          %v3348 = vsel %vm3347, %v3340, %v3344
          %v3349 = vand.u32 2147483647, %v3338
          %vm3350 = vcmp.eq.f32.partialorder %v3349, 8.507059e+37
          %v3351 = vand.u32 %v3338, 2147483648
          %v3352 = vor.u32 1.1754944e-38, %v3351
          %v3353 = vsel %vm3350, %v3352, %v3348
          %v3354 = vmul.f32 %v3336, %v3353
          %v3355 = vrcp.pop %v3339
          %v3356 = vmul.f32 %v3339, %v3355
          %v3357 = vsub.f32 1.0, %v3356
          %v3358 = vmul.f32 %v3355, %v3357
          %v3359 = vadd.f32 %v3355, %v3358
          %vm3360 = vweird.f32 %v3339
          %vm3361 = vweird.f32 %v3355
          %vm3362 = vmor %vm3360, %vm3361
          %v3363 = vsel %vm3362, %v3355, %v3359
          %v3364 = vand.u32 2147483647, %v3339
          %vm3365 = vcmp.eq.f32.partialorder %v3364, 8.507059e+37
          %v3366 = vand.u32 %v3339, 2147483648
          %v3367 = vor.u32 1.1754944e-38, %v3366
          %v3368 = vsel %vm3365, %v3367, %v3363
          %v3369 = vmul.f32 %v3337, %v3368
          %v3371 = vperm.slane %v3288, 0
          %v3373 = vadd.f32 %v3354, %v3371
          %v3374 = vadd.f32 %v3369, %v3371
          %3375 = vst.msk [vmem:[#allocation3] sm:$0xff] %vm744, %v3373
          %3376 = vst.msk [vmem:[#allocation3 + $0x8] sm:$0xff] %vm744, %v3374
        $region96: #{tpu_custom_call.1} parent=87 // pred_fallthru
          _
        // Predicated region
        $region97: #{tpu_custom_call.1} parent=87 // pred_check
          %p3377 = pneg %p459
        $region98: #{tpu_custom_call.1} parent=87 // pred_check_branch
          %3379 = sbr.rel (%p3377) target = $region100
        $region99: #{tpu_custom_call.1} parent=87 // pred_region
          %3381 = vsyncadd [#allocation4], 0
          %s3382 = sshll.u32 [#allocation3], 4
          %s3383 = int_to_ptr.vmem [resolvable:$true] %s3382
          %s3384 = sshll.u32 %s17, 4
          %s3385 = int_to_ptr.hbm [resolvable:$true] %s3384
          %3390 = dma.vmem_to_hbm [thread:$0]  %s3383, 256, %s3385, [#allocation4], 128, 128, 8
        $region100: #{tpu_custom_call.1} parent=87 // pred_fallthru
          _
        // Predicated region
        $region101: #{tpu_custom_call.1} parent=87 // pred_check
          %p3391 = pneg %p459
        $region102: #{tpu_custom_call.1} parent=87 // pred_check_branch
          %3393 = sbr.rel (%p3391) target = $region104
        $region103: #{tpu_custom_call.1} parent=87 // pred_region
          %3395 = dma.done [#allocation4], 256
        $region104: #{tpu_custom_call.1} parent=87 // pred_fallthru
          _
      $region88: #{tpu_custom_call.1} parent=5 // pred_fallthru
        _
      %p3396 = scmp.le.s32.totalorder 2, %s24
      // Predicated region
      $region105: #{tpu_custom_call.1} parent=5 // pred_check
        %p3397 = pneg %p3396
      $region106: #{tpu_custom_call.1} parent=5 // pred_check_branch
        %3399 = sbr.rel (%p3397) target = $region108
      $region107: #{tpu_custom_call.1} parent=5 // pred_region
        %s3400 = ssub.s32 %s24, 2
      $region108: #{tpu_custom_call.1} parent=5 // pred_fallthru
        _
    $region6: #{tpu_custom_call.1} parent=1 // loop_footer
      %s28 = sadd.s32 1, %s24
    $region7: #{tpu_custom_call.1} parent=1 // loop_footer_branch
      %23 = sbr.rel target = $region3
    $region8: #{tpu_custom_call.1} parent=1 // loop_exit
      _
    %3401 = vsyncpa [#allocation4], 1
    %s3402 = scalar_lea.sflag [#allocation4], 1
    %3403 = vsyncpa %s3402, 1

</llo_original>
